<compile_context>
chip_gen: v7x
topology: tpu7x:2x2x1
jax: 0.10.0
libtpu: 0.0.40
codegen_flags: <defaults>
</compile_context>

<pallas_src>
import functools

import jax
import jax.numpy as jnp
from jax.experimental import pallas as pl
from jax.experimental.pallas import tpu as pltpu


def _pair(v):
    return (v, v) if isinstance(v, int) else tuple(v)


# ----------------------------------------------------------------------------
# Pallas kernel: Nb batch images per grid step.
#   refs = (x_ref, w_ref, [b_ref], o_ref, [xpad_ref])
#   x_ref : (Nb, H, W, Cin)         activations (NHWC block), MXU dtype
#   w_ref : (KH*KW*Cin, Cout)       pre-flattened weights,    MXU dtype
#   b_ref : (1, Cout) f32           optional bias
#   o_ref : (Nb, Cout, Ho*Wo)       lane-dense, flattened-NCHW output block
#   xpad  : (Nb, Hp, Wp, Cin)       VMEM scratch (only when padding > 0)
# ----------------------------------------------------------------------------
def _conv_kernel(*refs, KH, KW, sh, sw, dh, dw, ph, pw, Ho, Wo,
                 relu, has_bias, has_pad, fold_taps):
    i = 0
    x_ref = refs[i]; i += 1
    w_ref = refs[i]; i += 1
    b_ref = None
    if has_bias:
        b_ref = refs[i]; i += 1
    o_ref = refs[i]; i += 1
    xpad_ref = refs[i] if has_pad else None

    Nb, H, W, Cin = x_ref.shape
    Cout = w_ref.shape[1]
    S = Ho * Wo               # output pixels per image
    M = Nb * S                # stacked im2col rows (MXU M)

    if has_pad:
        Hp, Wp = H + 2 * ph, W + 2 * pw
        # Zero only the halo, not the whole scratch: the interior is fully
        # rewritten below on every grid step.  Halo-zeroing each step (rather than
        # only at program_id==0) stays correct when a "parallel" grid is split
        # across TensorCores (each core owns its own scratch copy).
        z = xpad_ref.dtype
        if ph > 0:
            xpad_ref[:, :ph, :, :] = jnp.zeros((Nb, ph, Wp, Cin), z)
            xpad_ref[:, ph + H:Hp, :, :] = jnp.zeros((Nb, ph, Wp, Cin), z)
        if pw > 0:
            xpad_ref[:, :, :pw, :] = jnp.zeros((Nb, Hp, pw, Cin), z)
            xpad_ref[:, :, pw + W:Wp, :] = jnp.zeros((Nb, Hp, pw, Cin), z)
        xpad_ref[:, ph:ph + H, pw:pw + W, :] = x_ref[...]

    src = xpad_ref if has_pad else x_ref

    def tap(h0, w0):
        # (Nb, Ho, Wo, Cin) shifted window -> (Nb*Ho*Wo, Cin) im2col rows.
        if sh == 1 and sw == 1:
            t = src[:, h0:h0 + Ho, w0:w0 + Wo, :]
        else:
            # stride > 1 path (not exercised by the demo; see review note).
            t = src[:, pl.ds(h0, Ho, sh), pl.ds(w0, Wo, sw), :]
        return t.reshape(M, Cin)

    if fold_taps:
        # im2col-lite: fold all KH*KW taps into the contraction dim -> one
        # (M, KH*KW*Cin) @ (KH*KW*Cin, Cout) MXU matmul, f32 accumulate.
        cols = [tap(kh * dh, kw * dw) for kh in range(KH) for kw in range(KW)]
        patches = cols[0] if len(cols) == 1 else jnp.concatenate(cols, axis=1)
        acc = jnp.dot(patches, w_ref[...], preferred_element_type=jnp.float32)
    else:
        # Per-tap accumulation: avoids the lane-axis concat entirely at the cost
        # of KH*KW small-K matmuls (attractive on v7x, MRB accumulates in place).
        acc = jnp.zeros((M, Cout), jnp.float32)
        t_i = 0
        for kh in range(KH):
            for kw in range(KW):
                w_tap = w_ref[t_i * Cin:(t_i + 1) * Cin, :]
                acc = acc + jnp.dot(tap(kh * dh, kw * dw), w_tap,
                                    preferred_element_type=jnp.float32)
                t_i += 1

    if has_bias:
        acc = acc + b_ref[...]          # (1, Cout) broadcasts over rows, f32
    if relu:
        acc = jnp.maximum(acc, 0.0)     # f32 epilogue (v5e has no bf16 VPU path)

    # Lane-dense store: (Cout, Ho*Wo) puts the long spatial axis on the 128-lane
    # axis (unmasked vst) and is exactly flattened NCHW, so the wrapper only
    # needs a free contiguous reshape.
    for b in range(Nb):
        o_ref[b] = acc[b * S:(b + 1) * S, :].T.astype(o_ref.dtype)


# ----------------------------------------------------------------------------
# Wrapper: NCHW input / OIHW weight (PyTorch convention) -> NCHW output.
# ----------------------------------------------------------------------------
def basic_conv(x, weight_oihw, bias=None, *, stride=1, padding=0, dilation=1,
               groups=1, relu=True, mxu_dtype=jnp.bfloat16, out_dtype=None,
               images_per_step=None, fold_taps=True, channels_last=False):
    if groups != 1:
        # TODO(synk): grouped / depthwise convolution (groups > 1) not implemented.
        raise NotImplementedError("groups != 1 is not supported")

    if channels_last:
        N, H, W, Cin = x.shape
    else:
        N, Cin, H, W = x.shape
    Cout, Cin_w, KH, KW = weight_oihw.shape
    assert Cin_w == Cin, "channel mismatch"

    sh, sw = _pair(stride)
    ph, pw = _pair(padding)
    dh, dw = _pair(dilation)
    Ho = (H + 2 * ph - dh * (KH - 1) - 1) // sh + 1
    Wo = (W + 2 * pw - dw * (KW - 1) - 1) // sw + 1
    Hp, Wp = H + 2 * ph, W + 2 * pw
    K = KH * KW * Cin
    out_dtype = out_dtype or x.dtype
    has_bias = bias is not None
    has_pad = (ph > 0) or (pw > 0)

    cdt = x.dtype if mxu_dtype is None else mxu_dtype
    # NHWC activations (channel-last feeds the contraction directly).  The
    # transpose + bf16 cast fuse into one XLA pass; with channels_last=True the
    # transpose disappears entirely.
    x_nhwc = (x if channels_last else jnp.transpose(x, (0, 2, 3, 1))).astype(cdt)
    # Pre-flattened (KH*KW*Cin, Cout) weights: constant block index across the
    # grid, so they stay VMEM-resident.
    w_flat = jnp.transpose(weight_oihw, (2, 3, 1, 0)).reshape(K, Cout).astype(cdt)

    # ---- how many images to fold into one grid step (VMEM-aware) -------------
    if images_per_step is None:
        r8 = lambda v: -(-v // 8) * 8
        r128 = lambda v: -(-v // 128) * 128
        per_img = (2 * H * r8(W) * 128 * 2                        # x block x2 (dbl-buf), Cin lane-padded, bf16
                   + 2 * r8(Cout) * r128(Ho * Wo) * 4             # out block x2 (dbl-buf)
                   + (Hp * r8(Wp) * 128 * 2 if has_pad else 0)    # padded scratch
                   + r8(Ho * Wo) * (r128(K) * 2 + 128 * 4))       # patches + f32 acc temporaries
        budget = 8 << 20          # conservative; v7x scoped VMEM default ~32 MiB
        Nb = max(1, min(N // 2 if N >= 2 else 1, budget // max(per_img, 1)))
        while N % Nb:
            Nb -= 1
    else:
        Nb = images_per_step
    assert N % Nb == 0, "images_per_step must divide the batch"
    grid = (N // Nb,)

    inputs = [x_nhwc, w_flat]
    in_specs = [
        pl.BlockSpec((Nb, H, W, Cin), lambda n: (n, 0, 0, 0)),
        pl.BlockSpec((K, Cout), lambda n: (0, 0)),
    ]
    if has_bias:
        inputs.append(bias.reshape(1, Cout).astype(jnp.float32))
        in_specs.append(pl.BlockSpec((1, Cout), lambda n: (0, 0)))

    scratch_shapes = []
    if has_pad:
        scratch_shapes.append(pltpu.VMEM((Nb, Hp, Wp, Cin), cdt))

    kern = functools.partial(
        _conv_kernel, KH=KH, KW=KW, sh=sh, sw=sw, dh=dh, dw=dw, ph=ph, pw=pw,
        Ho=Ho, Wo=Wo, relu=relu, has_bias=has_bias, has_pad=has_pad,
        fold_taps=fold_taps)

    out_flat = pl.pallas_call(
        kern,
        out_shape=jax.ShapeDtypeStruct((N, Cout, Ho * Wo), out_dtype),
        grid=grid,
        in_specs=in_specs,
        out_specs=pl.BlockSpec((Nb, Cout, Ho * Wo), lambda n: (n, 0, 0)),
        scratch_shapes=scratch_shapes,
        compiler_params=pltpu.CompilerParams(
            dimension_semantics=("parallel",),
            vmem_limit_bytes=32 * 1024 * 1024),
    )(*inputs)

    # (N, Cout, Ho*Wo) -> (N, Cout, Ho, Wo): contiguous, no data movement.
    return out_flat.reshape(N, Cout, Ho, Wo)


# ----------------------------------------------------------------------------
# Pure-JAX reference (lax conv), same bf16-operand / f32-accumulate numerics.
# ----------------------------------------------------------------------------
def basic_conv_ref(x_nchw, weight_oihw, bias=None, *, stride=(1, 1),
                   padding=(0, 0), dilation=(1, 1), relu=True,
                   mxu_dtype=jnp.bfloat16):
    cdt = x_nchw.dtype if mxu_dtype is None else mxu_dtype
    y = jax.lax.conv_general_dilated(
        x_nchw.astype(cdt), weight_oihw.astype(cdt),
        window_strides=stride,
        padding=[(padding[0], padding[0]), (padding[1], padding[1])],
        rhs_dilation=dilation,
        dimension_numbers=("NCHW", "OIHW", "NCHW"),
        preferred_element_type=jnp.float32)
    if bias is not None:
        y = y + bias.astype(jnp.float32).reshape(1, -1, 1, 1)
    if relu:
        y = jnp.maximum(y, 0.0)
    return y.astype(x_nchw.dtype)


# ----------------------------------------------------------------------------
# Deterministic init matching the module (kaiming_normal_ fan_in, a=0, *= 0.1).
# ----------------------------------------------------------------------------
def _kaiming_oihw(key, cout, cin, kh, kw):
    fan_in = cin * kh * kw
    std = (2.0 / fan_in) ** 0.5
    return jax.random.normal(key, (cout, cin, kh, kw), jnp.float32) * std * 0.1


if __name__ == "__main__":
    key = jax.random.PRNGKey(0)
    kx, k1, k2, k3, kb = jax.random.split(key, 5)

    N, Cin, H, W = 4, 16, 16, 16     # N=4 -> Nb=2 images per step, grid length 2
    Cout = 32
    x = jax.random.normal(kx, (N, Cin, H, W), jnp.float32)

    cases = []

    # BasicConv(16, 32, kernel_size=3, padding=1)   -- typical 3x3 + ReLU
    w1 = _kaiming_oihw(k1, Cout, Cin, 3, 3)
    r1 = basic_conv_ref(x, w1, stride=(1, 1), padding=(1, 1), dilation=(1, 1), relu=True)
    y1a = basic_conv(x, w1, stride=1, padding=1, dilation=1, relu=True, fold_taps=True)
    y1b = basic_conv(x, w1, stride=1, padding=1, dilation=1, relu=True, fold_taps=False)
    y1c = basic_conv(jnp.transpose(x, (0, 2, 3, 1)), w1, padding=1, relu=True,
                     channels_last=True)
    cases.append(("3x3_pad1_relu_fold", y1a, r1, 1e-4, 1e-4))
    cases.append(("3x3_pad1_relu_pertap", y1b, r1, 1e-4, 1e-4))
    cases.append(("3x3_pad1_relu_chlast", y1c, r1, 1e-4, 1e-4))

    # BasicConv(16, 32, kernel_size=1, bias=True)   -- pointwise, bias path
    w2 = _kaiming_oihw(k2, Cout, Cin, 1, 1)
    b2 = 0.05 * jax.random.normal(kb, (Cout,), jnp.float32)
    y2 = basic_conv(x, w2, b2, stride=1, padding=0, dilation=1, relu=True)
    r2 = basic_conv_ref(x, w2, b2, stride=(1, 1), padding=(0, 0), dilation=(1, 1), relu=True)
    cases.append(("1x1_bias_relu", y2, r2, 1e-4, 1e-4))

    # BasicConv(16, 32, kernel_size=3, padding=3, dilation=3, relu=False), bf16 output
    w3 = _kaiming_oihw(k3, Cout, Cin, 3, 3)
    y3 = basic_conv(x, w3, stride=1, padding=3, dilation=3, relu=False,
                    out_dtype=jnp.bfloat16)
    r3 = basic_conv_ref(x, w3, stride=(1, 1), padding=(3, 3), dilation=(3, 3), relu=False)
    cases.append(("3x3_pad3_dil3_bf16out", y3.astype(jnp.float32), r3, 1e-2, 1e-2))

    for name, y, r, atol, rtol in cases:
        y = jax.block_until_ready(y)
        assert y.shape == r.shape, f"shape mismatch: {name} {y.shape} vs {r.shape}"
        assert bool(jnp.allclose(y, r, atol=atol, rtol=rtol)), f"value mismatch: {name}"

    print("KERNEL_OK")
</pallas_src>

<mosaic_0001>
module attributes {stable_mosaic.version = 11 : i64} {
  func.func @_conv_kernel(%arg0: i32, %arg1: memref<2x16x16x16xbf16, #tpu.memory_space<vmem>>, %arg2: memref<144x32xbf16, #tpu.memory_space<vmem>>, %arg3: memref<2x32x256xf32, #tpu.memory_space<vmem>>, %arg4: memref<2x18x18x16xbf16, #tpu.memory_space<vmem>>) attributes {dimension_semantics = [#tpu.dimension_semantics<parallel>], iteration_bounds = array<i64: 2>, scalar_prefetch = 0 : i64, scratch_operands = 1 : i64, tpu.core_type = #tpu.core_type<tc>, window_params = [{transform_indices = @transform_0, window_bounds = array<i64: 2, 16, 16, 16>}, {pipeline_mode = #tpu.pipeline_mode<synchronous>, transform_indices = @transform_1, window_bounds = array<i64: 144, 32>}, {transform_indices = @transform_2, window_bounds = array<i64: 2, 32, 256>}]} {
    %cst = arith.constant 0.000000e+00 : bf16
    %0 = vector.broadcast %cst : bf16 to vector<2x1x18x16xbf16>
    %c0 = arith.constant 0 : index
    %c0_0 = arith.constant 0 : index
    %c0_1 = arith.constant 0 : index
    %c0_2 = arith.constant 0 : index
    %1 = vector.load %arg4[%c0, %c0_0, %c0_1, %c0_2] : memref<2x18x18x16xbf16, #tpu.memory_space<vmem>>, vector<2x1x18x16xbf16>
    tpu.vector_store %arg4[%c0, %c0_0, %c0_1, %c0_2], %0 {strides = array<i32>} : memref<2x18x18x16xbf16, #tpu.memory_space<vmem>>, vector<2x1x18x16xbf16>,
    %cst_3 = arith.constant 0.000000e+00 : bf16
    %2 = vector.broadcast %cst_3 : bf16 to vector<2x1x18x16xbf16>
    %c0_4 = arith.constant 0 : index
    %c17 = arith.constant 17 : index
    %c0_5 = arith.constant 0 : index
    %c0_6 = arith.constant 0 : index
    %3 = vector.load %arg4[%c0_4, %c17, %c0_5, %c0_6] : memref<2x18x18x16xbf16, #tpu.memory_space<vmem>>, vector<2x1x18x16xbf16>
    tpu.vector_store %arg4[%c0_4, %c17, %c0_5, %c0_6], %2 {strides = array<i32>} : memref<2x18x18x16xbf16, #tpu.memory_space<vmem>>, vector<2x1x18x16xbf16>,
    %cst_7 = arith.constant 0.000000e+00 : bf16
    %4 = vector.broadcast %cst_7 : bf16 to vector<2x18x1x16xbf16>
    %c0_8 = arith.constant 0 : index
    %c0_9 = arith.constant 0 : index
    %c0_10 = arith.constant 0 : index
    %c0_11 = arith.constant 0 : index
    %5 = vector.load %arg4[%c0_8, %c0_9, %c0_10, %c0_11] : memref<2x18x18x16xbf16, #tpu.memory_space<vmem>>, vector<2x18x1x16xbf16>
    tpu.vector_store %arg4[%c0_8, %c0_9, %c0_10, %c0_11], %4 {strides = array<i32>} : memref<2x18x18x16xbf16, #tpu.memory_space<vmem>>, vector<2x18x1x16xbf16>,
    %cst_12 = arith.constant 0.000000e+00 : bf16
    %6 = vector.broadcast %cst_12 : bf16 to vector<2x18x1x16xbf16>
    %c0_13 = arith.constant 0 : index
    %c0_14 = arith.constant 0 : index
    %c17_15 = arith.constant 17 : index
    %c0_16 = arith.constant 0 : index
    %7 = vector.load %arg4[%c0_13, %c0_14, %c17_15, %c0_16] : memref<2x18x18x16xbf16, #tpu.memory_space<vmem>>, vector<2x18x1x16xbf16>
    tpu.vector_store %arg4[%c0_13, %c0_14, %c17_15, %c0_16], %6 {strides = array<i32>} : memref<2x18x18x16xbf16, #tpu.memory_space<vmem>>, vector<2x18x1x16xbf16>,
    %c0_17 = arith.constant 0 : index
    %c0_18 = arith.constant 0 : index
    %c0_19 = arith.constant 0 : index
    %c0_20 = arith.constant 0 : index
    %8 = vector.load %arg1[%c0_17, %c0_18, %c0_19, %c0_20] : memref<2x16x16x16xbf16, #tpu.memory_space<vmem>>, vector<2x16x16x16xbf16>
    %c0_21 = arith.constant 0 : index
    %c1 = arith.constant 1 : index
    %c1_22 = arith.constant 1 : index
    %c0_23 = arith.constant 0 : index
    %9 = vector.load %arg4[%c0_21, %c1, %c1_22, %c0_23] : memref<2x18x18x16xbf16, #tpu.memory_space<vmem>>, vector<2x16x16x16xbf16>
    tpu.vector_store %arg4[%c0_21, %c1, %c1_22, %c0_23], %8 {strides = array<i32>} : memref<2x18x18x16xbf16, #tpu.memory_space<vmem>>, vector<2x16x16x16xbf16>,
    %c0_24 = arith.constant 0 : index
    %c0_25 = arith.constant 0 : index
    %c0_26 = arith.constant 0 : index
    %c0_27 = arith.constant 0 : index
    %10 = vector.load %arg4[%c0_24, %c0_25, %c0_26, %c0_27] : memref<2x18x18x16xbf16, #tpu.memory_space<vmem>>, vector<2x16x16x16xbf16>
    %11 = vector.shape_cast %10 : vector<2x16x16x16xbf16> to vector<512x16xbf16>
    %c0_28 = arith.constant 0 : index
    %c0_29 = arith.constant 0 : index
    %c1_30 = arith.constant 1 : index
    %c0_31 = arith.constant 0 : index
    %12 = vector.load %arg4[%c0_28, %c0_29, %c1_30, %c0_31] : memref<2x18x18x16xbf16, #tpu.memory_space<vmem>>, vector<2x16x16x16xbf16>
    %13 = vector.shape_cast %12 : vector<2x16x16x16xbf16> to vector<512x16xbf16>
    %c0_32 = arith.constant 0 : index
    %c0_33 = arith.constant 0 : index
    %c2 = arith.constant 2 : index
    %c0_34 = arith.constant 0 : index
    %14 = vector.load %arg4[%c0_32, %c0_33, %c2, %c0_34] : memref<2x18x18x16xbf16, #tpu.memory_space<vmem>>, vector<2x16x16x16xbf16>
    %15 = vector.shape_cast %14 : vector<2x16x16x16xbf16> to vector<512x16xbf16>
    %c0_35 = arith.constant 0 : index
    %c1_36 = arith.constant 1 : index
    %c0_37 = arith.constant 0 : index
    %c0_38 = arith.constant 0 : index
    %16 = vector.load %arg4[%c0_35, %c1_36, %c0_37, %c0_38] : memref<2x18x18x16xbf16, #tpu.memory_space<vmem>>, vector<2x16x16x16xbf16>
    %17 = vector.shape_cast %16 : vector<2x16x16x16xbf16> to vector<512x16xbf16>
    %c0_39 = arith.constant 0 : index
    %c1_40 = arith.constant 1 : index
    %c1_41 = arith.constant 1 : index
    %c0_42 = arith.constant 0 : index
    %18 = vector.load %arg4[%c0_39, %c1_40, %c1_41, %c0_42] : memref<2x18x18x16xbf16, #tpu.memory_space<vmem>>, vector<2x16x16x16xbf16>
    %19 = vector.shape_cast %18 : vector<2x16x16x16xbf16> to vector<512x16xbf16>
    %c0_43 = arith.constant 0 : index
    %c1_44 = arith.constant 1 : index
    %c2_45 = arith.constant 2 : index
    %c0_46 = arith.constant 0 : index
    %20 = vector.load %arg4[%c0_43, %c1_44, %c2_45, %c0_46] : memref<2x18x18x16xbf16, #tpu.memory_space<vmem>>, vector<2x16x16x16xbf16>
    %21 = vector.shape_cast %20 : vector<2x16x16x16xbf16> to vector<512x16xbf16>
    %c0_47 = arith.constant 0 : index
    %c2_48 = arith.constant 2 : index
    %c0_49 = arith.constant 0 : index
    %c0_50 = arith.constant 0 : index
    %22 = vector.load %arg4[%c0_47, %c2_48, %c0_49, %c0_50] : memref<2x18x18x16xbf16, #tpu.memory_space<vmem>>, vector<2x16x16x16xbf16>
    %23 = vector.shape_cast %22 : vector<2x16x16x16xbf16> to vector<512x16xbf16>
    %c0_51 = arith.constant 0 : index
    %c2_52 = arith.constant 2 : index
    %c1_53 = arith.constant 1 : index
    %c0_54 = arith.constant 0 : index
    %24 = vector.load %arg4[%c0_51, %c2_52, %c1_53, %c0_54] : memref<2x18x18x16xbf16, #tpu.memory_space<vmem>>, vector<2x16x16x16xbf16>
    %25 = vector.shape_cast %24 : vector<2x16x16x16xbf16> to vector<512x16xbf16>
    %c0_55 = arith.constant 0 : index
    %c2_56 = arith.constant 2 : index
    %c2_57 = arith.constant 2 : index
    %c0_58 = arith.constant 0 : index
    %26 = vector.load %arg4[%c0_55, %c2_56, %c2_57, %c0_58] : memref<2x18x18x16xbf16, #tpu.memory_space<vmem>>, vector<2x16x16x16xbf16>
    %27 = vector.shape_cast %26 : vector<2x16x16x16xbf16> to vector<512x16xbf16>
    %28 = tpu.concatenate %11, %13, %15, %17, %19, %21, %23, %25, %27 in 1 : vector<512x16xbf16>, vector<512x16xbf16>, vector<512x16xbf16>, vector<512x16xbf16>, vector<512x16xbf16>, vector<512x16xbf16>, vector<512x16xbf16>, vector<512x16xbf16>, vector<512x16xbf16> -> vector<512x144xbf16>
    %c0_59 = arith.constant 0 : index
    %c0_60 = arith.constant 0 : index
    %29 = vector.load %arg2[%c0_59, %c0_60] : memref<144x32xbf16, #tpu.memory_space<vmem>>, vector<144x32xbf16>
    %cst_61 = arith.constant dense<0.000000e+00> : vector<512x32xf32>
    %30 = tpu.matmul %28, %29, %cst_61 {dimension_numbers = #tpu.dot_dimension_numbers<[1], [0], [0], [1], [0, 0, 1, 1], [], []>} : vector<512x144xbf16>, vector<144x32xbf16>, vector<512x32xf32> -> vector<512x32xf32>
    %cst_62 = arith.constant 0.000000e+00 : f32
    %31 = vector.broadcast %cst_62 : f32 to vector<512x32xf32>
    %32 = arith.maximumf %30, %31 : vector<512x32xf32>
    %33 = vector.extract_strided_slice %32 {offsets = [0, 0], sizes = [256, 32], strides = [1, 1]} : vector<512x32xf32> to vector<256x32xf32>
    %34 = tpu.transpose %33, [1, 0] : vector<256x32xf32> -> vector<32x256xf32>
    %c0_63 = arith.constant 0 : index
    %c0_64 = arith.constant 0 : index
    %c0_65 = arith.constant 0 : index
    %35 = vector.load %arg3[%c0_63, %c0_64, %c0_65] : memref<2x32x256xf32, #tpu.memory_space<vmem>>, vector<1x32x256xf32>
    %36 = vector.shape_cast %35 : vector<1x32x256xf32> to vector<32x256xf32>
    %37 = vector.shape_cast %34 : vector<32x256xf32> to vector<1x32x256xf32>
    tpu.vector_store %arg3[%c0_63, %c0_64, %c0_65], %37 {strides = array<i32>} : memref<2x32x256xf32, #tpu.memory_space<vmem>>, vector<1x32x256xf32>,
    %38 = vector.extract_strided_slice %32 {offsets = [256, 0], sizes = [256, 32], strides = [1, 1]} : vector<512x32xf32> to vector<256x32xf32>
    %39 = tpu.transpose %38, [1, 0] : vector<256x32xf32> -> vector<32x256xf32>
    %c1_66 = arith.constant 1 : index
    %c0_67 = arith.constant 0 : index
    %c0_68 = arith.constant 0 : index
    %40 = vector.load %arg3[%c1_66, %c0_67, %c0_68] : memref<2x32x256xf32, #tpu.memory_space<vmem>>, vector<1x32x256xf32>
    %41 = vector.shape_cast %40 : vector<1x32x256xf32> to vector<32x256xf32>
    %42 = vector.shape_cast %39 : vector<32x256xf32> to vector<1x32x256xf32>
    tpu.vector_store %arg3[%c1_66, %c0_67, %c0_68], %42 {strides = array<i32>} : memref<2x32x256xf32, #tpu.memory_space<vmem>>, vector<1x32x256xf32>,
    return
  }
  func.func @transform_0(%arg0: i32) -> (i32, i32, i32, i32) {
    %c0_i32 = arith.constant 0 : i32
    %c0_i32_0 = arith.constant 0 : i32
    %c0_i32_1 = arith.constant 0 : i32
    %c0_i32_2 = arith.constant 0 : i32
    return %arg0, %c0_i32, %c0_i32_0, %c0_i32_1 : i32, i32, i32, i32
  }
  func.func @transform_1(%arg0: i32) -> (i32, i32) {
    %c0_i32 = arith.constant 0 : i32
    %c0_i32_0 = arith.constant 0 : i32
    %c0_i32_1 = arith.constant 0 : i32
    return %c0_i32, %c0_i32_0 : i32, i32
  }
  func.func @transform_2(%arg0: i32) -> (i32, i32, i32) {
    %c0_i32 = arith.constant 0 : i32
    %c0_i32_0 = arith.constant 0 : i32
    %c0_i32_1 = arith.constant 0 : i32
    return %arg0, %c0_i32, %c0_i32_0 : i32, i32, i32
  }
}

</mosaic_0001>

<llo_original>
// kernel: tpu_custom_call.1
$region0: #{tpu_custom_call.1}
  #allocation0 [shape = 'u32[]', space=smem, size = 0x4, offset = 0x4, fixed_abs, tag = 'smem constant byte address 0x4 - core index']
  #allocation1 [shape = 'u32[144,128]{1,0:T(1,128)}', space=vmem, size = 0x12000, scoped, tag = 'internal scratch']
  #allocation2 [shape = 'bf16[2,18,18,16]{3,2,1,0:T(8,128)(2,1)}', space=vmem, size = 0x36000, scoped, tag = 'scratch operand']
  %s0 = inlined_call_operand.hbm [shape: bf16[4,16,16,16], index: 0, kind: input, shape index: {}]
  %s1 = inlined_call_operand.vmem [shape: bf16[144,32], index: 1, kind: input, shape index: {}]
  %s2 = inlined_call_operand.hbm [shape: f32[4,32,256], index: 2, kind: output, shape index: {}]
  %s3 = sld [smem:[#allocation0]]
  $region45: #{tpu_custom_call.1} parent=0
    _
  %s5 = ssub.s32 1, %s3
  %s6 = scalar_select 0, %s5, %s3
  $region1: #{tpu_custom_call.1} parent=0
    #allocation3 [shape = 'u8[262144]{0}', space=vmem, size = 0x40000, scoped, tag = 'input window, operand 0']
    #allocation4 [shape = 's32[2]{0}', space=sflag, size = 0x8, scoped, tag = 'scoped memory for tpu_custom_call.1']
    #allocation5 [shape = 's32[2]{0}', space=sflag, size = 0x8, scoped, tag = 'scoped memory for tpu_custom_call.1']
    #allocation6 [shape = 'u8[131072]{0}', space=vmem, size = 0x20000, scoped, tag = 'output window, operand 0']
    %7 = vsyncpa [#allocation4], 0
    %s8 = scalar_lea.sflag [#allocation4], 1
    %9 = vsyncpa %s8, 0
    %10 = vsyncpa [#allocation5], 0
    %s11 = scalar_lea.sflag [#allocation5], 1
    %12 = vsyncpa %s11, 0
    loop: start=0, step=1, limit=4
    $region2: #{tpu_custom_call.1} parent=1 // loop_pre_header
      _
    $region3: #{tpu_custom_call.1} parent=1 // loop_header
      %s14 = sphi 0, %s18
      %p15 = scmp.ge.s32.totalorder %s14, 4
      %s24 = sphi 0, %s26
      %s27 = sphi 0, %s24
      %s28 = sphi 0, %s27
      %s44 = sphi 0, %s28
      %s48 = sphi 0, %s48
      %s50 = sphi 0, %s48
      %s51 = sphi 0, %s50
      %s65 = sphi 0, %s51
      %s71 = sphi 0, %s73
      %s74 = sphi 0, %s71
      %s75 = sphi 0, %s74
      %s91 = sphi 0, %s75
    $region4: #{tpu_custom_call.1} parent=1 // loop_header_branch
      %17 = sbr.rel (%p15) target = $region8
    $region5: #{tpu_custom_call.1} parent=1 // loop_body
      %s19 = ssub.s32 %s14, 1
      %s20 = ssub.s32 %s14, 2
      %s21 = sadd.s32 %s14, 1
      %s22 = ssub.s32 %s14, %s21
      %p23 = scmp.eq.s32.totalorder %s22, 0
      %s25 = sadd.s32 %s24, 1
      %s26 = scalar_select %p23, %s24, %s25
      %p29 = pneg %p23
      %p30 = scmp.eq.s32.totalorder %s14, 1
      %p31 = por %p29, %p30
      %p32 = scmp.ne.s32.totalorder %s24, %s27
      %p33 = scmp.eq.s32.totalorder %s14, 0
      %p34 = por %p32, %p33
      %p35 = scmp.ne.s32.totalorder %s24, %s27
      %p36 = scmp.eq.s32.totalorder %s19, 1
      %p37 = por %p35, %p36
      %p38 = scmp.ne.s32.totalorder %s27, %s28
      %p39 = scmp.eq.s32.totalorder %s19, 0
      %p40 = por %p38, %p39
      %p41 = scmp.ne.s32.totalorder %s27, %s28
      %p42 = scmp.eq.s32.totalorder %s20, 1
      %p43 = por %p41, %p42
      %p45 = scmp.ne.s32.totalorder %s28, %s44
      %p46 = scmp.eq.s32.totalorder %s20, 0
      %p47 = por %p45, %p46
      %s49 = sadd.s32 %s48, 1
      %p52 = scmp.eq.s32.totalorder %s14, 1
      %p53 = scmp.ne.s32.totalorder %s48, %s50
      %p54 = scmp.eq.s32.totalorder %s14, 0
      %p55 = por %p53, %p54
      %p56 = scmp.ne.s32.totalorder %s48, %s50
      %p57 = scmp.eq.s32.totalorder %s19, 1
      %p58 = por %p56, %p57
      %p59 = scmp.ne.s32.totalorder %s50, %s51
      %p60 = scmp.eq.s32.totalorder %s19, 0
      %p61 = por %p59, %p60
      %p62 = scmp.ne.s32.totalorder %s50, %s51
      %p63 = scmp.eq.s32.totalorder %s20, 1
      %p64 = por %p62, %p63
      %p66 = scmp.ne.s32.totalorder %s51, %s65
      %p67 = scmp.eq.s32.totalorder %s20, 0
      %p68 = por %p66, %p67
      %s69 = ssub.s32 %s14, %s21
      %p70 = scmp.eq.s32.totalorder %s69, 0
      %s72 = sadd.s32 %s71, 1
      %s73 = scalar_select %p70, %s71, %s72
      %p76 = pneg %p70
      %p77 = scmp.eq.s32.totalorder %s14, 1
      %p78 = por %p76, %p77
      %p79 = scmp.ne.s32.totalorder %s71, %s74
      %p80 = scmp.eq.s32.totalorder %s14, 0
      %p81 = por %p79, %p80
      %p82 = scmp.ne.s32.totalorder %s71, %s74
      %p83 = scmp.eq.s32.totalorder %s19, 1
      %p84 = por %p82, %p83
      %p85 = scmp.ne.s32.totalorder %s74, %s75
      %p86 = scmp.eq.s32.totalorder %s19, 0
      %p87 = por %p85, %p86
      %p88 = scmp.ne.s32.totalorder %s74, %s75
      %p89 = scmp.eq.s32.totalorder %s20, 1
      %p90 = por %p88, %p89
      %p92 = scmp.ne.s32.totalorder %s75, %s91
      %p93 = scmp.eq.s32.totalorder %s20, 0
      %p94 = por %p92, %p93
      %p95 = scmp.le.s32.totalorder 1, %s14
      %p96 = scmp.lt.s32.totalorder %s14, 3
      %p97 = pnand %p95, %p96
      %p98 = pneg %p97
      // Predicated region
      $region9: #{tpu_custom_call.1} parent=5 // pred_check
        _
      $region10: #{tpu_custom_call.1} parent=5 // pred_check_branch
        %100 = sbr.rel (%p97) target = $region12
      $region11: #{tpu_custom_call.1} parent=5 // pred_region
        %s101 = ssub.s32 %s14, 1
        // Predicated region
        $region13: #{tpu_custom_call.1} parent=11 // pred_check
          %p102 = pneg %p61
        $region14: #{tpu_custom_call.1} parent=11 // pred_check_branch
          %104 = sbr.rel (%p102) target = $region16
        $region15: #{tpu_custom_call.1} parent=11 // pred_region
          _
        $region16: #{tpu_custom_call.1} parent=11 // pred_fallthru
          _
      $region12: #{tpu_custom_call.1} parent=5 // pred_fallthru
        _
      %p105 = scmp.lt.s32.totalorder %s14, 2
      // Predicated region
      $region17: #{tpu_custom_call.1} parent=5 // pred_check
        %p106 = pneg %p105
      $region18: #{tpu_custom_call.1} parent=5 // pred_check_branch
        %108 = sbr.rel (%p106) target = $region20
      $region19: #{tpu_custom_call.1} parent=5 // pred_region
        // Predicated region
        $region21: #{tpu_custom_call.1} parent=19 // pred_check
          %p109 = pneg %p34
        $region22: #{tpu_custom_call.1} parent=19 // pred_check_branch
          %111 = sbr.rel (%p109) target = $region24
        $region23: #{tpu_custom_call.1} parent=19 // pred_region
          %s112 = sand.u32 %s24, 1
          %s113 = scalar_lea.sflag [#allocation4], %s112
          %s114 = sand.u32 %s24, 1
          %s115 = smul.addr %s114, 256
          %s116 = scalar_lea.vmem [#allocation3], %s115
          %s117 = smul.u32 2, %s14
          %s119 = ssub.s32 4096, 4096
          %120 = vsyncadd %s113, %s119
          %s121 = smul.addr %s117, 32
          %s122 = smul.addr %s121, 64
          %s123 = scalar_lea.hbm %s0, %s122
          %s124 = sshll.u32 %s116, 4
          %s125 = int_to_ptr.vmem [resolvable:$true] %s124
          %130 = dma.hbm_to_vmem [thread:$0]  %s123, 4096, %s125, %s113, 64, 64, 4
        $region24: #{tpu_custom_call.1} parent=19 // pred_fallthru
          _
      $region20: #{tpu_custom_call.1} parent=5 // pred_fallthru
        _
      %p131 = scmp.le.s32.totalorder 1, %s14
      %p132 = scmp.lt.s32.totalorder %s14, 3
      %p133 = pnand %p131, %p132
      %p134 = pneg %p133
      // Predicated region
      $region25: #{tpu_custom_call.1} parent=5 // pred_check
        _
      $region26: #{tpu_custom_call.1} parent=5 // pred_check_branch
        %136 = sbr.rel (%p133) target = $region28
      $region27: #{tpu_custom_call.1} parent=5 // pred_region
        %s137 = ssub.s32 %s14, 1
        %s138 = sand.u32 %s27, 1
        %s139 = scalar_lea.sflag [#allocation4], %s138
        %s140 = sand.u32 %s27, 1
        %s141 = smul.addr %s140, 256
        %s142 = scalar_lea.vmem [#allocation3], %s141
        // Predicated region
        $region29: #{tpu_custom_call.1} parent=27 // pred_check
          %p143 = pneg %p40
        $region30: #{tpu_custom_call.1} parent=27 // pred_check_branch
          %145 = sbr.rel (%p143) target = $region32
        $region31: #{tpu_custom_call.1} parent=27 // pred_region
          %146 = dma.done %s139, 4096
        $region32: #{tpu_custom_call.1} parent=27 // pred_fallthru
          _
        %s147 = sand.u32 %s27, 1
        %s148 = scalar_lea.sflag [#allocation4], %s147
        %s149 = sand.u32 %s27, 1
        %s150 = smul.addr %s149, 256
        %s151 = scalar_lea.vmem [#allocation3], %s150
        %p152 = pneg %p40
        %p153 = pneg %p37
        %p154 = pneg %p61
        %p155 = pneg %p58
        %p156 = pneg %p87
        %p157 = pneg %p84
        %s158 = sand.u32 %s74, 1
        %s159 = scalar_lea.sflag [#allocation5], %s158
        %s160 = sand.u32 %s74, 1
        %s161 = smul.addr %s160, 128
        %s162 = scalar_lea.vmem [#allocation6], %s161
        %s163 = smul.u32 2, %s19
        %s164 = smul.u32 2, %s19
        %vm166 = vcmask 125952
        %167 = vst.msk [vmem:[#allocation2] sm:$0xf] %vm166, 0
        %168 = vst.msk [vmem:[#allocation2 + $0x4] sm:$0xf] %vm166, 0
        %vm169 = vcmask 122880
        %170 = vst.msk [vmem:[#allocation2 + $0x8] sm:$0x1] %vm169, 0
        %171 = vst.msk [vmem:[#allocation2 + $0xd8] sm:$0xf] %vm166, 0
        %172 = vst.msk [vmem:[#allocation2 + $0xdc] sm:$0xf] %vm166, 0
        %173 = vst.msk [vmem:[#allocation2 + $0xe0] sm:$0x1] %vm169, 0
        %s174 = scalar_lea.vmem [#allocation2], 204
        %175 = vst.msk [vmem:[%s174] sm:$0xf] %vm166, 0
        %176 = vst.msk [vmem:[%s174 + $0x4] sm:$0xf] %vm166, 0
        %177 = vst.msk [vmem:[%s174 + $0x8] sm:$0x1] %vm169, 0
        %178 = vst.msk [vmem:[%s174 + $0xd8] sm:$0xf] %vm166, 0
        %179 = vst.msk [vmem:[%s174 + $0xdc] sm:$0xf] %vm166, 0
        %180 = vst.msk [vmem:[%s174 + $0xe0] sm:$0x1] %vm169, 0
        %vm181 = vcmask 122880
        %vm182 = vsmask.f32 256
        %vm183 = vmand %vm181, %vm182
        %v184 = vld [vmem:[#allocation2] sm:$0x1]
        %v185 = vsel %vm183, 0, %v184
        %186 = vst [vmem:[#allocation2] sm:$0x1] %v185
        %v187 = vld [vmem:[#allocation2 + $0xc] sm:$0x1]
        %v188 = vsel %vm183, 0, %v187
        %189 = vst [vmem:[#allocation2 + $0xc] sm:$0x1] %v188
        %v190 = vld [vmem:[#allocation2 + $0x18] sm:$0x1]
        %v191 = vsel %vm183, 0, %v190
        %192 = vst [vmem:[#allocation2 + $0x18] sm:$0x1] %v191
        %v193 = vld [vmem:[#allocation2 + $0x24] sm:$0x1]
        %v194 = vsel %vm183, 0, %v193
        %195 = vst [vmem:[#allocation2 + $0x24] sm:$0x1] %v194
        %v196 = vld [vmem:[#allocation2 + $0x30] sm:$0x1]
        %v197 = vsel %vm183, 0, %v196
        %198 = vst [vmem:[#allocation2 + $0x30] sm:$0x1] %v197
        %v199 = vld [vmem:[#allocation2 + $0x3c] sm:$0x1]
        %v200 = vsel %vm183, 0, %v199
        %201 = vst [vmem:[#allocation2 + $0x3c] sm:$0x1] %v200
        %v202 = vld [vmem:[#allocation2 + $0x48] sm:$0x1]
        %v203 = vsel %vm183, 0, %v202
        %204 = vst [vmem:[#allocation2 + $0x48] sm:$0x1] %v203
        %v205 = vld [vmem:[#allocation2 + $0x54] sm:$0x1]
        %v206 = vsel %vm183, 0, %v205
        %207 = vst [vmem:[#allocation2 + $0x54] sm:$0x1] %v206
        %v208 = vld [vmem:[#allocation2 + $0x60] sm:$0x1]
        %v209 = vsel %vm183, 0, %v208
        %210 = vst [vmem:[#allocation2 + $0x60] sm:$0x1] %v209
        %v211 = vld [vmem:[#allocation2 + $0x6c] sm:$0x1]
        %v212 = vsel %vm183, 0, %v211
        %213 = vst [vmem:[#allocation2 + $0x6c] sm:$0x1] %v212
        %v214 = vld [vmem:[#allocation2 + $0x78] sm:$0x1]
        %v215 = vsel %vm183, 0, %v214
        %216 = vst [vmem:[#allocation2 + $0x78] sm:$0x1] %v215
        %v217 = vld [vmem:[#allocation2 + $0x84] sm:$0x1]
        %v218 = vsel %vm183, 0, %v217
        %219 = vst [vmem:[#allocation2 + $0x84] sm:$0x1] %v218
        %v220 = vld [vmem:[#allocation2 + $0x90] sm:$0x1]
        %v221 = vsel %vm183, 0, %v220
        %222 = vst [vmem:[#allocation2 + $0x90] sm:$0x1] %v221
        %v223 = vld [vmem:[#allocation2 + $0x9c] sm:$0x1]
        %v224 = vsel %vm183, 0, %v223
        %225 = vst [vmem:[#allocation2 + $0x9c] sm:$0x1] %v224
        %v226 = vld [vmem:[#allocation2 + $0xa8] sm:$0x1]
        %v227 = vsel %vm183, 0, %v226
        %228 = vst [vmem:[#allocation2 + $0xa8] sm:$0x1] %v227
        %v229 = vld [vmem:[#allocation2 + $0xb4] sm:$0x1]
        %v230 = vsel %vm183, 0, %v229
        %231 = vst [vmem:[#allocation2 + $0xb4] sm:$0x1] %v230
        %v232 = vld [vmem:[#allocation2 + $0xc0] sm:$0x1]
        %v233 = vsel %vm183, 0, %v232
        %234 = vst [vmem:[#allocation2 + $0xc0] sm:$0x1] %v233
        %v235 = vld [vmem:[#allocation2 + $0xcc] sm:$0x1]
        %v236 = vsel %vm183, 0, %v235
        %237 = vst [vmem:[#allocation2 + $0xcc] sm:$0x1] %v236
        %v238 = vld [vmem:[#allocation2 + $0xd8] sm:$0x1]
        %v239 = vsel %vm183, 0, %v238
        %240 = vst [vmem:[#allocation2 + $0xd8] sm:$0x1] %v239
        %v241 = vld [vmem:[#allocation2 + $0xe4] sm:$0x1]
        %v242 = vsel %vm183, 0, %v241
        %243 = vst [vmem:[#allocation2 + $0xe4] sm:$0x1] %v242
        %v244 = vld [vmem:[#allocation2 + $0xf0] sm:$0x1]
        %v245 = vsel %vm183, 0, %v244
        %246 = vst [vmem:[#allocation2 + $0xf0] sm:$0x1] %v245
        %v247 = vld [vmem:[#allocation2 + $0xfc] sm:$0x1]
        %v248 = vsel %vm183, 0, %v247
        %249 = vst [vmem:[#allocation2 + $0xfc] sm:$0x1] %v248
        %v250 = vld [vmem:[#allocation2 + $0x108] sm:$0x1]
        %v251 = vsel %vm183, 0, %v250
        %252 = vst [vmem:[#allocation2 + $0x108] sm:$0x1] %v251
        %v253 = vld [vmem:[#allocation2 + $0x114] sm:$0x1]
        %v254 = vsel %vm183, 0, %v253
        %255 = vst [vmem:[#allocation2 + $0x114] sm:$0x1] %v254
        %v256 = vld [vmem:[#allocation2 + $0x120] sm:$0x1]
        %v257 = vsel %vm183, 0, %v256
        %258 = vst [vmem:[#allocation2 + $0x120] sm:$0x1] %v257
        %v259 = vld [vmem:[#allocation2 + $0x12c] sm:$0x1]
        %v260 = vsel %vm183, 0, %v259
        %261 = vst [vmem:[#allocation2 + $0x12c] sm:$0x1] %v260
        %v262 = vld [vmem:[#allocation2 + $0x138] sm:$0x1]
        %v263 = vsel %vm183, 0, %v262
        %264 = vst [vmem:[#allocation2 + $0x138] sm:$0x1] %v263
        %v265 = vld [vmem:[#allocation2 + $0x144] sm:$0x1]
        %v266 = vsel %vm183, 0, %v265
        %267 = vst [vmem:[#allocation2 + $0x144] sm:$0x1] %v266
        %v268 = vld [vmem:[#allocation2 + $0x150] sm:$0x1]
        %v269 = vsel %vm183, 0, %v268
        %270 = vst [vmem:[#allocation2 + $0x150] sm:$0x1] %v269
        %v271 = vld [vmem:[#allocation2 + $0x15c] sm:$0x1]
        %v272 = vsel %vm183, 0, %v271
        %273 = vst [vmem:[#allocation2 + $0x15c] sm:$0x1] %v272
        %v274 = vld [vmem:[#allocation2 + $0x168] sm:$0x1]
        %v275 = vsel %vm183, 0, %v274
        %276 = vst [vmem:[#allocation2 + $0x168] sm:$0x1] %v275
        %v277 = vld [vmem:[#allocation2 + $0x174] sm:$0x1]
        %v278 = vsel %vm183, 0, %v277
        %279 = vst [vmem:[#allocation2 + $0x174] sm:$0x1] %v278
        %v280 = vld [vmem:[#allocation2 + $0x180] sm:$0x1]
        %v281 = vsel %vm183, 0, %v280
        %282 = vst [vmem:[#allocation2 + $0x180] sm:$0x1] %v281
        %v283 = vld [vmem:[#allocation2 + $0x18c] sm:$0x1]
        %v284 = vsel %vm183, 0, %v283
        %285 = vst [vmem:[#allocation2 + $0x18c] sm:$0x1] %v284
        %v286 = vld [vmem:[#allocation2 + $0x198] sm:$0x1]
        %v287 = vsel %vm183, 0, %v286
        %288 = vst [vmem:[#allocation2 + $0x198] sm:$0x1] %v287
        %v289 = vld [vmem:[#allocation2 + $0x1a4] sm:$0x1]
        %v290 = vsel %vm183, 0, %v289
        %291 = vst [vmem:[#allocation2 + $0x1a4] sm:$0x1] %v290
        %vm292 = vsmask.f32 7938
        %vm293 = vmand %vm181, %vm292
        %v294 = vld [vmem:[#allocation2 + $0x8] sm:$0x1]
        %v295 = vsel %vm293, 0, %v294
        %296 = vst [vmem:[#allocation2 + $0x8] sm:$0x1] %v295
        %v297 = vld [vmem:[#allocation2 + $0x14] sm:$0x1]
        %v298 = vsel %vm293, 0, %v297
        %299 = vst [vmem:[#allocation2 + $0x14] sm:$0x1] %v298
        %v300 = vld [vmem:[#allocation2 + $0x20] sm:$0x1]
        %v301 = vsel %vm293, 0, %v300
        %302 = vst [vmem:[#allocation2 + $0x20] sm:$0x1] %v301
        %v303 = vld [vmem:[#allocation2 + $0x2c] sm:$0x1]
        %v304 = vsel %vm293, 0, %v303
        %305 = vst [vmem:[#allocation2 + $0x2c] sm:$0x1] %v304
        %v306 = vld [vmem:[#allocation2 + $0x38] sm:$0x1]
        %v307 = vsel %vm293, 0, %v306
        %308 = vst [vmem:[#allocation2 + $0x38] sm:$0x1] %v307
        %v309 = vld [vmem:[#allocation2 + $0x44] sm:$0x1]
        %v310 = vsel %vm293, 0, %v309
        %311 = vst [vmem:[#allocation2 + $0x44] sm:$0x1] %v310
        %v312 = vld [vmem:[#allocation2 + $0x50] sm:$0x1]
        %v313 = vsel %vm293, 0, %v312
        %314 = vst [vmem:[#allocation2 + $0x50] sm:$0x1] %v313
        %v315 = vld [vmem:[#allocation2 + $0x5c] sm:$0x1]
        %v316 = vsel %vm293, 0, %v315
        %317 = vst [vmem:[#allocation2 + $0x5c] sm:$0x1] %v316
        %v318 = vld [vmem:[#allocation2 + $0x68] sm:$0x1]
        %v319 = vsel %vm293, 0, %v318
        %320 = vst [vmem:[#allocation2 + $0x68] sm:$0x1] %v319
        %v321 = vld [vmem:[#allocation2 + $0x74] sm:$0x1]
        %v322 = vsel %vm293, 0, %v321
        %323 = vst [vmem:[#allocation2 + $0x74] sm:$0x1] %v322
        %v324 = vld [vmem:[#allocation2 + $0x80] sm:$0x1]
        %v325 = vsel %vm293, 0, %v324
        %326 = vst [vmem:[#allocation2 + $0x80] sm:$0x1] %v325
        %v327 = vld [vmem:[#allocation2 + $0x8c] sm:$0x1]
        %v328 = vsel %vm293, 0, %v327
        %329 = vst [vmem:[#allocation2 + $0x8c] sm:$0x1] %v328
        %v330 = vld [vmem:[#allocation2 + $0x98] sm:$0x1]
        %v331 = vsel %vm293, 0, %v330
        %332 = vst [vmem:[#allocation2 + $0x98] sm:$0x1] %v331
        %v333 = vld [vmem:[#allocation2 + $0xa4] sm:$0x1]
        %v334 = vsel %vm293, 0, %v333
        %335 = vst [vmem:[#allocation2 + $0xa4] sm:$0x1] %v334
        %v336 = vld [vmem:[#allocation2 + $0xb0] sm:$0x1]
        %v337 = vsel %vm293, 0, %v336
        %338 = vst [vmem:[#allocation2 + $0xb0] sm:$0x1] %v337
        %v339 = vld [vmem:[#allocation2 + $0xbc] sm:$0x1]
        %v340 = vsel %vm293, 0, %v339
        %341 = vst [vmem:[#allocation2 + $0xbc] sm:$0x1] %v340
        %v342 = vld [vmem:[#allocation2 + $0xc8] sm:$0x1]
        %v343 = vsel %vm293, 0, %v342
        %344 = vst [vmem:[#allocation2 + $0xc8] sm:$0x1] %v343
        %v345 = vld [vmem:[#allocation2 + $0xd4] sm:$0x1]
        %v346 = vsel %vm293, 0, %v345
        %347 = vst [vmem:[#allocation2 + $0xd4] sm:$0x1] %v346
        %v348 = vld [vmem:[#allocation2 + $0xe0] sm:$0x1]
        %v349 = vsel %vm293, 0, %v348
        %350 = vst [vmem:[#allocation2 + $0xe0] sm:$0x1] %v349
        %v351 = vld [vmem:[#allocation2 + $0xec] sm:$0x1]
        %v352 = vsel %vm293, 0, %v351
        %353 = vst [vmem:[#allocation2 + $0xec] sm:$0x1] %v352
        %v354 = vld [vmem:[#allocation2 + $0xf8] sm:$0x1]
        %v355 = vsel %vm293, 0, %v354
        %356 = vst [vmem:[#allocation2 + $0xf8] sm:$0x1] %v355
        %v357 = vld [vmem:[#allocation2 + $0x104] sm:$0x1]
        %v358 = vsel %vm293, 0, %v357
        %359 = vst [vmem:[#allocation2 + $0x104] sm:$0x1] %v358
        %v360 = vld [vmem:[#allocation2 + $0x110] sm:$0x1]
        %v361 = vsel %vm293, 0, %v360
        %362 = vst [vmem:[#allocation2 + $0x110] sm:$0x1] %v361
        %v363 = vld [vmem:[#allocation2 + $0x11c] sm:$0x1]
        %v364 = vsel %vm293, 0, %v363
        %365 = vst [vmem:[#allocation2 + $0x11c] sm:$0x1] %v364
        %v366 = vld [vmem:[#allocation2 + $0x128] sm:$0x1]
        %v367 = vsel %vm293, 0, %v366
        %368 = vst [vmem:[#allocation2 + $0x128] sm:$0x1] %v367
        %v369 = vld [vmem:[#allocation2 + $0x134] sm:$0x1]
        %v370 = vsel %vm293, 0, %v369
        %371 = vst [vmem:[#allocation2 + $0x134] sm:$0x1] %v370
        %v372 = vld [vmem:[#allocation2 + $0x140] sm:$0x1]
        %v373 = vsel %vm293, 0, %v372
        %374 = vst [vmem:[#allocation2 + $0x140] sm:$0x1] %v373
        %v375 = vld [vmem:[#allocation2 + $0x14c] sm:$0x1]
        %v376 = vsel %vm293, 0, %v375
        %377 = vst [vmem:[#allocation2 + $0x14c] sm:$0x1] %v376
        %v378 = vld [vmem:[#allocation2 + $0x158] sm:$0x1]
        %v379 = vsel %vm293, 0, %v378
        %380 = vst [vmem:[#allocation2 + $0x158] sm:$0x1] %v379
        %v381 = vld [vmem:[#allocation2 + $0x164] sm:$0x1]
        %v382 = vsel %vm293, 0, %v381
        %383 = vst [vmem:[#allocation2 + $0x164] sm:$0x1] %v382
        %v384 = vld [vmem:[#allocation2 + $0x170] sm:$0x1]
        %v385 = vsel %vm293, 0, %v384
        %386 = vst [vmem:[#allocation2 + $0x170] sm:$0x1] %v385
        %v387 = vld [vmem:[#allocation2 + $0x17c] sm:$0x1]
        %v388 = vsel %vm293, 0, %v387
        %389 = vst [vmem:[#allocation2 + $0x17c] sm:$0x1] %v388
        %v390 = vld [vmem:[#allocation2 + $0x188] sm:$0x1]
        %v391 = vsel %vm293, 0, %v390
        %392 = vst [vmem:[#allocation2 + $0x188] sm:$0x1] %v391
        %v393 = vld [vmem:[#allocation2 + $0x194] sm:$0x1]
        %v394 = vsel %vm293, 0, %v393
        %395 = vst [vmem:[#allocation2 + $0x194] sm:$0x1] %v394
        %v396 = vld [vmem:[#allocation2 + $0x1a0] sm:$0x1]
        %v397 = vsel %vm293, 0, %v396
        %398 = vst [vmem:[#allocation2 + $0x1a0] sm:$0x1] %v397
        %v399 = vld [vmem:[#allocation2 + $0x1ac] sm:$0x1]
        %v400 = vsel %vm293, 0, %v399
        %401 = vst [vmem:[#allocation2 + $0x1ac] sm:$0x1] %v400
        %v402 = vld [vmem:[%s142] sm:$0xf]
        %v403 = vld [vmem:[%s142 + $0x4] sm:$0xf]
        %v404 = vld [vmem:[%s142 + $0x8] sm:$0xf]
        %v405 = vld [vmem:[%s142 + $0xc] sm:$0xf]
        %v406 = vld [vmem:[%s142 + $0x10] sm:$0xf]
        %v407 = vld [vmem:[%s142 + $0x14] sm:$0xf]
        %v408 = vld [vmem:[%s142 + $0x18] sm:$0xf]
        %v409 = vld [vmem:[%s142 + $0x1c] sm:$0xf]
        %v410 = vld [vmem:[%s142 + $0x20] sm:$0xf]
        %v411 = vld [vmem:[%s142 + $0x24] sm:$0xf]
        %v412 = vld [vmem:[%s142 + $0x28] sm:$0xf]
        %v413 = vld [vmem:[%s142 + $0x2c] sm:$0xf]
        %v414 = vld [vmem:[%s142 + $0x30] sm:$0xf]
        %v415 = vld [vmem:[%s142 + $0x34] sm:$0xf]
        %v416 = vld [vmem:[%s142 + $0x38] sm:$0xf]
        %v417 = vld [vmem:[%s142 + $0x3c] sm:$0xf]
        %v418 = vld [vmem:[%s142 + $0x40] sm:$0xf]
        %v419 = vld [vmem:[%s142 + $0x44] sm:$0xf]
        %v420 = vld [vmem:[%s142 + $0x48] sm:$0xf]
        %v421 = vld [vmem:[%s142 + $0x4c] sm:$0xf]
        %v422 = vld [vmem:[%s142 + $0x50] sm:$0xf]
        %v423 = vld [vmem:[%s142 + $0x54] sm:$0xf]
        %v424 = vld [vmem:[%s142 + $0x58] sm:$0xf]
        %v425 = vld [vmem:[%s142 + $0x5c] sm:$0xf]
        %v426 = vld [vmem:[%s142 + $0x60] sm:$0xf]
        %v427 = vld [vmem:[%s142 + $0x64] sm:$0xf]
        %v428 = vld [vmem:[%s142 + $0x68] sm:$0xf]
        %v429 = vld [vmem:[%s142 + $0x6c] sm:$0xf]
        %v430 = vld [vmem:[%s142 + $0x70] sm:$0xf]
        %v431 = vld [vmem:[%s142 + $0x74] sm:$0xf]
        %v432 = vld [vmem:[%s142 + $0x78] sm:$0xf]
        %v433 = vld [vmem:[%s142 + $0x7c] sm:$0xf]
        %v434 = vld [vmem:[%s142 + $0x80] sm:$0xf]
        %v435 = vld [vmem:[%s142 + $0x84] sm:$0xf]
        %v436 = vld [vmem:[%s142 + $0x88] sm:$0xf]
        %v437 = vld [vmem:[%s142 + $0x8c] sm:$0xf]
        %v438 = vld [vmem:[%s142 + $0x90] sm:$0xf]
        %v439 = vld [vmem:[%s142 + $0x94] sm:$0xf]
        %v440 = vld [vmem:[%s142 + $0x98] sm:$0xf]
        %v441 = vld [vmem:[%s142 + $0x9c] sm:$0xf]
        %v442 = vld [vmem:[%s142 + $0xa0] sm:$0xf]
        %v443 = vld [vmem:[%s142 + $0xa4] sm:$0xf]
        %v444 = vld [vmem:[%s142 + $0xa8] sm:$0xf]
        %v445 = vld [vmem:[%s142 + $0xac] sm:$0xf]
        %v446 = vld [vmem:[%s142 + $0xb0] sm:$0xf]
        %v447 = vld [vmem:[%s142 + $0xb4] sm:$0xf]
        %v448 = vld [vmem:[%s142 + $0xb8] sm:$0xf]
        %v449 = vld [vmem:[%s142 + $0xbc] sm:$0xf]
        %v450 = vld [vmem:[%s142 + $0xc0] sm:$0xf]
        %v451 = vld [vmem:[%s142 + $0xc4] sm:$0xf]
        %v452 = vld [vmem:[%s142 + $0xc8] sm:$0xf]
        %v453 = vld [vmem:[%s142 + $0xcc] sm:$0xf]
        %v454 = vld [vmem:[%s142 + $0xd0] sm:$0xf]
        %v455 = vld [vmem:[%s142 + $0xd4] sm:$0xf]
        %v456 = vld [vmem:[%s142 + $0xd8] sm:$0xf]
        %v457 = vld [vmem:[%s142 + $0xdc] sm:$0xf]
        %v458 = vld [vmem:[%s142 + $0xe0] sm:$0xf]
        %v459 = vld [vmem:[%s142 + $0xe4] sm:$0xf]
        %v460 = vld [vmem:[%s142 + $0xe8] sm:$0xf]
        %v461 = vld [vmem:[%s142 + $0xec] sm:$0xf]
        %v462 = vld [vmem:[%s142 + $0xf0] sm:$0xf]
        %v463 = vld [vmem:[%s142 + $0xf4] sm:$0xf]
        %v464 = vld [vmem:[%s142 + $0xf8] sm:$0xf]
        %v465 = vld [vmem:[%s142 + $0xfc] sm:$0xf]
        %vm466 = vsmask.f32 4368
        %vm467 = vmor %vm182, %vm466
        %v469 = vshrl.u32 %v402, 16
        %v471 = vrot.slane %v469, 7
        %v472 = vshll.u32 %v402, 16
        %v474 = vor.u32 %v471, %v472
        %v475 = vrot.slane %v471, 4
        %v477 = vshrl.u32 %v403, 16
        %v479 = vrot.slane %v477, 7
        %v480 = vshll.u32 %v403, 16
        %v482 = vor.u32 %v479, %v480
        %v483 = vsel %vm467, %v475, %v482
        %v484 = vrot.slane %v479, 4
        %v486 = vshrl.u32 %v404, 16
        %v488 = vrot.slane %v486, 7
        %v489 = vshll.u32 %v404, 16
        %v491 = vor.u32 %v488, %v489
        %v492 = vrot.slane %v488, 4
        %v494 = vshrl.u32 %v405, 16
        %v496 = vrot.slane %v494, 7
        %v497 = vshll.u32 %v405, 16
        %v499 = vor.u32 %v496, %v497
        %v500 = vsel %vm467, %v492, %v499
        %v501 = vrot.slane %v496, 4
        %v503 = vshrl.u32 %v406, 16
        %v505 = vrot.slane %v503, 7
        %v506 = vshll.u32 %v406, 16
        %v508 = vor.u32 %v505, %v506
        %v509 = vrot.slane %v505, 4
        %v511 = vshrl.u32 %v407, 16
        %v513 = vrot.slane %v511, 7
        %v514 = vshll.u32 %v407, 16
        %v516 = vor.u32 %v513, %v514
        %v517 = vsel %vm467, %v509, %v516
        %v518 = vrot.slane %v513, 4
        %v520 = vshrl.u32 %v408, 16
        %v522 = vrot.slane %v520, 7
        %v523 = vshll.u32 %v408, 16
        %v525 = vor.u32 %v522, %v523
        %v526 = vrot.slane %v522, 4
        %v528 = vshrl.u32 %v409, 16
        %v530 = vrot.slane %v528, 7
        %v531 = vshll.u32 %v409, 16
        %v533 = vor.u32 %v530, %v531
        %v534 = vsel %vm467, %v526, %v533
        %v535 = vrot.slane %v530, 4
        %v537 = vshrl.u32 %v410, 16
        %v539 = vrot.slane %v537, 7
        %v540 = vshll.u32 %v410, 16
        %v542 = vor.u32 %v539, %v540
        %v543 = vrot.slane %v539, 4
        %v545 = vshrl.u32 %v411, 16
        %v547 = vrot.slane %v545, 7
        %v548 = vshll.u32 %v411, 16
        %v550 = vor.u32 %v547, %v548
        %v551 = vsel %vm467, %v543, %v550
        %v552 = vrot.slane %v547, 4
        %v554 = vshrl.u32 %v412, 16
        %v556 = vrot.slane %v554, 7
        %v557 = vshll.u32 %v412, 16
        %v559 = vor.u32 %v556, %v557
        %v560 = vrot.slane %v556, 4
        %v562 = vshrl.u32 %v413, 16
        %v564 = vrot.slane %v562, 7
        %v565 = vshll.u32 %v413, 16
        %v567 = vor.u32 %v564, %v565
        %v568 = vsel %vm467, %v560, %v567
        %v569 = vrot.slane %v564, 4
        %v571 = vshrl.u32 %v414, 16
        %v573 = vrot.slane %v571, 7
        %v574 = vshll.u32 %v414, 16
        %v576 = vor.u32 %v573, %v574
        %v577 = vrot.slane %v573, 4
        %v579 = vshrl.u32 %v415, 16
        %v581 = vrot.slane %v579, 7
        %v582 = vshll.u32 %v415, 16
        %v584 = vor.u32 %v581, %v582
        %v585 = vsel %vm467, %v577, %v584
        %v586 = vrot.slane %v581, 4
        %v588 = vshrl.u32 %v416, 16
        %v590 = vrot.slane %v588, 7
        %v591 = vshll.u32 %v416, 16
        %v593 = vor.u32 %v590, %v591
        %v594 = vrot.slane %v590, 4
        %v596 = vshrl.u32 %v417, 16
        %v598 = vrot.slane %v596, 7
        %v599 = vshll.u32 %v417, 16
        %v601 = vor.u32 %v598, %v599
        %v602 = vsel %vm467, %v594, %v601
        %v603 = vrot.slane %v598, 4
        %v605 = vshrl.u32 %v418, 16
        %v607 = vrot.slane %v605, 7
        %v608 = vshll.u32 %v418, 16
        %v610 = vor.u32 %v607, %v608
        %v611 = vrot.slane %v607, 4
        %v613 = vshrl.u32 %v419, 16
        %v615 = vrot.slane %v613, 7
        %v616 = vshll.u32 %v419, 16
        %v618 = vor.u32 %v615, %v616
        %v619 = vsel %vm467, %v611, %v618
        %v620 = vrot.slane %v615, 4
        %v622 = vshrl.u32 %v420, 16
        %v624 = vrot.slane %v622, 7
        %v625 = vshll.u32 %v420, 16
        %v627 = vor.u32 %v624, %v625
        %v628 = vrot.slane %v624, 4
        %v630 = vshrl.u32 %v421, 16
        %v632 = vrot.slane %v630, 7
        %v633 = vshll.u32 %v421, 16
        %v635 = vor.u32 %v632, %v633
        %v636 = vsel %vm467, %v628, %v635
        %v637 = vrot.slane %v632, 4
        %v639 = vshrl.u32 %v422, 16
        %v641 = vrot.slane %v639, 7
        %v642 = vshll.u32 %v422, 16
        %v644 = vor.u32 %v641, %v642
        %v645 = vrot.slane %v641, 4
        %v647 = vshrl.u32 %v423, 16
        %v649 = vrot.slane %v647, 7
        %v650 = vshll.u32 %v423, 16
        %v652 = vor.u32 %v649, %v650
        %v653 = vsel %vm467, %v645, %v652
        %v654 = vrot.slane %v649, 4
        %v656 = vshrl.u32 %v424, 16
        %v658 = vrot.slane %v656, 7
        %v659 = vshll.u32 %v424, 16
        %v661 = vor.u32 %v658, %v659
        %v662 = vrot.slane %v658, 4
        %v664 = vshrl.u32 %v425, 16
        %v666 = vrot.slane %v664, 7
        %v667 = vshll.u32 %v425, 16
        %v669 = vor.u32 %v666, %v667
        %v670 = vsel %vm467, %v662, %v669
        %v671 = vrot.slane %v666, 4
        %v673 = vshrl.u32 %v426, 16
        %v675 = vrot.slane %v673, 7
        %v676 = vshll.u32 %v426, 16
        %v678 = vor.u32 %v675, %v676
        %v679 = vrot.slane %v675, 4
        %v681 = vshrl.u32 %v427, 16
        %v683 = vrot.slane %v681, 7
        %v684 = vshll.u32 %v427, 16
        %v686 = vor.u32 %v683, %v684
        %v687 = vsel %vm467, %v679, %v686
        %v688 = vrot.slane %v683, 4
        %v690 = vshrl.u32 %v428, 16
        %v692 = vrot.slane %v690, 7
        %v693 = vshll.u32 %v428, 16
        %v695 = vor.u32 %v692, %v693
        %v696 = vrot.slane %v692, 4
        %v698 = vshrl.u32 %v429, 16
        %v700 = vrot.slane %v698, 7
        %v701 = vshll.u32 %v429, 16
        %v703 = vor.u32 %v700, %v701
        %v704 = vsel %vm467, %v696, %v703
        %v705 = vrot.slane %v700, 4
        %v707 = vshrl.u32 %v430, 16
        %v709 = vrot.slane %v707, 7
        %v710 = vshll.u32 %v430, 16
        %v712 = vor.u32 %v709, %v710
        %v713 = vrot.slane %v709, 4
        %v715 = vshrl.u32 %v431, 16
        %v717 = vrot.slane %v715, 7
        %v718 = vshll.u32 %v431, 16
        %v720 = vor.u32 %v717, %v718
        %v721 = vsel %vm467, %v713, %v720
        %v722 = vrot.slane %v717, 4
        %v724 = vshrl.u32 %v432, 16
        %v726 = vrot.slane %v724, 7
        %v727 = vshll.u32 %v432, 16
        %v729 = vor.u32 %v726, %v727
        %v730 = vrot.slane %v726, 4
        %v732 = vshrl.u32 %v433, 16
        %v734 = vrot.slane %v732, 7
        %v735 = vshll.u32 %v433, 16
        %v737 = vor.u32 %v734, %v735
        %v738 = vsel %vm467, %v730, %v737
        %v739 = vrot.slane %v734, 4
        %v741 = vshrl.u32 %v434, 16
        %v743 = vrot.slane %v741, 7
        %v744 = vshll.u32 %v434, 16
        %v746 = vor.u32 %v743, %v744
        %v747 = vrot.slane %v743, 4
        %v749 = vshrl.u32 %v435, 16
        %v751 = vrot.slane %v749, 7
        %v752 = vshll.u32 %v435, 16
        %v754 = vor.u32 %v751, %v752
        %v755 = vsel %vm467, %v747, %v754
        %v756 = vrot.slane %v751, 4
        %v758 = vshrl.u32 %v436, 16
        %v760 = vrot.slane %v758, 7
        %v761 = vshll.u32 %v436, 16
        %v763 = vor.u32 %v760, %v761
        %v764 = vrot.slane %v760, 4
        %v766 = vshrl.u32 %v437, 16
        %v768 = vrot.slane %v766, 7
        %v769 = vshll.u32 %v437, 16
        %v771 = vor.u32 %v768, %v769
        %v772 = vsel %vm467, %v764, %v771
        %v773 = vrot.slane %v768, 4
        %v775 = vshrl.u32 %v438, 16
        %v777 = vrot.slane %v775, 7
        %v778 = vshll.u32 %v438, 16
        %v780 = vor.u32 %v777, %v778
        %v781 = vrot.slane %v777, 4
        %v783 = vshrl.u32 %v439, 16
        %v785 = vrot.slane %v783, 7
        %v786 = vshll.u32 %v439, 16
        %v788 = vor.u32 %v785, %v786
        %v789 = vsel %vm467, %v781, %v788
        %v790 = vrot.slane %v785, 4
        %v792 = vshrl.u32 %v440, 16
        %v794 = vrot.slane %v792, 7
        %v795 = vshll.u32 %v440, 16
        %v797 = vor.u32 %v794, %v795
        %v798 = vrot.slane %v794, 4
        %v800 = vshrl.u32 %v441, 16
        %v802 = vrot.slane %v800, 7
        %v803 = vshll.u32 %v441, 16
        %v805 = vor.u32 %v802, %v803
        %v806 = vsel %vm467, %v798, %v805
        %v807 = vrot.slane %v802, 4
        %v809 = vshrl.u32 %v442, 16
        %v811 = vrot.slane %v809, 7
        %v812 = vshll.u32 %v442, 16
        %v814 = vor.u32 %v811, %v812
        %v815 = vrot.slane %v811, 4
        %v817 = vshrl.u32 %v443, 16
        %v819 = vrot.slane %v817, 7
        %v820 = vshll.u32 %v443, 16
        %v822 = vor.u32 %v819, %v820
        %v823 = vsel %vm467, %v815, %v822
        %v824 = vrot.slane %v819, 4
        %v826 = vshrl.u32 %v444, 16
        %v828 = vrot.slane %v826, 7
        %v829 = vshll.u32 %v444, 16
        %v831 = vor.u32 %v828, %v829
        %v832 = vrot.slane %v828, 4
        %v834 = vshrl.u32 %v445, 16
        %v836 = vrot.slane %v834, 7
        %v837 = vshll.u32 %v445, 16
        %v839 = vor.u32 %v836, %v837
        %v840 = vsel %vm467, %v832, %v839
        %v841 = vrot.slane %v836, 4
        %v843 = vshrl.u32 %v446, 16
        %v845 = vrot.slane %v843, 7
        %v846 = vshll.u32 %v446, 16
        %v848 = vor.u32 %v845, %v846
        %v849 = vrot.slane %v845, 4
        %v851 = vshrl.u32 %v447, 16
        %v853 = vrot.slane %v851, 7
        %v854 = vshll.u32 %v447, 16
        %v856 = vor.u32 %v853, %v854
        %v857 = vsel %vm467, %v849, %v856
        %v858 = vrot.slane %v853, 4
        %v860 = vshrl.u32 %v448, 16
        %v862 = vrot.slane %v860, 7
        %v863 = vshll.u32 %v448, 16
        %v865 = vor.u32 %v862, %v863
        %v866 = vrot.slane %v862, 4
        %v868 = vshrl.u32 %v449, 16
        %v870 = vrot.slane %v868, 7
        %v871 = vshll.u32 %v449, 16
        %v873 = vor.u32 %v870, %v871
        %v874 = vsel %vm467, %v866, %v873
        %v875 = vrot.slane %v870, 4
        %v877 = vshrl.u32 %v450, 16
        %v879 = vrot.slane %v877, 7
        %v880 = vshll.u32 %v450, 16
        %v882 = vor.u32 %v879, %v880
        %v883 = vrot.slane %v879, 4
        %v885 = vshrl.u32 %v451, 16
        %v887 = vrot.slane %v885, 7
        %v888 = vshll.u32 %v451, 16
        %v890 = vor.u32 %v887, %v888
        %v891 = vsel %vm467, %v883, %v890
        %v892 = vrot.slane %v887, 4
        %v894 = vshrl.u32 %v452, 16
        %v896 = vrot.slane %v894, 7
        %v897 = vshll.u32 %v452, 16
        %v899 = vor.u32 %v896, %v897
        %v900 = vrot.slane %v896, 4
        %v902 = vshrl.u32 %v453, 16
        %v904 = vrot.slane %v902, 7
        %v905 = vshll.u32 %v453, 16
        %v907 = vor.u32 %v904, %v905
        %v908 = vsel %vm467, %v900, %v907
        %v909 = vrot.slane %v904, 4
        %v911 = vshrl.u32 %v454, 16
        %v913 = vrot.slane %v911, 7
        %v914 = vshll.u32 %v454, 16
        %v916 = vor.u32 %v913, %v914
        %v917 = vrot.slane %v913, 4
        %v919 = vshrl.u32 %v455, 16
        %v921 = vrot.slane %v919, 7
        %v922 = vshll.u32 %v455, 16
        %v924 = vor.u32 %v921, %v922
        %v925 = vsel %vm467, %v917, %v924
        %v926 = vrot.slane %v921, 4
        %v928 = vshrl.u32 %v456, 16
        %v930 = vrot.slane %v928, 7
        %v931 = vshll.u32 %v456, 16
        %v933 = vor.u32 %v930, %v931
        %v934 = vrot.slane %v930, 4
        %v936 = vshrl.u32 %v457, 16
        %v938 = vrot.slane %v936, 7
        %v939 = vshll.u32 %v457, 16
        %v941 = vor.u32 %v938, %v939
        %v942 = vsel %vm467, %v934, %v941
        %v943 = vrot.slane %v938, 4
        %v945 = vshrl.u32 %v458, 16
        %v947 = vrot.slane %v945, 7
        %v948 = vshll.u32 %v458, 16
        %v950 = vor.u32 %v947, %v948
        %v951 = vrot.slane %v947, 4
        %v953 = vshrl.u32 %v459, 16
        %v955 = vrot.slane %v953, 7
        %v956 = vshll.u32 %v459, 16
        %v958 = vor.u32 %v955, %v956
        %v959 = vsel %vm467, %v951, %v958
        %v960 = vrot.slane %v955, 4
        %v962 = vshrl.u32 %v460, 16
        %v964 = vrot.slane %v962, 7
        %v965 = vshll.u32 %v460, 16
        %v967 = vor.u32 %v964, %v965
        %v968 = vrot.slane %v964, 4
        %v970 = vshrl.u32 %v461, 16
        %v972 = vrot.slane %v970, 7
        %v973 = vshll.u32 %v461, 16
        %v975 = vor.u32 %v972, %v973
        %v976 = vsel %vm467, %v968, %v975
        %v977 = vrot.slane %v972, 4
        %v979 = vshrl.u32 %v462, 16
        %v981 = vrot.slane %v979, 7
        %v982 = vshll.u32 %v462, 16
        %v984 = vor.u32 %v981, %v982
        %v985 = vrot.slane %v981, 4
        %v987 = vshrl.u32 %v463, 16
        %v989 = vrot.slane %v987, 7
        %v990 = vshll.u32 %v463, 16
        %v992 = vor.u32 %v989, %v990
        %v993 = vsel %vm467, %v985, %v992
        %v994 = vrot.slane %v989, 4
        %v996 = vshrl.u32 %v464, 16
        %v998 = vrot.slane %v996, 7
        %v999 = vshll.u32 %v464, 16
        %v1001 = vor.u32 %v998, %v999
        %v1002 = vrot.slane %v998, 4
        %v1004 = vshrl.u32 %v465, 16
        %v1006 = vrot.slane %v1004, 7
        %v1007 = vshll.u32 %v465, 16
        %v1009 = vor.u32 %v1006, %v1007
        %v1010 = vsel %vm467, %v1002, %v1009
        %v1011 = vrot.slane %v1006, 4
        %s1108 = scalar_lea.vmem [#allocation2], 12
        %vm1109 = vcmask 125952
        %vm1110 = vmand %vm1109, %vm292
        %v1111 = vld [vmem:[%s1108] sm:$0xf]
        %v1112 = vsel %vm1110, %v474, %v1111
        %1113 = vst [vmem:[%s1108] sm:$0xf] %v1112
        %1114 = vst.msk [vmem:[%s1108 + $0x4] sm:$0xf] %vm166, %v483
        %v1115 = vld [vmem:[%s1108 + $0x8] sm:$0x1]
        %v1116 = vsel %vm183, %v484, %v1115
        %1117 = vst [vmem:[%s1108 + $0x8] sm:$0x1] %v1116
        %v1118 = vld [vmem:[%s1108 + $0xc] sm:$0xf]
        %v1119 = vsel %vm1110, %v491, %v1118
        %1120 = vst [vmem:[%s1108 + $0xc] sm:$0xf] %v1119
        %1121 = vst.msk [vmem:[%s1108 + $0x10] sm:$0xf] %vm166, %v500
        %v1122 = vld [vmem:[%s1108 + $0x14] sm:$0x1]
        %v1123 = vsel %vm183, %v501, %v1122
        %1124 = vst [vmem:[%s1108 + $0x14] sm:$0x1] %v1123
        %v1125 = vld [vmem:[%s1108 + $0x18] sm:$0xf]
        %v1126 = vsel %vm1110, %v508, %v1125
        %1127 = vst [vmem:[%s1108 + $0x18] sm:$0xf] %v1126
        %1128 = vst.msk [vmem:[%s1108 + $0x1c] sm:$0xf] %vm166, %v517
        %v1129 = vld [vmem:[%s1108 + $0x20] sm:$0x1]
        %v1130 = vsel %vm183, %v518, %v1129
        %1131 = vst [vmem:[%s1108 + $0x20] sm:$0x1] %v1130
        %v1132 = vld [vmem:[%s1108 + $0x24] sm:$0xf]
        %v1133 = vsel %vm1110, %v525, %v1132
        %1134 = vst [vmem:[%s1108 + $0x24] sm:$0xf] %v1133
        %1135 = vst.msk [vmem:[%s1108 + $0x28] sm:$0xf] %vm166, %v534
        %v1136 = vld [vmem:[%s1108 + $0x2c] sm:$0x1]
        %v1137 = vsel %vm183, %v535, %v1136
        %1138 = vst [vmem:[%s1108 + $0x2c] sm:$0x1] %v1137
        %v1139 = vld [vmem:[%s1108 + $0x30] sm:$0xf]
        %v1140 = vsel %vm1110, %v542, %v1139
        %1141 = vst [vmem:[%s1108 + $0x30] sm:$0xf] %v1140
        %1142 = vst.msk [vmem:[%s1108 + $0x34] sm:$0xf] %vm166, %v551
        %v1143 = vld [vmem:[%s1108 + $0x38] sm:$0x1]
        %v1144 = vsel %vm183, %v552, %v1143
        %1145 = vst [vmem:[%s1108 + $0x38] sm:$0x1] %v1144
        %v1146 = vld [vmem:[%s1108 + $0x3c] sm:$0xf]
        %v1147 = vsel %vm1110, %v559, %v1146
        %1148 = vst [vmem:[%s1108 + $0x3c] sm:$0xf] %v1147
        %1149 = vst.msk [vmem:[%s1108 + $0x40] sm:$0xf] %vm166, %v568
        %v1150 = vld [vmem:[%s1108 + $0x44] sm:$0x1]
        %v1151 = vsel %vm183, %v569, %v1150
        %1152 = vst [vmem:[%s1108 + $0x44] sm:$0x1] %v1151
        %v1153 = vld [vmem:[%s1108 + $0x48] sm:$0xf]
        %v1154 = vsel %vm1110, %v576, %v1153
        %1155 = vst [vmem:[%s1108 + $0x48] sm:$0xf] %v1154
        %1156 = vst.msk [vmem:[%s1108 + $0x4c] sm:$0xf] %vm166, %v585
        %v1157 = vld [vmem:[%s1108 + $0x50] sm:$0x1]
        %v1158 = vsel %vm183, %v586, %v1157
        %1159 = vst [vmem:[%s1108 + $0x50] sm:$0x1] %v1158
        %v1160 = vld [vmem:[%s1108 + $0x54] sm:$0xf]
        %v1161 = vsel %vm1110, %v593, %v1160
        %1162 = vst [vmem:[%s1108 + $0x54] sm:$0xf] %v1161
        %1163 = vst.msk [vmem:[%s1108 + $0x58] sm:$0xf] %vm166, %v602
        %v1164 = vld [vmem:[%s1108 + $0x5c] sm:$0x1]
        %v1165 = vsel %vm183, %v603, %v1164
        %1166 = vst [vmem:[%s1108 + $0x5c] sm:$0x1] %v1165
        %v1167 = vld [vmem:[%s1108 + $0x60] sm:$0xf]
        %v1168 = vsel %vm1110, %v610, %v1167
        %1169 = vst [vmem:[%s1108 + $0x60] sm:$0xf] %v1168
        %1170 = vst.msk [vmem:[%s1108 + $0x64] sm:$0xf] %vm166, %v619
        %v1171 = vld [vmem:[%s1108 + $0x68] sm:$0x1]
        %v1172 = vsel %vm183, %v620, %v1171
        %1173 = vst [vmem:[%s1108 + $0x68] sm:$0x1] %v1172
        %v1174 = vld [vmem:[%s1108 + $0x6c] sm:$0xf]
        %v1175 = vsel %vm1110, %v627, %v1174
        %1176 = vst [vmem:[%s1108 + $0x6c] sm:$0xf] %v1175
        %1177 = vst.msk [vmem:[%s1108 + $0x70] sm:$0xf] %vm166, %v636
        %v1178 = vld [vmem:[%s1108 + $0x74] sm:$0x1]
        %v1179 = vsel %vm183, %v637, %v1178
        %1180 = vst [vmem:[%s1108 + $0x74] sm:$0x1] %v1179
        %v1181 = vld [vmem:[%s1108 + $0x78] sm:$0xf]
        %v1182 = vsel %vm1110, %v644, %v1181
        %1183 = vst [vmem:[%s1108 + $0x78] sm:$0xf] %v1182
        %1184 = vst.msk [vmem:[%s1108 + $0x7c] sm:$0xf] %vm166, %v653
        %v1185 = vld [vmem:[%s1108 + $0x80] sm:$0x1]
        %v1186 = vsel %vm183, %v654, %v1185
        %1187 = vst [vmem:[%s1108 + $0x80] sm:$0x1] %v1186
        %v1188 = vld [vmem:[%s1108 + $0x84] sm:$0xf]
        %v1189 = vsel %vm1110, %v661, %v1188
        %1190 = vst [vmem:[%s1108 + $0x84] sm:$0xf] %v1189
        %1191 = vst.msk [vmem:[%s1108 + $0x88] sm:$0xf] %vm166, %v670
        %v1192 = vld [vmem:[%s1108 + $0x8c] sm:$0x1]
        %v1193 = vsel %vm183, %v671, %v1192
        %1194 = vst [vmem:[%s1108 + $0x8c] sm:$0x1] %v1193
        %v1195 = vld [vmem:[%s1108 + $0x90] sm:$0xf]
        %v1196 = vsel %vm1110, %v678, %v1195
        %1197 = vst [vmem:[%s1108 + $0x90] sm:$0xf] %v1196
        %1198 = vst.msk [vmem:[%s1108 + $0x94] sm:$0xf] %vm166, %v687
        %v1199 = vld [vmem:[%s1108 + $0x98] sm:$0x1]
        %v1200 = vsel %vm183, %v688, %v1199
        %1201 = vst [vmem:[%s1108 + $0x98] sm:$0x1] %v1200
        %v1202 = vld [vmem:[%s1108 + $0x9c] sm:$0xf]
        %v1203 = vsel %vm1110, %v695, %v1202
        %1204 = vst [vmem:[%s1108 + $0x9c] sm:$0xf] %v1203
        %1205 = vst.msk [vmem:[%s1108 + $0xa0] sm:$0xf] %vm166, %v704
        %v1206 = vld [vmem:[%s1108 + $0xa4] sm:$0x1]
        %v1207 = vsel %vm183, %v705, %v1206
        %1208 = vst [vmem:[%s1108 + $0xa4] sm:$0x1] %v1207
        %v1209 = vld [vmem:[%s1108 + $0xa8] sm:$0xf]
        %v1210 = vsel %vm1110, %v712, %v1209
        %1211 = vst [vmem:[%s1108 + $0xa8] sm:$0xf] %v1210
        %1212 = vst.msk [vmem:[%s1108 + $0xac] sm:$0xf] %vm166, %v721
        %v1213 = vld [vmem:[%s1108 + $0xb0] sm:$0x1]
        %v1214 = vsel %vm183, %v722, %v1213
        %1215 = vst [vmem:[%s1108 + $0xb0] sm:$0x1] %v1214
        %v1216 = vld [vmem:[%s1108 + $0xb4] sm:$0xf]
        %v1217 = vsel %vm1110, %v729, %v1216
        %1218 = vst [vmem:[%s1108 + $0xb4] sm:$0xf] %v1217
        %1219 = vst.msk [vmem:[%s1108 + $0xb8] sm:$0xf] %vm166, %v738
        %v1220 = vld [vmem:[%s1108 + $0xbc] sm:$0x1]
        %v1221 = vsel %vm183, %v739, %v1220
        %1222 = vst [vmem:[%s1108 + $0xbc] sm:$0x1] %v1221
        %v1223 = vld [vmem:[%s1108 + $0xd8] sm:$0xf]
        %v1224 = vsel %vm1110, %v746, %v1223
        %1225 = vst [vmem:[%s1108 + $0xd8] sm:$0xf] %v1224
        %1226 = vst.msk [vmem:[%s1108 + $0xdc] sm:$0xf] %vm166, %v755
        %v1227 = vld [vmem:[%s1108 + $0xe0] sm:$0x1]
        %v1228 = vsel %vm183, %v756, %v1227
        %1229 = vst [vmem:[%s1108 + $0xe0] sm:$0x1] %v1228
        %v1230 = vld [vmem:[%s1108 + $0xe4] sm:$0xf]
        %v1231 = vsel %vm1110, %v763, %v1230
        %1232 = vst [vmem:[%s1108 + $0xe4] sm:$0xf] %v1231
        %1233 = vst.msk [vmem:[%s1108 + $0xe8] sm:$0xf] %vm166, %v772
        %v1234 = vld [vmem:[%s1108 + $0xec] sm:$0x1]
        %v1235 = vsel %vm183, %v773, %v1234
        %1236 = vst [vmem:[%s1108 + $0xec] sm:$0x1] %v1235
        %v1237 = vld [vmem:[%s1108 + $0xf0] sm:$0xf]
        %v1238 = vsel %vm1110, %v780, %v1237
        %1239 = vst [vmem:[%s1108 + $0xf0] sm:$0xf] %v1238
        %1240 = vst.msk [vmem:[%s1108 + $0xf4] sm:$0xf] %vm166, %v789
        %v1241 = vld [vmem:[%s1108 + $0xf8] sm:$0x1]
        %v1242 = vsel %vm183, %v790, %v1241
        %1243 = vst [vmem:[%s1108 + $0xf8] sm:$0x1] %v1242
        %v1244 = vld [vmem:[%s1108 + $0xfc] sm:$0xf]
        %v1245 = vsel %vm1110, %v797, %v1244
        %1246 = vst [vmem:[%s1108 + $0xfc] sm:$0xf] %v1245
        %1247 = vst.msk [vmem:[%s1108 + $0x100] sm:$0xf] %vm166, %v806
        %v1248 = vld [vmem:[%s1108 + $0x104] sm:$0x1]
        %v1249 = vsel %vm183, %v807, %v1248
        %1250 = vst [vmem:[%s1108 + $0x104] sm:$0x1] %v1249
        %v1251 = vld [vmem:[%s1108 + $0x108] sm:$0xf]
        %v1252 = vsel %vm1110, %v814, %v1251
        %1253 = vst [vmem:[%s1108 + $0x108] sm:$0xf] %v1252
        %1254 = vst.msk [vmem:[%s1108 + $0x10c] sm:$0xf] %vm166, %v823
        %v1255 = vld [vmem:[%s1108 + $0x110] sm:$0x1]
        %v1256 = vsel %vm183, %v824, %v1255
        %1257 = vst [vmem:[%s1108 + $0x110] sm:$0x1] %v1256
        %v1258 = vld [vmem:[%s1108 + $0x114] sm:$0xf]
        %v1259 = vsel %vm1110, %v831, %v1258
        %1260 = vst [vmem:[%s1108 + $0x114] sm:$0xf] %v1259
        %1261 = vst.msk [vmem:[%s1108 + $0x118] sm:$0xf] %vm166, %v840
        %v1262 = vld [vmem:[%s1108 + $0x11c] sm:$0x1]
        %v1263 = vsel %vm183, %v841, %v1262
        %1264 = vst [vmem:[%s1108 + $0x11c] sm:$0x1] %v1263
        %v1265 = vld [vmem:[%s1108 + $0x120] sm:$0xf]
        %v1266 = vsel %vm1110, %v848, %v1265
        %1267 = vst [vmem:[%s1108 + $0x120] sm:$0xf] %v1266
        %1268 = vst.msk [vmem:[%s1108 + $0x124] sm:$0xf] %vm166, %v857
        %v1269 = vld [vmem:[%s1108 + $0x128] sm:$0x1]
        %v1270 = vsel %vm183, %v858, %v1269
        %1271 = vst [vmem:[%s1108 + $0x128] sm:$0x1] %v1270
        %v1272 = vld [vmem:[%s1108 + $0x12c] sm:$0xf]
        %v1273 = vsel %vm1110, %v865, %v1272
        %1274 = vst [vmem:[%s1108 + $0x12c] sm:$0xf] %v1273
        %1275 = vst.msk [vmem:[%s1108 + $0x130] sm:$0xf] %vm166, %v874
        %v1276 = vld [vmem:[%s1108 + $0x134] sm:$0x1]
        %v1277 = vsel %vm183, %v875, %v1276
        %1278 = vst [vmem:[%s1108 + $0x134] sm:$0x1] %v1277
        %v1279 = vld [vmem:[%s1108 + $0x138] sm:$0xf]
        %v1280 = vsel %vm1110, %v882, %v1279
        %1281 = vst [vmem:[%s1108 + $0x138] sm:$0xf] %v1280
        %1282 = vst.msk [vmem:[%s1108 + $0x13c] sm:$0xf] %vm166, %v891
        %v1283 = vld [vmem:[%s1108 + $0x140] sm:$0x1]
        %v1284 = vsel %vm183, %v892, %v1283
        %1285 = vst [vmem:[%s1108 + $0x140] sm:$0x1] %v1284
        %v1286 = vld [vmem:[%s1108 + $0x144] sm:$0xf]
        %v1287 = vsel %vm1110, %v899, %v1286
        %1288 = vst [vmem:[%s1108 + $0x144] sm:$0xf] %v1287
        %1289 = vst.msk [vmem:[%s1108 + $0x148] sm:$0xf] %vm166, %v908
        %v1290 = vld [vmem:[%s1108 + $0x14c] sm:$0x1]
        %v1291 = vsel %vm183, %v909, %v1290
        %1292 = vst [vmem:[%s1108 + $0x14c] sm:$0x1] %v1291
        %v1293 = vld [vmem:[%s1108 + $0x150] sm:$0xf]
        %v1294 = vsel %vm1110, %v916, %v1293
        %1295 = vst [vmem:[%s1108 + $0x150] sm:$0xf] %v1294
        %1296 = vst.msk [vmem:[%s1108 + $0x154] sm:$0xf] %vm166, %v925
        %v1297 = vld [vmem:[%s1108 + $0x158] sm:$0x1]
        %v1298 = vsel %vm183, %v926, %v1297
        %1299 = vst [vmem:[%s1108 + $0x158] sm:$0x1] %v1298
        %v1300 = vld [vmem:[%s1108 + $0x15c] sm:$0xf]
        %v1301 = vsel %vm1110, %v933, %v1300
        %1302 = vst [vmem:[%s1108 + $0x15c] sm:$0xf] %v1301
        %1303 = vst.msk [vmem:[%s1108 + $0x160] sm:$0xf] %vm166, %v942
        %v1304 = vld [vmem:[%s1108 + $0x164] sm:$0x1]
        %v1305 = vsel %vm183, %v943, %v1304
        %1306 = vst [vmem:[%s1108 + $0x164] sm:$0x1] %v1305
        %v1307 = vld [vmem:[%s1108 + $0x168] sm:$0xf]
        %v1308 = vsel %vm1110, %v950, %v1307
        %1309 = vst [vmem:[%s1108 + $0x168] sm:$0xf] %v1308
        %1310 = vst.msk [vmem:[%s1108 + $0x16c] sm:$0xf] %vm166, %v959
        %v1311 = vld [vmem:[%s1108 + $0x170] sm:$0x1]
        %v1312 = vsel %vm183, %v960, %v1311
        %1313 = vst [vmem:[%s1108 + $0x170] sm:$0x1] %v1312
        %v1314 = vld [vmem:[%s1108 + $0x174] sm:$0xf]
        %v1315 = vsel %vm1110, %v967, %v1314
        %1316 = vst [vmem:[%s1108 + $0x174] sm:$0xf] %v1315
        %1317 = vst.msk [vmem:[%s1108 + $0x178] sm:$0xf] %vm166, %v976
        %v1318 = vld [vmem:[%s1108 + $0x17c] sm:$0x1]
        %v1319 = vsel %vm183, %v977, %v1318
        %1320 = vst [vmem:[%s1108 + $0x17c] sm:$0x1] %v1319
        %v1321 = vld [vmem:[%s1108 + $0x180] sm:$0xf]
        %v1322 = vsel %vm1110, %v984, %v1321
        %1323 = vst [vmem:[%s1108 + $0x180] sm:$0xf] %v1322
        %1324 = vst.msk [vmem:[%s1108 + $0x184] sm:$0xf] %vm166, %v993
        %v1325 = vld [vmem:[%s1108 + $0x188] sm:$0x1]
        %v1326 = vsel %vm183, %v994, %v1325
        %1327 = vst [vmem:[%s1108 + $0x188] sm:$0x1] %v1326
        %v1328 = vld [vmem:[%s1108 + $0x18c] sm:$0xf]
        %v1329 = vsel %vm1110, %v1001, %v1328
        %1330 = vst [vmem:[%s1108 + $0x18c] sm:$0xf] %v1329
        %1331 = vst.msk [vmem:[%s1108 + $0x190] sm:$0xf] %vm166, %v1010
        %v1332 = vld [vmem:[%s1108 + $0x194] sm:$0x1]
        %v1333 = vsel %vm183, %v1011, %v1332
        %1334 = vst [vmem:[%s1108 + $0x194] sm:$0x1] %v1333
        %v1335 = vld [vmem:[#allocation2] sm:$0xf]
        %v1336 = vld [vmem:[#allocation2 + $0x4] sm:$0xf]
        %v1337 = vld [vmem:[#allocation2 + $0xc] sm:$0xf]
        %v1338 = vld [vmem:[#allocation2 + $0x10] sm:$0xf]
        %v1339 = vld [vmem:[#allocation2 + $0x18] sm:$0xf]
        %v1340 = vld [vmem:[#allocation2 + $0x1c] sm:$0xf]
        %v1341 = vld [vmem:[#allocation2 + $0x24] sm:$0xf]
        %v1342 = vld [vmem:[#allocation2 + $0x28] sm:$0xf]
        %v1343 = vld [vmem:[#allocation2 + $0x30] sm:$0xf]
        %v1344 = vld [vmem:[#allocation2 + $0x34] sm:$0xf]
        %v1345 = vld [vmem:[#allocation2 + $0x3c] sm:$0xf]
        %v1346 = vld [vmem:[#allocation2 + $0x40] sm:$0xf]
        %v1347 = vld [vmem:[#allocation2 + $0x48] sm:$0xf]
        %v1348 = vld [vmem:[#allocation2 + $0x4c] sm:$0xf]
        %v1349 = vld [vmem:[#allocation2 + $0x54] sm:$0xf]
        %v1350 = vld [vmem:[#allocation2 + $0x58] sm:$0xf]
        %v1351 = vld [vmem:[#allocation2 + $0x60] sm:$0xf]
        %v1352 = vld [vmem:[#allocation2 + $0x64] sm:$0xf]
        %v1353 = vld [vmem:[#allocation2 + $0x6c] sm:$0xf]
        %v1354 = vld [vmem:[#allocation2 + $0x70] sm:$0xf]
        %v1355 = vld [vmem:[#allocation2 + $0x78] sm:$0xf]
        %v1356 = vld [vmem:[#allocation2 + $0x7c] sm:$0xf]
        %v1357 = vld [vmem:[#allocation2 + $0x84] sm:$0xf]
        %v1358 = vld [vmem:[#allocation2 + $0x88] sm:$0xf]
        %v1359 = vld [vmem:[#allocation2 + $0x90] sm:$0xf]
        %v1360 = vld [vmem:[#allocation2 + $0x94] sm:$0xf]
        %v1361 = vld [vmem:[#allocation2 + $0x9c] sm:$0xf]
        %v1362 = vld [vmem:[#allocation2 + $0xa0] sm:$0xf]
        %v1363 = vld [vmem:[#allocation2 + $0xa8] sm:$0xf]
        %v1364 = vld [vmem:[#allocation2 + $0xac] sm:$0xf]
        %v1365 = vld [vmem:[#allocation2 + $0xb4] sm:$0xf]
        %v1366 = vld [vmem:[#allocation2 + $0xb8] sm:$0xf]
        %v1367 = vld [vmem:[#allocation2 + $0xd8] sm:$0xf]
        %v1368 = vld [vmem:[#allocation2 + $0xdc] sm:$0xf]
        %v1369 = vld [vmem:[#allocation2 + $0xe4] sm:$0xf]
        %v1370 = vld [vmem:[#allocation2 + $0xe8] sm:$0xf]
        %v1371 = vld [vmem:[#allocation2 + $0xf0] sm:$0xf]
        %v1372 = vld [vmem:[#allocation2 + $0xf4] sm:$0xf]
        %v1373 = vld [vmem:[#allocation2 + $0xfc] sm:$0xf]
        %v1374 = vld [vmem:[#allocation2 + $0x100] sm:$0xf]
        %v1375 = vld [vmem:[#allocation2 + $0x108] sm:$0xf]
        %v1376 = vld [vmem:[#allocation2 + $0x10c] sm:$0xf]
        %v1377 = vld [vmem:[#allocation2 + $0x114] sm:$0xf]
        %v1378 = vld [vmem:[#allocation2 + $0x118] sm:$0xf]
        %v1379 = vld [vmem:[#allocation2 + $0x120] sm:$0xf]
        %v1380 = vld [vmem:[#allocation2 + $0x124] sm:$0xf]
        %v1381 = vld [vmem:[#allocation2 + $0x12c] sm:$0xf]
        %v1382 = vld [vmem:[#allocation2 + $0x130] sm:$0xf]
        %v1383 = vld [vmem:[#allocation2 + $0x138] sm:$0xf]
        %v1384 = vld [vmem:[#allocation2 + $0x13c] sm:$0xf]
        %v1385 = vld [vmem:[#allocation2 + $0x144] sm:$0xf]
        %v1386 = vld [vmem:[#allocation2 + $0x148] sm:$0xf]
        %v1387 = vld [vmem:[#allocation2 + $0x150] sm:$0xf]
        %v1388 = vld [vmem:[#allocation2 + $0x154] sm:$0xf]
        %v1389 = vld [vmem:[#allocation2 + $0x15c] sm:$0xf]
        %v1390 = vld [vmem:[#allocation2 + $0x160] sm:$0xf]
        %v1391 = vld [vmem:[#allocation2 + $0x168] sm:$0xf]
        %v1392 = vld [vmem:[#allocation2 + $0x16c] sm:$0xf]
        %v1393 = vld [vmem:[#allocation2 + $0x174] sm:$0xf]
        %v1394 = vld [vmem:[#allocation2 + $0x178] sm:$0xf]
        %v1395 = vld [vmem:[#allocation2 + $0x180] sm:$0xf]
        %v1396 = vld [vmem:[#allocation2 + $0x184] sm:$0xf]
        %v1397 = vld [vmem:[#allocation2 + $0x18c] sm:$0xf]
        %v1398 = vld [vmem:[#allocation2 + $0x190] sm:$0xf]
        %v1399 = vld [vmem:[#allocation2 + $0x8] sm:$0x1]
        %v1400 = vld [vmem:[#allocation2 + $0x14] sm:$0x1]
        %v1401 = vld [vmem:[#allocation2 + $0x20] sm:$0x1]
        %v1402 = vld [vmem:[#allocation2 + $0x2c] sm:$0x1]
        %v1403 = vld [vmem:[#allocation2 + $0x38] sm:$0x1]
        %v1404 = vld [vmem:[#allocation2 + $0x44] sm:$0x1]
        %v1405 = vld [vmem:[#allocation2 + $0x50] sm:$0x1]
        %v1406 = vld [vmem:[#allocation2 + $0x5c] sm:$0x1]
        %v1407 = vld [vmem:[#allocation2 + $0x68] sm:$0x1]
        %v1408 = vld [vmem:[#allocation2 + $0x74] sm:$0x1]
        %v1409 = vld [vmem:[#allocation2 + $0x80] sm:$0x1]
        %v1410 = vld [vmem:[#allocation2 + $0x8c] sm:$0x1]
        %v1411 = vld [vmem:[#allocation2 + $0x98] sm:$0x1]
        %v1412 = vld [vmem:[#allocation2 + $0xa4] sm:$0x1]
        %v1413 = vld [vmem:[#allocation2 + $0xb0] sm:$0x1]
        %v1414 = vld [vmem:[#allocation2 + $0xbc] sm:$0x1]
        %v1415 = vld [vmem:[#allocation2 + $0xe0] sm:$0x1]
        %v1416 = vld [vmem:[#allocation2 + $0xec] sm:$0x1]
        %v1417 = vld [vmem:[#allocation2 + $0xf8] sm:$0x1]
        %v1418 = vld [vmem:[#allocation2 + $0x104] sm:$0x1]
        %v1419 = vld [vmem:[#allocation2 + $0x110] sm:$0x1]
        %v1420 = vld [vmem:[#allocation2 + $0x11c] sm:$0x1]
        %v1421 = vld [vmem:[#allocation2 + $0x128] sm:$0x1]
        %v1422 = vld [vmem:[#allocation2 + $0x134] sm:$0x1]
        %v1423 = vld [vmem:[#allocation2 + $0x140] sm:$0x1]
        %v1424 = vld [vmem:[#allocation2 + $0x14c] sm:$0x1]
        %v1425 = vld [vmem:[#allocation2 + $0x158] sm:$0x1]
        %v1426 = vld [vmem:[#allocation2 + $0x164] sm:$0x1]
        %v1427 = vld [vmem:[#allocation2 + $0x170] sm:$0x1]
        %v1428 = vld [vmem:[#allocation2 + $0x17c] sm:$0x1]
        %v1429 = vld [vmem:[#allocation2 + $0x188] sm:$0x1]
        %v1430 = vld [vmem:[#allocation2 + $0x194] sm:$0x1]
        %vm1431 = vsmask.f32 3328
        %vm1432 = vsmask.f32 7440
        %vm1433 = vmor %vm1431, %vm1432
        %v1435 = vshrl.u32 %v1335, 16
        %v1437 = vrot.slane %v1435, 4
        %v1438 = vshll.u32 %v1335, 16
        %v1440 = vrot.slane %v1438, 5
        %v1441 = vor.u32 %v1437, %v1440
        %v1442 = vrot.slane %v1441, 4
        %v1444 = vshll.u32 %v1336, 16
        %v1446 = vrot.slane %v1444, 5
        %v1447 = vsel %vm1433, %v1442, %v1446
        %v1448 = vshrl.u32 %v1336, 16
        %v1450 = vrot.slane %v1448, 4
        %v1451 = vor.u32 %v1450, %v1446
        %v1452 = vrot.slane %v1451, 4
        %v1454 = vshll.u32 %v1399, 16
        %v1456 = vrot.slane %v1454, 5
        %v1457 = vsel %vm1433, %v1452, %v1456
        %v1459 = vshrl.u32 %v1337, 16
        %v1461 = vrot.slane %v1459, 4
        %v1462 = vshll.u32 %v1337, 16
        %v1464 = vrot.slane %v1462, 5
        %v1465 = vor.u32 %v1461, %v1464
        %v1466 = vrot.slane %v1465, 4
        %v1468 = vshll.u32 %v1338, 16
        %v1470 = vrot.slane %v1468, 5
        %v1471 = vsel %vm1433, %v1466, %v1470
        %v1472 = vshrl.u32 %v1338, 16
        %v1474 = vrot.slane %v1472, 4
        %v1475 = vor.u32 %v1474, %v1470
        %v1476 = vrot.slane %v1475, 4
        %v1478 = vshll.u32 %v1400, 16
        %v1480 = vrot.slane %v1478, 5
        %v1481 = vsel %vm1433, %v1476, %v1480
        %v1483 = vshrl.u32 %v1339, 16
        %v1485 = vrot.slane %v1483, 4
        %v1486 = vshll.u32 %v1339, 16
        %v1488 = vrot.slane %v1486, 5
        %v1489 = vor.u32 %v1485, %v1488
        %v1490 = vrot.slane %v1489, 4
        %v1492 = vshll.u32 %v1340, 16
        %v1494 = vrot.slane %v1492, 5
        %v1495 = vsel %vm1433, %v1490, %v1494
        %v1496 = vshrl.u32 %v1340, 16
        %v1498 = vrot.slane %v1496, 4
        %v1499 = vor.u32 %v1498, %v1494
        %v1500 = vrot.slane %v1499, 4
        %v1502 = vshll.u32 %v1401, 16
        %v1504 = vrot.slane %v1502, 5
        %v1505 = vsel %vm1433, %v1500, %v1504
        %v1507 = vshrl.u32 %v1341, 16
        %v1509 = vrot.slane %v1507, 4
        %v1510 = vshll.u32 %v1341, 16
        %v1512 = vrot.slane %v1510, 5
        %v1513 = vor.u32 %v1509, %v1512
        %v1514 = vrot.slane %v1513, 4
        %v1516 = vshll.u32 %v1342, 16
        %v1518 = vrot.slane %v1516, 5
        %v1519 = vsel %vm1433, %v1514, %v1518
        %v1520 = vshrl.u32 %v1342, 16
        %v1522 = vrot.slane %v1520, 4
        %v1523 = vor.u32 %v1522, %v1518
        %v1524 = vrot.slane %v1523, 4
        %v1526 = vshll.u32 %v1402, 16
        %v1528 = vrot.slane %v1526, 5
        %v1529 = vsel %vm1433, %v1524, %v1528
        %v1531 = vshrl.u32 %v1343, 16
        %v1533 = vrot.slane %v1531, 4
        %v1534 = vshll.u32 %v1343, 16
        %v1536 = vrot.slane %v1534, 5
        %v1537 = vor.u32 %v1533, %v1536
        %v1538 = vrot.slane %v1537, 4
        %v1540 = vshll.u32 %v1344, 16
        %v1542 = vrot.slane %v1540, 5
        %v1543 = vsel %vm1433, %v1538, %v1542
        %v1544 = vshrl.u32 %v1344, 16
        %v1546 = vrot.slane %v1544, 4
        %v1547 = vor.u32 %v1546, %v1542
        %v1548 = vrot.slane %v1547, 4
        %v1550 = vshll.u32 %v1403, 16
        %v1552 = vrot.slane %v1550, 5
        %v1553 = vsel %vm1433, %v1548, %v1552
        %v1555 = vshrl.u32 %v1345, 16
        %v1557 = vrot.slane %v1555, 4
        %v1558 = vshll.u32 %v1345, 16
        %v1560 = vrot.slane %v1558, 5
        %v1561 = vor.u32 %v1557, %v1560
        %v1562 = vrot.slane %v1561, 4
        %v1564 = vshll.u32 %v1346, 16
        %v1566 = vrot.slane %v1564, 5
        %v1567 = vsel %vm1433, %v1562, %v1566
        %v1568 = vshrl.u32 %v1346, 16
        %v1570 = vrot.slane %v1568, 4
        %v1571 = vor.u32 %v1570, %v1566
        %v1572 = vrot.slane %v1571, 4
        %v1574 = vshll.u32 %v1404, 16
        %v1576 = vrot.slane %v1574, 5
        %v1577 = vsel %vm1433, %v1572, %v1576
        %v1579 = vshrl.u32 %v1347, 16
        %v1581 = vrot.slane %v1579, 4
        %v1582 = vshll.u32 %v1347, 16
        %v1584 = vrot.slane %v1582, 5
        %v1585 = vor.u32 %v1581, %v1584
        %v1586 = vrot.slane %v1585, 4
        %v1588 = vshll.u32 %v1348, 16
        %v1590 = vrot.slane %v1588, 5
        %v1591 = vsel %vm1433, %v1586, %v1590
        %v1592 = vshrl.u32 %v1348, 16
        %v1594 = vrot.slane %v1592, 4
        %v1595 = vor.u32 %v1594, %v1590
        %v1596 = vrot.slane %v1595, 4
        %v1598 = vshll.u32 %v1405, 16
        %v1600 = vrot.slane %v1598, 5
        %v1601 = vsel %vm1433, %v1596, %v1600
        %v1603 = vshrl.u32 %v1349, 16
        %v1605 = vrot.slane %v1603, 4
        %v1606 = vshll.u32 %v1349, 16
        %v1608 = vrot.slane %v1606, 5
        %v1609 = vor.u32 %v1605, %v1608
        %v1610 = vrot.slane %v1609, 4
        %v1612 = vshll.u32 %v1350, 16
        %v1614 = vrot.slane %v1612, 5
        %v1615 = vsel %vm1433, %v1610, %v1614
        %v1616 = vshrl.u32 %v1350, 16
        %v1618 = vrot.slane %v1616, 4
        %v1619 = vor.u32 %v1618, %v1614
        %v1620 = vrot.slane %v1619, 4
        %v1622 = vshll.u32 %v1406, 16
        %v1624 = vrot.slane %v1622, 5
        %v1625 = vsel %vm1433, %v1620, %v1624
        %v1627 = vshrl.u32 %v1351, 16
        %v1629 = vrot.slane %v1627, 4
        %v1630 = vshll.u32 %v1351, 16
        %v1632 = vrot.slane %v1630, 5
        %v1633 = vor.u32 %v1629, %v1632
        %v1634 = vrot.slane %v1633, 4
        %v1636 = vshll.u32 %v1352, 16
        %v1638 = vrot.slane %v1636, 5
        %v1639 = vsel %vm1433, %v1634, %v1638
        %v1640 = vshrl.u32 %v1352, 16
        %v1642 = vrot.slane %v1640, 4
        %v1643 = vor.u32 %v1642, %v1638
        %v1644 = vrot.slane %v1643, 4
        %v1646 = vshll.u32 %v1407, 16
        %v1648 = vrot.slane %v1646, 5
        %v1649 = vsel %vm1433, %v1644, %v1648
        %v1651 = vshrl.u32 %v1353, 16
        %v1653 = vrot.slane %v1651, 4
        %v1654 = vshll.u32 %v1353, 16
        %v1656 = vrot.slane %v1654, 5
        %v1657 = vor.u32 %v1653, %v1656
        %v1658 = vrot.slane %v1657, 4
        %v1660 = vshll.u32 %v1354, 16
        %v1662 = vrot.slane %v1660, 5
        %v1663 = vsel %vm1433, %v1658, %v1662
        %v1664 = vshrl.u32 %v1354, 16
        %v1666 = vrot.slane %v1664, 4
        %v1667 = vor.u32 %v1666, %v1662
        %v1668 = vrot.slane %v1667, 4
        %v1670 = vshll.u32 %v1408, 16
        %v1672 = vrot.slane %v1670, 5
        %v1673 = vsel %vm1433, %v1668, %v1672
        %v1675 = vshrl.u32 %v1355, 16
        %v1677 = vrot.slane %v1675, 4
        %v1678 = vshll.u32 %v1355, 16
        %v1680 = vrot.slane %v1678, 5
        %v1681 = vor.u32 %v1677, %v1680
        %v1682 = vrot.slane %v1681, 4
        %v1684 = vshll.u32 %v1356, 16
        %v1686 = vrot.slane %v1684, 5
        %v1687 = vsel %vm1433, %v1682, %v1686
        %v1688 = vshrl.u32 %v1356, 16
        %v1690 = vrot.slane %v1688, 4
        %v1691 = vor.u32 %v1690, %v1686
        %v1692 = vrot.slane %v1691, 4
        %v1694 = vshll.u32 %v1409, 16
        %v1696 = vrot.slane %v1694, 5
        %v1697 = vsel %vm1433, %v1692, %v1696
        %v1699 = vshrl.u32 %v1357, 16
        %v1701 = vrot.slane %v1699, 4
        %v1702 = vshll.u32 %v1357, 16
        %v1704 = vrot.slane %v1702, 5
        %v1705 = vor.u32 %v1701, %v1704
        %v1706 = vrot.slane %v1705, 4
        %v1708 = vshll.u32 %v1358, 16
        %v1710 = vrot.slane %v1708, 5
        %v1711 = vsel %vm1433, %v1706, %v1710
        %v1712 = vshrl.u32 %v1358, 16
        %v1714 = vrot.slane %v1712, 4
        %v1715 = vor.u32 %v1714, %v1710
        %v1716 = vrot.slane %v1715, 4
        %v1718 = vshll.u32 %v1410, 16
        %v1720 = vrot.slane %v1718, 5
        %v1721 = vsel %vm1433, %v1716, %v1720
        %v1723 = vshrl.u32 %v1359, 16
        %v1725 = vrot.slane %v1723, 4
        %v1726 = vshll.u32 %v1359, 16
        %v1728 = vrot.slane %v1726, 5
        %v1729 = vor.u32 %v1725, %v1728
        %v1730 = vrot.slane %v1729, 4
        %v1732 = vshll.u32 %v1360, 16
        %v1734 = vrot.slane %v1732, 5
        %v1735 = vsel %vm1433, %v1730, %v1734
        %v1736 = vshrl.u32 %v1360, 16
        %v1738 = vrot.slane %v1736, 4
        %v1739 = vor.u32 %v1738, %v1734
        %v1740 = vrot.slane %v1739, 4
        %v1742 = vshll.u32 %v1411, 16
        %v1744 = vrot.slane %v1742, 5
        %v1745 = vsel %vm1433, %v1740, %v1744
        %v1747 = vshrl.u32 %v1361, 16
        %v1749 = vrot.slane %v1747, 4
        %v1750 = vshll.u32 %v1361, 16
        %v1752 = vrot.slane %v1750, 5
        %v1753 = vor.u32 %v1749, %v1752
        %v1754 = vrot.slane %v1753, 4
        %v1756 = vshll.u32 %v1362, 16
        %v1758 = vrot.slane %v1756, 5
        %v1759 = vsel %vm1433, %v1754, %v1758
        %v1760 = vshrl.u32 %v1362, 16
        %v1762 = vrot.slane %v1760, 4
        %v1763 = vor.u32 %v1762, %v1758
        %v1764 = vrot.slane %v1763, 4
        %v1766 = vshll.u32 %v1412, 16
        %v1768 = vrot.slane %v1766, 5
        %v1769 = vsel %vm1433, %v1764, %v1768
        %v1771 = vshrl.u32 %v1363, 16
        %v1773 = vrot.slane %v1771, 4
        %v1774 = vshll.u32 %v1363, 16
        %v1776 = vrot.slane %v1774, 5
        %v1777 = vor.u32 %v1773, %v1776
        %v1778 = vrot.slane %v1777, 4
        %v1780 = vshll.u32 %v1364, 16
        %v1782 = vrot.slane %v1780, 5
        %v1783 = vsel %vm1433, %v1778, %v1782
        %v1784 = vshrl.u32 %v1364, 16
        %v1786 = vrot.slane %v1784, 4
        %v1787 = vor.u32 %v1786, %v1782
        %v1788 = vrot.slane %v1787, 4
        %v1790 = vshll.u32 %v1413, 16
        %v1792 = vrot.slane %v1790, 5
        %v1793 = vsel %vm1433, %v1788, %v1792
        %v1795 = vshrl.u32 %v1365, 16
        %v1797 = vrot.slane %v1795, 4
        %v1798 = vshll.u32 %v1365, 16
        %v1800 = vrot.slane %v1798, 5
        %v1801 = vor.u32 %v1797, %v1800
        %v1802 = vrot.slane %v1801, 4
        %v1804 = vshll.u32 %v1366, 16
        %v1806 = vrot.slane %v1804, 5
        %v1807 = vsel %vm1433, %v1802, %v1806
        %v1808 = vshrl.u32 %v1366, 16
        %v1810 = vrot.slane %v1808, 4
        %v1811 = vor.u32 %v1810, %v1806
        %v1812 = vrot.slane %v1811, 4
        %v1814 = vshll.u32 %v1414, 16
        %v1816 = vrot.slane %v1814, 5
        %v1817 = vsel %vm1433, %v1812, %v1816
        %v1819 = vshrl.u32 %v1367, 16
        %v1821 = vrot.slane %v1819, 4
        %v1822 = vshll.u32 %v1367, 16
        %v1824 = vrot.slane %v1822, 5
        %v1825 = vor.u32 %v1821, %v1824
        %v1826 = vrot.slane %v1825, 4
        %v1828 = vshll.u32 %v1368, 16
        %v1830 = vrot.slane %v1828, 5
        %v1831 = vsel %vm1433, %v1826, %v1830
        %v1832 = vshrl.u32 %v1368, 16
        %v1834 = vrot.slane %v1832, 4
        %v1835 = vor.u32 %v1834, %v1830
        %v1836 = vrot.slane %v1835, 4
        %v1838 = vshll.u32 %v1415, 16
        %v1840 = vrot.slane %v1838, 5
        %v1841 = vsel %vm1433, %v1836, %v1840
        %v1843 = vshrl.u32 %v1369, 16
        %v1845 = vrot.slane %v1843, 4
        %v1846 = vshll.u32 %v1369, 16
        %v1848 = vrot.slane %v1846, 5
        %v1849 = vor.u32 %v1845, %v1848
        %v1850 = vrot.slane %v1849, 4
        %v1852 = vshll.u32 %v1370, 16
        %v1854 = vrot.slane %v1852, 5
        %v1855 = vsel %vm1433, %v1850, %v1854
        %v1856 = vshrl.u32 %v1370, 16
        %v1858 = vrot.slane %v1856, 4
        %v1859 = vor.u32 %v1858, %v1854
        %v1860 = vrot.slane %v1859, 4
        %v1862 = vshll.u32 %v1416, 16
        %v1864 = vrot.slane %v1862, 5
        %v1865 = vsel %vm1433, %v1860, %v1864
        %v1867 = vshrl.u32 %v1371, 16
        %v1869 = vrot.slane %v1867, 4
        %v1870 = vshll.u32 %v1371, 16
        %v1872 = vrot.slane %v1870, 5
        %v1873 = vor.u32 %v1869, %v1872
        %v1874 = vrot.slane %v1873, 4
        %v1876 = vshll.u32 %v1372, 16
        %v1878 = vrot.slane %v1876, 5
        %v1879 = vsel %vm1433, %v1874, %v1878
        %v1880 = vshrl.u32 %v1372, 16
        %v1882 = vrot.slane %v1880, 4
        %v1883 = vor.u32 %v1882, %v1878
        %v1884 = vrot.slane %v1883, 4
        %v1886 = vshll.u32 %v1417, 16
        %v1888 = vrot.slane %v1886, 5
        %v1889 = vsel %vm1433, %v1884, %v1888
        %v1891 = vshrl.u32 %v1373, 16
        %v1893 = vrot.slane %v1891, 4
        %v1894 = vshll.u32 %v1373, 16
        %v1896 = vrot.slane %v1894, 5
        %v1897 = vor.u32 %v1893, %v1896
        %v1898 = vrot.slane %v1897, 4
        %v1900 = vshll.u32 %v1374, 16
        %v1902 = vrot.slane %v1900, 5
        %v1903 = vsel %vm1433, %v1898, %v1902
        %v1904 = vshrl.u32 %v1374, 16
        %v1906 = vrot.slane %v1904, 4
        %v1907 = vor.u32 %v1906, %v1902
        %v1908 = vrot.slane %v1907, 4
        %v1910 = vshll.u32 %v1418, 16
        %v1912 = vrot.slane %v1910, 5
        %v1913 = vsel %vm1433, %v1908, %v1912
        %v1915 = vshrl.u32 %v1375, 16
        %v1917 = vrot.slane %v1915, 4
        %v1918 = vshll.u32 %v1375, 16
        %v1920 = vrot.slane %v1918, 5
        %v1921 = vor.u32 %v1917, %v1920
        %v1922 = vrot.slane %v1921, 4
        %v1924 = vshll.u32 %v1376, 16
        %v1926 = vrot.slane %v1924, 5
        %v1927 = vsel %vm1433, %v1922, %v1926
        %v1928 = vshrl.u32 %v1376, 16
        %v1930 = vrot.slane %v1928, 4
        %v1931 = vor.u32 %v1930, %v1926
        %v1932 = vrot.slane %v1931, 4
        %v1934 = vshll.u32 %v1419, 16
        %v1936 = vrot.slane %v1934, 5
        %v1937 = vsel %vm1433, %v1932, %v1936
        %v1939 = vshrl.u32 %v1377, 16
        %v1941 = vrot.slane %v1939, 4
        %v1942 = vshll.u32 %v1377, 16
        %v1944 = vrot.slane %v1942, 5
        %v1945 = vor.u32 %v1941, %v1944
        %v1946 = vrot.slane %v1945, 4
        %v1948 = vshll.u32 %v1378, 16
        %v1950 = vrot.slane %v1948, 5
        %v1951 = vsel %vm1433, %v1946, %v1950
        %v1952 = vshrl.u32 %v1378, 16
        %v1954 = vrot.slane %v1952, 4
        %v1955 = vor.u32 %v1954, %v1950
        %v1956 = vrot.slane %v1955, 4
        %v1958 = vshll.u32 %v1420, 16
        %v1960 = vrot.slane %v1958, 5
        %v1961 = vsel %vm1433, %v1956, %v1960
        %v1963 = vshrl.u32 %v1379, 16
        %v1965 = vrot.slane %v1963, 4
        %v1966 = vshll.u32 %v1379, 16
        %v1968 = vrot.slane %v1966, 5
        %v1969 = vor.u32 %v1965, %v1968
        %v1970 = vrot.slane %v1969, 4
        %v1972 = vshll.u32 %v1380, 16
        %v1974 = vrot.slane %v1972, 5
        %v1975 = vsel %vm1433, %v1970, %v1974
        %v1976 = vshrl.u32 %v1380, 16
        %v1978 = vrot.slane %v1976, 4
        %v1979 = vor.u32 %v1978, %v1974
        %v1980 = vrot.slane %v1979, 4
        %v1982 = vshll.u32 %v1421, 16
        %v1984 = vrot.slane %v1982, 5
        %v1985 = vsel %vm1433, %v1980, %v1984
        %v1987 = vshrl.u32 %v1381, 16
        %v1989 = vrot.slane %v1987, 4
        %v1990 = vshll.u32 %v1381, 16
        %v1992 = vrot.slane %v1990, 5
        %v1993 = vor.u32 %v1989, %v1992
        %v1994 = vrot.slane %v1993, 4
        %v1996 = vshll.u32 %v1382, 16
        %v1998 = vrot.slane %v1996, 5
        %v1999 = vsel %vm1433, %v1994, %v1998
        %v2000 = vshrl.u32 %v1382, 16
        %v2002 = vrot.slane %v2000, 4
        %v2003 = vor.u32 %v2002, %v1998
        %v2004 = vrot.slane %v2003, 4
        %v2006 = vshll.u32 %v1422, 16
        %v2008 = vrot.slane %v2006, 5
        %v2009 = vsel %vm1433, %v2004, %v2008
        %v2011 = vshrl.u32 %v1383, 16
        %v2013 = vrot.slane %v2011, 4
        %v2014 = vshll.u32 %v1383, 16
        %v2016 = vrot.slane %v2014, 5
        %v2017 = vor.u32 %v2013, %v2016
        %v2018 = vrot.slane %v2017, 4
        %v2020 = vshll.u32 %v1384, 16
        %v2022 = vrot.slane %v2020, 5
        %v2023 = vsel %vm1433, %v2018, %v2022
        %v2024 = vshrl.u32 %v1384, 16
        %v2026 = vrot.slane %v2024, 4
        %v2027 = vor.u32 %v2026, %v2022
        %v2028 = vrot.slane %v2027, 4
        %v2030 = vshll.u32 %v1423, 16
        %v2032 = vrot.slane %v2030, 5
        %v2033 = vsel %vm1433, %v2028, %v2032
        %v2035 = vshrl.u32 %v1385, 16
        %v2037 = vrot.slane %v2035, 4
        %v2038 = vshll.u32 %v1385, 16
        %v2040 = vrot.slane %v2038, 5
        %v2041 = vor.u32 %v2037, %v2040
        %v2042 = vrot.slane %v2041, 4
        %v2044 = vshll.u32 %v1386, 16
        %v2046 = vrot.slane %v2044, 5
        %v2047 = vsel %vm1433, %v2042, %v2046
        %v2048 = vshrl.u32 %v1386, 16
        %v2050 = vrot.slane %v2048, 4
        %v2051 = vor.u32 %v2050, %v2046
        %v2052 = vrot.slane %v2051, 4
        %v2054 = vshll.u32 %v1424, 16
        %v2056 = vrot.slane %v2054, 5
        %v2057 = vsel %vm1433, %v2052, %v2056
        %v2059 = vshrl.u32 %v1387, 16
        %v2061 = vrot.slane %v2059, 4
        %v2062 = vshll.u32 %v1387, 16
        %v2064 = vrot.slane %v2062, 5
        %v2065 = vor.u32 %v2061, %v2064
        %v2066 = vrot.slane %v2065, 4
        %v2068 = vshll.u32 %v1388, 16
        %v2070 = vrot.slane %v2068, 5
        %v2071 = vsel %vm1433, %v2066, %v2070
        %v2072 = vshrl.u32 %v1388, 16
        %v2074 = vrot.slane %v2072, 4
        %v2075 = vor.u32 %v2074, %v2070
        %v2076 = vrot.slane %v2075, 4
        %v2078 = vshll.u32 %v1425, 16
        %v2080 = vrot.slane %v2078, 5
        %v2081 = vsel %vm1433, %v2076, %v2080
        %v2083 = vshrl.u32 %v1389, 16
        %v2085 = vrot.slane %v2083, 4
        %v2086 = vshll.u32 %v1389, 16
        %v2088 = vrot.slane %v2086, 5
        %v2089 = vor.u32 %v2085, %v2088
        %v2090 = vrot.slane %v2089, 4
        %v2092 = vshll.u32 %v1390, 16
        %v2094 = vrot.slane %v2092, 5
        %v2095 = vsel %vm1433, %v2090, %v2094
        %v2096 = vshrl.u32 %v1390, 16
        %v2098 = vrot.slane %v2096, 4
        %v2099 = vor.u32 %v2098, %v2094
        %v2100 = vrot.slane %v2099, 4
        %v2102 = vshll.u32 %v1426, 16
        %v2104 = vrot.slane %v2102, 5
        %v2105 = vsel %vm1433, %v2100, %v2104
        %v2107 = vshrl.u32 %v1391, 16
        %v2109 = vrot.slane %v2107, 4
        %v2110 = vshll.u32 %v1391, 16
        %v2112 = vrot.slane %v2110, 5
        %v2113 = vor.u32 %v2109, %v2112
        %v2114 = vrot.slane %v2113, 4
        %v2116 = vshll.u32 %v1392, 16
        %v2118 = vrot.slane %v2116, 5
        %v2119 = vsel %vm1433, %v2114, %v2118
        %v2120 = vshrl.u32 %v1392, 16
        %v2122 = vrot.slane %v2120, 4
        %v2123 = vor.u32 %v2122, %v2118
        %v2124 = vrot.slane %v2123, 4
        %v2126 = vshll.u32 %v1427, 16
        %v2128 = vrot.slane %v2126, 5
        %v2129 = vsel %vm1433, %v2124, %v2128
        %v2131 = vshrl.u32 %v1393, 16
        %v2133 = vrot.slane %v2131, 4
        %v2134 = vshll.u32 %v1393, 16
        %v2136 = vrot.slane %v2134, 5
        %v2137 = vor.u32 %v2133, %v2136
        %v2138 = vrot.slane %v2137, 4
        %v2140 = vshll.u32 %v1394, 16
        %v2142 = vrot.slane %v2140, 5
        %v2143 = vsel %vm1433, %v2138, %v2142
        %v2144 = vshrl.u32 %v1394, 16
        %v2146 = vrot.slane %v2144, 4
        %v2147 = vor.u32 %v2146, %v2142
        %v2148 = vrot.slane %v2147, 4
        %v2150 = vshll.u32 %v1428, 16
        %v2152 = vrot.slane %v2150, 5
        %v2153 = vsel %vm1433, %v2148, %v2152
        %v2155 = vshrl.u32 %v1395, 16
        %v2157 = vrot.slane %v2155, 4
        %v2158 = vshll.u32 %v1395, 16
        %v2160 = vrot.slane %v2158, 5
        %v2161 = vor.u32 %v2157, %v2160
        %v2162 = vrot.slane %v2161, 4
        %v2164 = vshll.u32 %v1396, 16
        %v2166 = vrot.slane %v2164, 5
        %v2167 = vsel %vm1433, %v2162, %v2166
        %v2168 = vshrl.u32 %v1396, 16
        %v2170 = vrot.slane %v2168, 4
        %v2171 = vor.u32 %v2170, %v2166
        %v2172 = vrot.slane %v2171, 4
        %v2174 = vshll.u32 %v1429, 16
        %v2176 = vrot.slane %v2174, 5
        %v2177 = vsel %vm1433, %v2172, %v2176
        %v2179 = vshrl.u32 %v1397, 16
        %v2181 = vrot.slane %v2179, 4
        %v2182 = vshll.u32 %v1397, 16
        %v2184 = vrot.slane %v2182, 5
        %v2185 = vor.u32 %v2181, %v2184
        %v2186 = vrot.slane %v2185, 4
        %v2188 = vshll.u32 %v1398, 16
        %v2190 = vrot.slane %v2188, 5
        %v2191 = vsel %vm1433, %v2186, %v2190
        %v2192 = vshrl.u32 %v1398, 16
        %v2194 = vrot.slane %v2192, 4
        %v2195 = vor.u32 %v2194, %v2190
        %v2196 = vrot.slane %v2195, 4
        %v2198 = vshll.u32 %v1430, 16
        %v2200 = vrot.slane %v2198, 5
        %v2201 = vsel %vm1433, %v2196, %v2200
        %v2202 = vld [vmem:[#allocation2] sm:$0xe]
        %v2203 = vld [vmem:[#allocation2 + $0xc] sm:$0xe]
        %v2204 = vld [vmem:[#allocation2 + $0x18] sm:$0xe]
        %v2205 = vld [vmem:[#allocation2 + $0x24] sm:$0xe]
        %v2206 = vld [vmem:[#allocation2 + $0x30] sm:$0xe]
        %v2207 = vld [vmem:[#allocation2 + $0x3c] sm:$0xe]
        %v2208 = vld [vmem:[#allocation2 + $0x48] sm:$0xe]
        %v2209 = vld [vmem:[#allocation2 + $0x54] sm:$0xe]
        %v2210 = vld [vmem:[#allocation2 + $0x60] sm:$0xe]
        %v2211 = vld [vmem:[#allocation2 + $0x6c] sm:$0xe]
        %v2212 = vld [vmem:[#allocation2 + $0x78] sm:$0xe]
        %v2213 = vld [vmem:[#allocation2 + $0x84] sm:$0xe]
        %v2214 = vld [vmem:[#allocation2 + $0x90] sm:$0xe]
        %v2215 = vld [vmem:[#allocation2 + $0x9c] sm:$0xe]
        %v2216 = vld [vmem:[#allocation2 + $0xa8] sm:$0xe]
        %v2217 = vld [vmem:[#allocation2 + $0xb4] sm:$0xe]
        %v2218 = vld [vmem:[#allocation2 + $0xd8] sm:$0xe]
        %v2219 = vld [vmem:[#allocation2 + $0xe4] sm:$0xe]
        %v2220 = vld [vmem:[#allocation2 + $0xf0] sm:$0xe]
        %v2221 = vld [vmem:[#allocation2 + $0xfc] sm:$0xe]
        %v2222 = vld [vmem:[#allocation2 + $0x108] sm:$0xe]
        %v2223 = vld [vmem:[#allocation2 + $0x114] sm:$0xe]
        %v2224 = vld [vmem:[#allocation2 + $0x120] sm:$0xe]
        %v2225 = vld [vmem:[#allocation2 + $0x12c] sm:$0xe]
        %v2226 = vld [vmem:[#allocation2 + $0x138] sm:$0xe]
        %v2227 = vld [vmem:[#allocation2 + $0x144] sm:$0xe]
        %v2228 = vld [vmem:[#allocation2 + $0x150] sm:$0xe]
        %v2229 = vld [vmem:[#allocation2 + $0x15c] sm:$0xe]
        %v2230 = vld [vmem:[#allocation2 + $0x168] sm:$0xe]
        %v2231 = vld [vmem:[#allocation2 + $0x174] sm:$0xe]
        %v2232 = vld [vmem:[#allocation2 + $0x180] sm:$0xe]
        %v2233 = vld [vmem:[#allocation2 + $0x18c] sm:$0xe]
        %vm2330 = vcmask 1042432
        %vm2331 = vcmask 1046532
        %vm2332 = vmor %vm2330, %vm2331
        %v2333 = vrot.slane %v2202, 5
        %v2334 = vrot.slane %v2333, 4
        %v2335 = vrot.slane %v1336, 5
        %v2336 = vsel %vm2332, %v2334, %v2335
        %v2337 = vrot.slane %v2335, 4
        %v2338 = vrot.slane %v1399, 5
        %v2339 = vsel %vm2332, %v2337, %v2338
        %v2340 = vrot.slane %v2203, 5
        %v2341 = vrot.slane %v2340, 4
        %v2342 = vrot.slane %v1338, 5
        %v2343 = vsel %vm2332, %v2341, %v2342
        %v2344 = vrot.slane %v2342, 4
        %v2345 = vrot.slane %v1400, 5
        %v2346 = vsel %vm2332, %v2344, %v2345
        %v2347 = vrot.slane %v2204, 5
        %v2348 = vrot.slane %v2347, 4
        %v2349 = vrot.slane %v1340, 5
        %v2350 = vsel %vm2332, %v2348, %v2349
        %v2351 = vrot.slane %v2349, 4
        %v2352 = vrot.slane %v1401, 5
        %v2353 = vsel %vm2332, %v2351, %v2352
        %v2354 = vrot.slane %v2205, 5
        %v2355 = vrot.slane %v2354, 4
        %v2356 = vrot.slane %v1342, 5
        %v2357 = vsel %vm2332, %v2355, %v2356
        %v2358 = vrot.slane %v2356, 4
        %v2359 = vrot.slane %v1402, 5
        %v2360 = vsel %vm2332, %v2358, %v2359
        %v2361 = vrot.slane %v2206, 5
        %v2362 = vrot.slane %v2361, 4
        %v2363 = vrot.slane %v1344, 5
        %v2364 = vsel %vm2332, %v2362, %v2363
        %v2365 = vrot.slane %v2363, 4
        %v2366 = vrot.slane %v1403, 5
        %v2367 = vsel %vm2332, %v2365, %v2366
        %v2368 = vrot.slane %v2207, 5
        %v2369 = vrot.slane %v2368, 4
        %v2370 = vrot.slane %v1346, 5
        %v2371 = vsel %vm2332, %v2369, %v2370
        %v2372 = vrot.slane %v2370, 4
        %v2373 = vrot.slane %v1404, 5
        %v2374 = vsel %vm2332, %v2372, %v2373
        %v2375 = vrot.slane %v2208, 5
        %v2376 = vrot.slane %v2375, 4
        %v2377 = vrot.slane %v1348, 5
        %v2378 = vsel %vm2332, %v2376, %v2377
        %v2379 = vrot.slane %v2377, 4
        %v2380 = vrot.slane %v1405, 5
        %v2381 = vsel %vm2332, %v2379, %v2380
        %v2382 = vrot.slane %v2209, 5
        %v2383 = vrot.slane %v2382, 4
        %v2384 = vrot.slane %v1350, 5
        %v2385 = vsel %vm2332, %v2383, %v2384
        %v2386 = vrot.slane %v2384, 4
        %v2387 = vrot.slane %v1406, 5
        %v2388 = vsel %vm2332, %v2386, %v2387
        %v2389 = vrot.slane %v2210, 5
        %v2390 = vrot.slane %v2389, 4
        %v2391 = vrot.slane %v1352, 5
        %v2392 = vsel %vm2332, %v2390, %v2391
        %v2393 = vrot.slane %v2391, 4
        %v2394 = vrot.slane %v1407, 5
        %v2395 = vsel %vm2332, %v2393, %v2394
        %v2396 = vrot.slane %v2211, 5
        %v2397 = vrot.slane %v2396, 4
        %v2398 = vrot.slane %v1354, 5
        %v2399 = vsel %vm2332, %v2397, %v2398
        %v2400 = vrot.slane %v2398, 4
        %v2401 = vrot.slane %v1408, 5
        %v2402 = vsel %vm2332, %v2400, %v2401
        %v2403 = vrot.slane %v2212, 5
        %v2404 = vrot.slane %v2403, 4
        %v2405 = vrot.slane %v1356, 5
        %v2406 = vsel %vm2332, %v2404, %v2405
        %v2407 = vrot.slane %v2405, 4
        %v2408 = vrot.slane %v1409, 5
        %v2409 = vsel %vm2332, %v2407, %v2408
        %v2410 = vrot.slane %v2213, 5
        %v2411 = vrot.slane %v2410, 4
        %v2412 = vrot.slane %v1358, 5
        %v2413 = vsel %vm2332, %v2411, %v2412
        %v2414 = vrot.slane %v2412, 4
        %v2415 = vrot.slane %v1410, 5
        %v2416 = vsel %vm2332, %v2414, %v2415
        %v2417 = vrot.slane %v2214, 5
        %v2418 = vrot.slane %v2417, 4
        %v2419 = vrot.slane %v1360, 5
        %v2420 = vsel %vm2332, %v2418, %v2419
        %v2421 = vrot.slane %v2419, 4
        %v2422 = vrot.slane %v1411, 5
        %v2423 = vsel %vm2332, %v2421, %v2422
        %v2424 = vrot.slane %v2215, 5
        %v2425 = vrot.slane %v2424, 4
        %v2426 = vrot.slane %v1362, 5
        %v2427 = vsel %vm2332, %v2425, %v2426
        %v2428 = vrot.slane %v2426, 4
        %v2429 = vrot.slane %v1412, 5
        %v2430 = vsel %vm2332, %v2428, %v2429
        %v2431 = vrot.slane %v2216, 5
        %v2432 = vrot.slane %v2431, 4
        %v2433 = vrot.slane %v1364, 5
        %v2434 = vsel %vm2332, %v2432, %v2433
        %v2435 = vrot.slane %v2433, 4
        %v2436 = vrot.slane %v1413, 5
        %v2437 = vsel %vm2332, %v2435, %v2436
        %v2438 = vrot.slane %v2217, 5
        %v2439 = vrot.slane %v2438, 4
        %v2440 = vrot.slane %v1366, 5
        %v2441 = vsel %vm2332, %v2439, %v2440
        %v2442 = vrot.slane %v2440, 4
        %v2443 = vrot.slane %v1414, 5
        %v2444 = vsel %vm2332, %v2442, %v2443
        %v2445 = vrot.slane %v2218, 5
        %v2446 = vrot.slane %v2445, 4
        %v2447 = vrot.slane %v1368, 5
        %v2448 = vsel %vm2332, %v2446, %v2447
        %v2449 = vrot.slane %v2447, 4
        %v2450 = vrot.slane %v1415, 5
        %v2451 = vsel %vm2332, %v2449, %v2450
        %v2452 = vrot.slane %v2219, 5
        %v2453 = vrot.slane %v2452, 4
        %v2454 = vrot.slane %v1370, 5
        %v2455 = vsel %vm2332, %v2453, %v2454
        %v2456 = vrot.slane %v2454, 4
        %v2457 = vrot.slane %v1416, 5
        %v2458 = vsel %vm2332, %v2456, %v2457
        %v2459 = vrot.slane %v2220, 5
        %v2460 = vrot.slane %v2459, 4
        %v2461 = vrot.slane %v1372, 5
        %v2462 = vsel %vm2332, %v2460, %v2461
        %v2463 = vrot.slane %v2461, 4
        %v2464 = vrot.slane %v1417, 5
        %v2465 = vsel %vm2332, %v2463, %v2464
        %v2466 = vrot.slane %v2221, 5
        %v2467 = vrot.slane %v2466, 4
        %v2468 = vrot.slane %v1374, 5
        %v2469 = vsel %vm2332, %v2467, %v2468
        %v2470 = vrot.slane %v2468, 4
        %v2471 = vrot.slane %v1418, 5
        %v2472 = vsel %vm2332, %v2470, %v2471
        %v2473 = vrot.slane %v2222, 5
        %v2474 = vrot.slane %v2473, 4
        %v2475 = vrot.slane %v1376, 5
        %v2476 = vsel %vm2332, %v2474, %v2475
        %v2477 = vrot.slane %v2475, 4
        %v2478 = vrot.slane %v1419, 5
        %v2479 = vsel %vm2332, %v2477, %v2478
        %v2480 = vrot.slane %v2223, 5
        %v2481 = vrot.slane %v2480, 4
        %v2482 = vrot.slane %v1378, 5
        %v2483 = vsel %vm2332, %v2481, %v2482
        %v2484 = vrot.slane %v2482, 4
        %v2485 = vrot.slane %v1420, 5
        %v2486 = vsel %vm2332, %v2484, %v2485
        %v2487 = vrot.slane %v2224, 5
        %v2488 = vrot.slane %v2487, 4
        %v2489 = vrot.slane %v1380, 5
        %v2490 = vsel %vm2332, %v2488, %v2489
        %v2491 = vrot.slane %v2489, 4
        %v2492 = vrot.slane %v1421, 5
        %v2493 = vsel %vm2332, %v2491, %v2492
        %v2494 = vrot.slane %v2225, 5
        %v2495 = vrot.slane %v2494, 4
        %v2496 = vrot.slane %v1382, 5
        %v2497 = vsel %vm2332, %v2495, %v2496
        %v2498 = vrot.slane %v2496, 4
        %v2499 = vrot.slane %v1422, 5
        %v2500 = vsel %vm2332, %v2498, %v2499
        %v2501 = vrot.slane %v2226, 5
        %v2502 = vrot.slane %v2501, 4
        %v2503 = vrot.slane %v1384, 5
        %v2504 = vsel %vm2332, %v2502, %v2503
        %v2505 = vrot.slane %v2503, 4
        %v2506 = vrot.slane %v1423, 5
        %v2507 = vsel %vm2332, %v2505, %v2506
        %v2508 = vrot.slane %v2227, 5
        %v2509 = vrot.slane %v2508, 4
        %v2510 = vrot.slane %v1386, 5
        %v2511 = vsel %vm2332, %v2509, %v2510
        %v2512 = vrot.slane %v2510, 4
        %v2513 = vrot.slane %v1424, 5
        %v2514 = vsel %vm2332, %v2512, %v2513
        %v2515 = vrot.slane %v2228, 5
        %v2516 = vrot.slane %v2515, 4
        %v2517 = vrot.slane %v1388, 5
        %v2518 = vsel %vm2332, %v2516, %v2517
        %v2519 = vrot.slane %v2517, 4
        %v2520 = vrot.slane %v1425, 5
        %v2521 = vsel %vm2332, %v2519, %v2520
        %v2522 = vrot.slane %v2229, 5
        %v2523 = vrot.slane %v2522, 4
        %v2524 = vrot.slane %v1390, 5
        %v2525 = vsel %vm2332, %v2523, %v2524
        %v2526 = vrot.slane %v2524, 4
        %v2527 = vrot.slane %v1426, 5
        %v2528 = vsel %vm2332, %v2526, %v2527
        %v2529 = vrot.slane %v2230, 5
        %v2530 = vrot.slane %v2529, 4
        %v2531 = vrot.slane %v1392, 5
        %v2532 = vsel %vm2332, %v2530, %v2531
        %v2533 = vrot.slane %v2531, 4
        %v2534 = vrot.slane %v1427, 5
        %v2535 = vsel %vm2332, %v2533, %v2534
        %v2536 = vrot.slane %v2231, 5
        %v2537 = vrot.slane %v2536, 4
        %v2538 = vrot.slane %v1394, 5
        %v2539 = vsel %vm2332, %v2537, %v2538
        %v2540 = vrot.slane %v2538, 4
        %v2541 = vrot.slane %v1428, 5
        %v2542 = vsel %vm2332, %v2540, %v2541
        %v2543 = vrot.slane %v2232, 5
        %v2544 = vrot.slane %v2543, 4
        %v2545 = vrot.slane %v1396, 5
        %v2546 = vsel %vm2332, %v2544, %v2545
        %v2547 = vrot.slane %v2545, 4
        %v2548 = vrot.slane %v1429, 5
        %v2549 = vsel %vm2332, %v2547, %v2548
        %v2550 = vrot.slane %v2233, 5
        %v2551 = vrot.slane %v2550, 4
        %v2552 = vrot.slane %v1398, 5
        %v2553 = vsel %vm2332, %v2551, %v2552
        %v2554 = vrot.slane %v2552, 4
        %v2555 = vrot.slane %v1430, 5
        %v2556 = vsel %vm2332, %v2554, %v2555
        %v2557 = vld [vmem:[%s1108] sm:$0xf]
        %v2558 = vld [vmem:[%s1108 + $0x4] sm:$0xf]
        %v2559 = vld [vmem:[%s1108 + $0xc] sm:$0xf]
        %v2560 = vld [vmem:[%s1108 + $0x10] sm:$0xf]
        %v2561 = vld [vmem:[%s1108 + $0x18] sm:$0xf]
        %v2562 = vld [vmem:[%s1108 + $0x1c] sm:$0xf]
        %v2563 = vld [vmem:[%s1108 + $0x24] sm:$0xf]
        %v2564 = vld [vmem:[%s1108 + $0x28] sm:$0xf]
        %v2565 = vld [vmem:[%s1108 + $0x30] sm:$0xf]
        %v2566 = vld [vmem:[%s1108 + $0x34] sm:$0xf]
        %v2567 = vld [vmem:[%s1108 + $0x3c] sm:$0xf]
        %v2568 = vld [vmem:[%s1108 + $0x40] sm:$0xf]
        %v2569 = vld [vmem:[%s1108 + $0x48] sm:$0xf]
        %v2570 = vld [vmem:[%s1108 + $0x4c] sm:$0xf]
        %v2571 = vld [vmem:[%s1108 + $0x54] sm:$0xf]
        %v2572 = vld [vmem:[%s1108 + $0x58] sm:$0xf]
        %v2573 = vld [vmem:[%s1108 + $0x60] sm:$0xf]
        %v2574 = vld [vmem:[%s1108 + $0x64] sm:$0xf]
        %v2575 = vld [vmem:[%s1108 + $0x6c] sm:$0xf]
        %v2576 = vld [vmem:[%s1108 + $0x70] sm:$0xf]
        %v2577 = vld [vmem:[%s1108 + $0x78] sm:$0xf]
        %v2578 = vld [vmem:[%s1108 + $0x7c] sm:$0xf]
        %v2579 = vld [vmem:[%s1108 + $0x84] sm:$0xf]
        %v2580 = vld [vmem:[%s1108 + $0x88] sm:$0xf]
        %v2581 = vld [vmem:[%s1108 + $0x90] sm:$0xf]
        %v2582 = vld [vmem:[%s1108 + $0x94] sm:$0xf]
        %v2583 = vld [vmem:[%s1108 + $0x9c] sm:$0xf]
        %v2584 = vld [vmem:[%s1108 + $0xa0] sm:$0xf]
        %v2585 = vld [vmem:[%s1108 + $0xa8] sm:$0xf]
        %v2586 = vld [vmem:[%s1108 + $0xac] sm:$0xf]
        %v2587 = vld [vmem:[%s1108 + $0xb4] sm:$0xf]
        %v2588 = vld [vmem:[%s1108 + $0xb8] sm:$0xf]
        %v2589 = vld [vmem:[%s1108 + $0xd8] sm:$0xf]
        %v2590 = vld [vmem:[%s1108 + $0xdc] sm:$0xf]
        %v2591 = vld [vmem:[%s1108 + $0xe4] sm:$0xf]
        %v2592 = vld [vmem:[%s1108 + $0xe8] sm:$0xf]
        %v2593 = vld [vmem:[%s1108 + $0xf0] sm:$0xf]
        %v2594 = vld [vmem:[%s1108 + $0xf4] sm:$0xf]
        %v2595 = vld [vmem:[%s1108 + $0xfc] sm:$0xf]
        %v2596 = vld [vmem:[%s1108 + $0x100] sm:$0xf]
        %v2597 = vld [vmem:[%s1108 + $0x108] sm:$0xf]
        %v2598 = vld [vmem:[%s1108 + $0x10c] sm:$0xf]
        %v2599 = vld [vmem:[%s1108 + $0x114] sm:$0xf]
        %v2600 = vld [vmem:[%s1108 + $0x118] sm:$0xf]
        %v2601 = vld [vmem:[%s1108 + $0x120] sm:$0xf]
        %v2602 = vld [vmem:[%s1108 + $0x124] sm:$0xf]
        %v2603 = vld [vmem:[%s1108 + $0x12c] sm:$0xf]
        %v2604 = vld [vmem:[%s1108 + $0x130] sm:$0xf]
        %v2605 = vld [vmem:[%s1108 + $0x138] sm:$0xf]
        %v2606 = vld [vmem:[%s1108 + $0x13c] sm:$0xf]
        %v2607 = vld [vmem:[%s1108 + $0x144] sm:$0xf]
        %v2608 = vld [vmem:[%s1108 + $0x148] sm:$0xf]
        %v2609 = vld [vmem:[%s1108 + $0x150] sm:$0xf]
        %v2610 = vld [vmem:[%s1108 + $0x154] sm:$0xf]
        %v2611 = vld [vmem:[%s1108 + $0x15c] sm:$0xf]
        %v2612 = vld [vmem:[%s1108 + $0x160] sm:$0xf]
        %v2613 = vld [vmem:[%s1108 + $0x168] sm:$0xf]
        %v2614 = vld [vmem:[%s1108 + $0x16c] sm:$0xf]
        %v2615 = vld [vmem:[%s1108 + $0x174] sm:$0xf]
        %v2616 = vld [vmem:[%s1108 + $0x178] sm:$0xf]
        %v2617 = vld [vmem:[%s1108 + $0x180] sm:$0xf]
        %v2618 = vld [vmem:[%s1108 + $0x184] sm:$0xf]
        %v2619 = vld [vmem:[%s1108 + $0x18c] sm:$0xf]
        %v2620 = vld [vmem:[%s1108 + $0x190] sm:$0xf]
        %v2621 = vld [vmem:[%s1108 + $0x8] sm:$0x1]
        %v2622 = vld [vmem:[%s1108 + $0x14] sm:$0x1]
        %v2623 = vld [vmem:[%s1108 + $0x20] sm:$0x1]
        %v2624 = vld [vmem:[%s1108 + $0x2c] sm:$0x1]
        %v2625 = vld [vmem:[%s1108 + $0x38] sm:$0x1]
        %v2626 = vld [vmem:[%s1108 + $0x44] sm:$0x1]
        %v2627 = vld [vmem:[%s1108 + $0x50] sm:$0x1]
        %v2628 = vld [vmem:[%s1108 + $0x5c] sm:$0x1]
        %v2629 = vld [vmem:[%s1108 + $0x68] sm:$0x1]
        %v2630 = vld [vmem:[%s1108 + $0x74] sm:$0x1]
        %v2631 = vld [vmem:[%s1108 + $0x80] sm:$0x1]
        %v2632 = vld [vmem:[%s1108 + $0x8c] sm:$0x1]
        %v2633 = vld [vmem:[%s1108 + $0x98] sm:$0x1]
        %v2634 = vld [vmem:[%s1108 + $0xa4] sm:$0x1]
        %v2635 = vld [vmem:[%s1108 + $0xb0] sm:$0x1]
        %v2636 = vld [vmem:[%s1108 + $0xbc] sm:$0x1]
        %v2637 = vld [vmem:[%s1108 + $0xe0] sm:$0x1]
        %v2638 = vld [vmem:[%s1108 + $0xec] sm:$0x1]
        %v2639 = vld [vmem:[%s1108 + $0xf8] sm:$0x1]
        %v2640 = vld [vmem:[%s1108 + $0x104] sm:$0x1]
        %v2641 = vld [vmem:[%s1108 + $0x110] sm:$0x1]
        %v2642 = vld [vmem:[%s1108 + $0x11c] sm:$0x1]
        %v2643 = vld [vmem:[%s1108 + $0x128] sm:$0x1]
        %v2644 = vld [vmem:[%s1108 + $0x134] sm:$0x1]
        %v2645 = vld [vmem:[%s1108 + $0x140] sm:$0x1]
        %v2646 = vld [vmem:[%s1108 + $0x14c] sm:$0x1]
        %v2647 = vld [vmem:[%s1108 + $0x158] sm:$0x1]
        %v2648 = vld [vmem:[%s1108 + $0x164] sm:$0x1]
        %v2649 = vld [vmem:[%s1108 + $0x170] sm:$0x1]
        %v2650 = vld [vmem:[%s1108 + $0x17c] sm:$0x1]
        %v2651 = vld [vmem:[%s1108 + $0x188] sm:$0x1]
        %v2652 = vld [vmem:[%s1108 + $0x194] sm:$0x1]
        %v2654 = vshrl.u32 %v2557, 16
        %v2656 = vrot.slane %v2654, 4
        %v2657 = vshll.u32 %v2557, 16
        %v2659 = vrot.slane %v2657, 5
        %v2660 = vor.u32 %v2656, %v2659
        %v2661 = vrot.slane %v2660, 4
        %v2663 = vshll.u32 %v2558, 16
        %v2665 = vrot.slane %v2663, 5
        %v2666 = vsel %vm1433, %v2661, %v2665
        %v2667 = vshrl.u32 %v2558, 16
        %v2669 = vrot.slane %v2667, 4
        %v2670 = vor.u32 %v2669, %v2665
        %v2671 = vrot.slane %v2670, 4
        %v2673 = vshll.u32 %v2621, 16
        %v2675 = vrot.slane %v2673, 5
        %v2676 = vsel %vm1433, %v2671, %v2675
        %v2678 = vshrl.u32 %v2559, 16
        %v2680 = vrot.slane %v2678, 4
        %v2681 = vshll.u32 %v2559, 16
        %v2683 = vrot.slane %v2681, 5
        %v2684 = vor.u32 %v2680, %v2683
        %v2685 = vrot.slane %v2684, 4
        %v2687 = vshll.u32 %v2560, 16
        %v2689 = vrot.slane %v2687, 5
        %v2690 = vsel %vm1433, %v2685, %v2689
        %v2691 = vshrl.u32 %v2560, 16
        %v2693 = vrot.slane %v2691, 4
        %v2694 = vor.u32 %v2693, %v2689
        %v2695 = vrot.slane %v2694, 4
        %v2697 = vshll.u32 %v2622, 16
        %v2699 = vrot.slane %v2697, 5
        %v2700 = vsel %vm1433, %v2695, %v2699
        %v2702 = vshrl.u32 %v2561, 16
        %v2704 = vrot.slane %v2702, 4
        %v2705 = vshll.u32 %v2561, 16
        %v2707 = vrot.slane %v2705, 5
        %v2708 = vor.u32 %v2704, %v2707
        %v2709 = vrot.slane %v2708, 4
        %v2711 = vshll.u32 %v2562, 16
        %v2713 = vrot.slane %v2711, 5
        %v2714 = vsel %vm1433, %v2709, %v2713
        %v2715 = vshrl.u32 %v2562, 16
        %v2717 = vrot.slane %v2715, 4
        %v2718 = vor.u32 %v2717, %v2713
        %v2719 = vrot.slane %v2718, 4
        %v2721 = vshll.u32 %v2623, 16
        %v2723 = vrot.slane %v2721, 5
        %v2724 = vsel %vm1433, %v2719, %v2723
        %v2726 = vshrl.u32 %v2563, 16
        %v2728 = vrot.slane %v2726, 4
        %v2729 = vshll.u32 %v2563, 16
        %v2731 = vrot.slane %v2729, 5
        %v2732 = vor.u32 %v2728, %v2731
        %v2733 = vrot.slane %v2732, 4
        %v2735 = vshll.u32 %v2564, 16
        %v2737 = vrot.slane %v2735, 5
        %v2738 = vsel %vm1433, %v2733, %v2737
        %v2739 = vshrl.u32 %v2564, 16
        %v2741 = vrot.slane %v2739, 4
        %v2742 = vor.u32 %v2741, %v2737
        %v2743 = vrot.slane %v2742, 4
        %v2745 = vshll.u32 %v2624, 16
        %v2747 = vrot.slane %v2745, 5
        %v2748 = vsel %vm1433, %v2743, %v2747
        %v2750 = vshrl.u32 %v2565, 16
        %v2752 = vrot.slane %v2750, 4
        %v2753 = vshll.u32 %v2565, 16
        %v2755 = vrot.slane %v2753, 5
        %v2756 = vor.u32 %v2752, %v2755
        %v2757 = vrot.slane %v2756, 4
        %v2759 = vshll.u32 %v2566, 16
        %v2761 = vrot.slane %v2759, 5
        %v2762 = vsel %vm1433, %v2757, %v2761
        %v2763 = vshrl.u32 %v2566, 16
        %v2765 = vrot.slane %v2763, 4
        %v2766 = vor.u32 %v2765, %v2761
        %v2767 = vrot.slane %v2766, 4
        %v2769 = vshll.u32 %v2625, 16
        %v2771 = vrot.slane %v2769, 5
        %v2772 = vsel %vm1433, %v2767, %v2771
        %v2774 = vshrl.u32 %v2567, 16
        %v2776 = vrot.slane %v2774, 4
        %v2777 = vshll.u32 %v2567, 16
        %v2779 = vrot.slane %v2777, 5
        %v2780 = vor.u32 %v2776, %v2779
        %v2781 = vrot.slane %v2780, 4
        %v2783 = vshll.u32 %v2568, 16
        %v2785 = vrot.slane %v2783, 5
        %v2786 = vsel %vm1433, %v2781, %v2785
        %v2787 = vshrl.u32 %v2568, 16
        %v2789 = vrot.slane %v2787, 4
        %v2790 = vor.u32 %v2789, %v2785
        %v2791 = vrot.slane %v2790, 4
        %v2793 = vshll.u32 %v2626, 16
        %v2795 = vrot.slane %v2793, 5
        %v2796 = vsel %vm1433, %v2791, %v2795
        %v2798 = vshrl.u32 %v2569, 16
        %v2800 = vrot.slane %v2798, 4
        %v2801 = vshll.u32 %v2569, 16
        %v2803 = vrot.slane %v2801, 5
        %v2804 = vor.u32 %v2800, %v2803
        %v2805 = vrot.slane %v2804, 4
        %v2807 = vshll.u32 %v2570, 16
        %v2809 = vrot.slane %v2807, 5
        %v2810 = vsel %vm1433, %v2805, %v2809
        %v2811 = vshrl.u32 %v2570, 16
        %v2813 = vrot.slane %v2811, 4
        %v2814 = vor.u32 %v2813, %v2809
        %v2815 = vrot.slane %v2814, 4
        %v2817 = vshll.u32 %v2627, 16
        %v2819 = vrot.slane %v2817, 5
        %v2820 = vsel %vm1433, %v2815, %v2819
        %v2822 = vshrl.u32 %v2571, 16
        %v2824 = vrot.slane %v2822, 4
        %v2825 = vshll.u32 %v2571, 16
        %v2827 = vrot.slane %v2825, 5
        %v2828 = vor.u32 %v2824, %v2827
        %v2829 = vrot.slane %v2828, 4
        %v2831 = vshll.u32 %v2572, 16
        %v2833 = vrot.slane %v2831, 5
        %v2834 = vsel %vm1433, %v2829, %v2833
        %v2835 = vshrl.u32 %v2572, 16
        %v2837 = vrot.slane %v2835, 4
        %v2838 = vor.u32 %v2837, %v2833
        %v2839 = vrot.slane %v2838, 4
        %v2841 = vshll.u32 %v2628, 16
        %v2843 = vrot.slane %v2841, 5
        %v2844 = vsel %vm1433, %v2839, %v2843
        %v2846 = vshrl.u32 %v2573, 16
        %v2848 = vrot.slane %v2846, 4
        %v2849 = vshll.u32 %v2573, 16
        %v2851 = vrot.slane %v2849, 5
        %v2852 = vor.u32 %v2848, %v2851
        %v2853 = vrot.slane %v2852, 4
        %v2855 = vshll.u32 %v2574, 16
        %v2857 = vrot.slane %v2855, 5
        %v2858 = vsel %vm1433, %v2853, %v2857
        %v2859 = vshrl.u32 %v2574, 16
        %v2861 = vrot.slane %v2859, 4
        %v2862 = vor.u32 %v2861, %v2857
        %v2863 = vrot.slane %v2862, 4
        %v2865 = vshll.u32 %v2629, 16
        %v2867 = vrot.slane %v2865, 5
        %v2868 = vsel %vm1433, %v2863, %v2867
        %v2870 = vshrl.u32 %v2575, 16
        %v2872 = vrot.slane %v2870, 4
        %v2873 = vshll.u32 %v2575, 16
        %v2875 = vrot.slane %v2873, 5
        %v2876 = vor.u32 %v2872, %v2875
        %v2877 = vrot.slane %v2876, 4
        %v2879 = vshll.u32 %v2576, 16
        %v2881 = vrot.slane %v2879, 5
        %v2882 = vsel %vm1433, %v2877, %v2881
        %v2883 = vshrl.u32 %v2576, 16
        %v2885 = vrot.slane %v2883, 4
        %v2886 = vor.u32 %v2885, %v2881
        %v2887 = vrot.slane %v2886, 4
        %v2889 = vshll.u32 %v2630, 16
        %v2891 = vrot.slane %v2889, 5
        %v2892 = vsel %vm1433, %v2887, %v2891
        %v2894 = vshrl.u32 %v2577, 16
        %v2896 = vrot.slane %v2894, 4
        %v2897 = vshll.u32 %v2577, 16
        %v2899 = vrot.slane %v2897, 5
        %v2900 = vor.u32 %v2896, %v2899
        %v2901 = vrot.slane %v2900, 4
        %v2903 = vshll.u32 %v2578, 16
        %v2905 = vrot.slane %v2903, 5
        %v2906 = vsel %vm1433, %v2901, %v2905
        %v2907 = vshrl.u32 %v2578, 16
        %v2909 = vrot.slane %v2907, 4
        %v2910 = vor.u32 %v2909, %v2905
        %v2911 = vrot.slane %v2910, 4
        %v2913 = vshll.u32 %v2631, 16
        %v2915 = vrot.slane %v2913, 5
        %v2916 = vsel %vm1433, %v2911, %v2915
        %v2918 = vshrl.u32 %v2579, 16
        %v2920 = vrot.slane %v2918, 4
        %v2921 = vshll.u32 %v2579, 16
        %v2923 = vrot.slane %v2921, 5
        %v2924 = vor.u32 %v2920, %v2923
        %v2925 = vrot.slane %v2924, 4
        %v2927 = vshll.u32 %v2580, 16
        %v2929 = vrot.slane %v2927, 5
        %v2930 = vsel %vm1433, %v2925, %v2929
        %v2931 = vshrl.u32 %v2580, 16
        %v2933 = vrot.slane %v2931, 4
        %v2934 = vor.u32 %v2933, %v2929
        %v2935 = vrot.slane %v2934, 4
        %v2937 = vshll.u32 %v2632, 16
        %v2939 = vrot.slane %v2937, 5
        %v2940 = vsel %vm1433, %v2935, %v2939
        %v2942 = vshrl.u32 %v2581, 16
        %v2944 = vrot.slane %v2942, 4
        %v2945 = vshll.u32 %v2581, 16
        %v2947 = vrot.slane %v2945, 5
        %v2948 = vor.u32 %v2944, %v2947
        %v2949 = vrot.slane %v2948, 4
        %v2951 = vshll.u32 %v2582, 16
        %v2953 = vrot.slane %v2951, 5
        %v2954 = vsel %vm1433, %v2949, %v2953
        %v2955 = vshrl.u32 %v2582, 16
        %v2957 = vrot.slane %v2955, 4
        %v2958 = vor.u32 %v2957, %v2953
        %v2959 = vrot.slane %v2958, 4
        %v2961 = vshll.u32 %v2633, 16
        %v2963 = vrot.slane %v2961, 5
        %v2964 = vsel %vm1433, %v2959, %v2963
        %v2966 = vshrl.u32 %v2583, 16
        %v2968 = vrot.slane %v2966, 4
        %v2969 = vshll.u32 %v2583, 16
        %v2971 = vrot.slane %v2969, 5
        %v2972 = vor.u32 %v2968, %v2971
        %v2973 = vrot.slane %v2972, 4
        %v2975 = vshll.u32 %v2584, 16
        %v2977 = vrot.slane %v2975, 5
        %v2978 = vsel %vm1433, %v2973, %v2977
        %v2979 = vshrl.u32 %v2584, 16
        %v2981 = vrot.slane %v2979, 4
        %v2982 = vor.u32 %v2981, %v2977
        %v2983 = vrot.slane %v2982, 4
        %v2985 = vshll.u32 %v2634, 16
        %v2987 = vrot.slane %v2985, 5
        %v2988 = vsel %vm1433, %v2983, %v2987
        %v2990 = vshrl.u32 %v2585, 16
        %v2992 = vrot.slane %v2990, 4
        %v2993 = vshll.u32 %v2585, 16
        %v2995 = vrot.slane %v2993, 5
        %v2996 = vor.u32 %v2992, %v2995
        %v2997 = vrot.slane %v2996, 4
        %v2999 = vshll.u32 %v2586, 16
        %v3001 = vrot.slane %v2999, 5
        %v3002 = vsel %vm1433, %v2997, %v3001
        %v3003 = vshrl.u32 %v2586, 16
        %v3005 = vrot.slane %v3003, 4
        %v3006 = vor.u32 %v3005, %v3001
        %v3007 = vrot.slane %v3006, 4
        %v3009 = vshll.u32 %v2635, 16
        %v3011 = vrot.slane %v3009, 5
        %v3012 = vsel %vm1433, %v3007, %v3011
        %v3014 = vshrl.u32 %v2587, 16
        %v3016 = vrot.slane %v3014, 4
        %v3017 = vshll.u32 %v2587, 16
        %v3019 = vrot.slane %v3017, 5
        %v3020 = vor.u32 %v3016, %v3019
        %v3021 = vrot.slane %v3020, 4
        %v3023 = vshll.u32 %v2588, 16
        %v3025 = vrot.slane %v3023, 5
        %v3026 = vsel %vm1433, %v3021, %v3025
        %v3027 = vshrl.u32 %v2588, 16
        %v3029 = vrot.slane %v3027, 4
        %v3030 = vor.u32 %v3029, %v3025
        %v3031 = vrot.slane %v3030, 4
        %v3033 = vshll.u32 %v2636, 16
        %v3035 = vrot.slane %v3033, 5
        %v3036 = vsel %vm1433, %v3031, %v3035
        %v3038 = vshrl.u32 %v2589, 16
        %v3040 = vrot.slane %v3038, 4
        %v3041 = vshll.u32 %v2589, 16
        %v3043 = vrot.slane %v3041, 5
        %v3044 = vor.u32 %v3040, %v3043
        %v3045 = vrot.slane %v3044, 4
        %v3047 = vshll.u32 %v2590, 16
        %v3049 = vrot.slane %v3047, 5
        %v3050 = vsel %vm1433, %v3045, %v3049
        %v3051 = vshrl.u32 %v2590, 16
        %v3053 = vrot.slane %v3051, 4
        %v3054 = vor.u32 %v3053, %v3049
        %v3055 = vrot.slane %v3054, 4
        %v3057 = vshll.u32 %v2637, 16
        %v3059 = vrot.slane %v3057, 5
        %v3060 = vsel %vm1433, %v3055, %v3059
        %v3062 = vshrl.u32 %v2591, 16
        %v3064 = vrot.slane %v3062, 4
        %v3065 = vshll.u32 %v2591, 16
        %v3067 = vrot.slane %v3065, 5
        %v3068 = vor.u32 %v3064, %v3067
        %v3069 = vrot.slane %v3068, 4
        %v3071 = vshll.u32 %v2592, 16
        %v3073 = vrot.slane %v3071, 5
        %v3074 = vsel %vm1433, %v3069, %v3073
        %v3075 = vshrl.u32 %v2592, 16
        %v3077 = vrot.slane %v3075, 4
        %v3078 = vor.u32 %v3077, %v3073
        %v3079 = vrot.slane %v3078, 4
        %v3081 = vshll.u32 %v2638, 16
        %v3083 = vrot.slane %v3081, 5
        %v3084 = vsel %vm1433, %v3079, %v3083
        %v3086 = vshrl.u32 %v2593, 16
        %v3088 = vrot.slane %v3086, 4
        %v3089 = vshll.u32 %v2593, 16
        %v3091 = vrot.slane %v3089, 5
        %v3092 = vor.u32 %v3088, %v3091
        %v3093 = vrot.slane %v3092, 4
        %v3095 = vshll.u32 %v2594, 16
        %v3097 = vrot.slane %v3095, 5
        %v3098 = vsel %vm1433, %v3093, %v3097
        %v3099 = vshrl.u32 %v2594, 16
        %v3101 = vrot.slane %v3099, 4
        %v3102 = vor.u32 %v3101, %v3097
        %v3103 = vrot.slane %v3102, 4
        %v3105 = vshll.u32 %v2639, 16
        %v3107 = vrot.slane %v3105, 5
        %v3108 = vsel %vm1433, %v3103, %v3107
        %v3110 = vshrl.u32 %v2595, 16
        %v3112 = vrot.slane %v3110, 4
        %v3113 = vshll.u32 %v2595, 16
        %v3115 = vrot.slane %v3113, 5
        %v3116 = vor.u32 %v3112, %v3115
        %v3117 = vrot.slane %v3116, 4
        %v3119 = vshll.u32 %v2596, 16
        %v3121 = vrot.slane %v3119, 5
        %v3122 = vsel %vm1433, %v3117, %v3121
        %v3123 = vshrl.u32 %v2596, 16
        %v3125 = vrot.slane %v3123, 4
        %v3126 = vor.u32 %v3125, %v3121
        %v3127 = vrot.slane %v3126, 4
        %v3129 = vshll.u32 %v2640, 16
        %v3131 = vrot.slane %v3129, 5
        %v3132 = vsel %vm1433, %v3127, %v3131
        %v3134 = vshrl.u32 %v2597, 16
        %v3136 = vrot.slane %v3134, 4
        %v3137 = vshll.u32 %v2597, 16
        %v3139 = vrot.slane %v3137, 5
        %v3140 = vor.u32 %v3136, %v3139
        %v3141 = vrot.slane %v3140, 4
        %v3143 = vshll.u32 %v2598, 16
        %v3145 = vrot.slane %v3143, 5
        %v3146 = vsel %vm1433, %v3141, %v3145
        %v3147 = vshrl.u32 %v2598, 16
        %v3149 = vrot.slane %v3147, 4
        %v3150 = vor.u32 %v3149, %v3145
        %v3151 = vrot.slane %v3150, 4
        %v3153 = vshll.u32 %v2641, 16
        %v3155 = vrot.slane %v3153, 5
        %v3156 = vsel %vm1433, %v3151, %v3155
        %v3158 = vshrl.u32 %v2599, 16
        %v3160 = vrot.slane %v3158, 4
        %v3161 = vshll.u32 %v2599, 16
        %v3163 = vrot.slane %v3161, 5
        %v3164 = vor.u32 %v3160, %v3163
        %v3165 = vrot.slane %v3164, 4
        %v3167 = vshll.u32 %v2600, 16
        %v3169 = vrot.slane %v3167, 5
        %v3170 = vsel %vm1433, %v3165, %v3169
        %v3171 = vshrl.u32 %v2600, 16
        %v3173 = vrot.slane %v3171, 4
        %v3174 = vor.u32 %v3173, %v3169
        %v3175 = vrot.slane %v3174, 4
        %v3177 = vshll.u32 %v2642, 16
        %v3179 = vrot.slane %v3177, 5
        %v3180 = vsel %vm1433, %v3175, %v3179
        %v3182 = vshrl.u32 %v2601, 16
        %v3184 = vrot.slane %v3182, 4
        %v3185 = vshll.u32 %v2601, 16
        %v3187 = vrot.slane %v3185, 5
        %v3188 = vor.u32 %v3184, %v3187
        %v3189 = vrot.slane %v3188, 4
        %v3191 = vshll.u32 %v2602, 16
        %v3193 = vrot.slane %v3191, 5
        %v3194 = vsel %vm1433, %v3189, %v3193
        %v3195 = vshrl.u32 %v2602, 16
        %v3197 = vrot.slane %v3195, 4
        %v3198 = vor.u32 %v3197, %v3193
        %v3199 = vrot.slane %v3198, 4
        %v3201 = vshll.u32 %v2643, 16
        %v3203 = vrot.slane %v3201, 5
        %v3204 = vsel %vm1433, %v3199, %v3203
        %v3206 = vshrl.u32 %v2603, 16
        %v3208 = vrot.slane %v3206, 4
        %v3209 = vshll.u32 %v2603, 16
        %v3211 = vrot.slane %v3209, 5
        %v3212 = vor.u32 %v3208, %v3211
        %v3213 = vrot.slane %v3212, 4
        %v3215 = vshll.u32 %v2604, 16
        %v3217 = vrot.slane %v3215, 5
        %v3218 = vsel %vm1433, %v3213, %v3217
        %v3219 = vshrl.u32 %v2604, 16
        %v3221 = vrot.slane %v3219, 4
        %v3222 = vor.u32 %v3221, %v3217
        %v3223 = vrot.slane %v3222, 4
        %v3225 = vshll.u32 %v2644, 16
        %v3227 = vrot.slane %v3225, 5
        %v3228 = vsel %vm1433, %v3223, %v3227
        %v3230 = vshrl.u32 %v2605, 16
        %v3232 = vrot.slane %v3230, 4
        %v3233 = vshll.u32 %v2605, 16
        %v3235 = vrot.slane %v3233, 5
        %v3236 = vor.u32 %v3232, %v3235
        %v3237 = vrot.slane %v3236, 4
        %v3239 = vshll.u32 %v2606, 16
        %v3241 = vrot.slane %v3239, 5
        %v3242 = vsel %vm1433, %v3237, %v3241
        %v3243 = vshrl.u32 %v2606, 16
        %v3245 = vrot.slane %v3243, 4
        %v3246 = vor.u32 %v3245, %v3241
        %v3247 = vrot.slane %v3246, 4
        %v3249 = vshll.u32 %v2645, 16
        %v3251 = vrot.slane %v3249, 5
        %v3252 = vsel %vm1433, %v3247, %v3251
        %v3254 = vshrl.u32 %v2607, 16
        %v3256 = vrot.slane %v3254, 4
        %v3257 = vshll.u32 %v2607, 16
        %v3259 = vrot.slane %v3257, 5
        %v3260 = vor.u32 %v3256, %v3259
        %v3261 = vrot.slane %v3260, 4
        %v3263 = vshll.u32 %v2608, 16
        %v3265 = vrot.slane %v3263, 5
        %v3266 = vsel %vm1433, %v3261, %v3265
        %v3267 = vshrl.u32 %v2608, 16
        %v3269 = vrot.slane %v3267, 4
        %v3270 = vor.u32 %v3269, %v3265
        %v3271 = vrot.slane %v3270, 4
        %v3273 = vshll.u32 %v2646, 16
        %v3275 = vrot.slane %v3273, 5
        %v3276 = vsel %vm1433, %v3271, %v3275
        %v3278 = vshrl.u32 %v2609, 16
        %v3280 = vrot.slane %v3278, 4
        %v3281 = vshll.u32 %v2609, 16
        %v3283 = vrot.slane %v3281, 5
        %v3284 = vor.u32 %v3280, %v3283
        %v3285 = vrot.slane %v3284, 4
        %v3287 = vshll.u32 %v2610, 16
        %v3289 = vrot.slane %v3287, 5
        %v3290 = vsel %vm1433, %v3285, %v3289
        %v3291 = vshrl.u32 %v2610, 16
        %v3293 = vrot.slane %v3291, 4
        %v3294 = vor.u32 %v3293, %v3289
        %v3295 = vrot.slane %v3294, 4
        %v3297 = vshll.u32 %v2647, 16
        %v3299 = vrot.slane %v3297, 5
        %v3300 = vsel %vm1433, %v3295, %v3299
        %v3302 = vshrl.u32 %v2611, 16
        %v3304 = vrot.slane %v3302, 4
        %v3305 = vshll.u32 %v2611, 16
        %v3307 = vrot.slane %v3305, 5
        %v3308 = vor.u32 %v3304, %v3307
        %v3309 = vrot.slane %v3308, 4
        %v3311 = vshll.u32 %v2612, 16
        %v3313 = vrot.slane %v3311, 5
        %v3314 = vsel %vm1433, %v3309, %v3313
        %v3315 = vshrl.u32 %v2612, 16
        %v3317 = vrot.slane %v3315, 4
        %v3318 = vor.u32 %v3317, %v3313
        %v3319 = vrot.slane %v3318, 4
        %v3321 = vshll.u32 %v2648, 16
        %v3323 = vrot.slane %v3321, 5
        %v3324 = vsel %vm1433, %v3319, %v3323
        %v3326 = vshrl.u32 %v2613, 16
        %v3328 = vrot.slane %v3326, 4
        %v3329 = vshll.u32 %v2613, 16
        %v3331 = vrot.slane %v3329, 5
        %v3332 = vor.u32 %v3328, %v3331
        %v3333 = vrot.slane %v3332, 4
        %v3335 = vshll.u32 %v2614, 16
        %v3337 = vrot.slane %v3335, 5
        %v3338 = vsel %vm1433, %v3333, %v3337
        %v3339 = vshrl.u32 %v2614, 16
        %v3341 = vrot.slane %v3339, 4
        %v3342 = vor.u32 %v3341, %v3337
        %v3343 = vrot.slane %v3342, 4
        %v3345 = vshll.u32 %v2649, 16
        %v3347 = vrot.slane %v3345, 5
        %v3348 = vsel %vm1433, %v3343, %v3347
        %v3350 = vshrl.u32 %v2615, 16
        %v3352 = vrot.slane %v3350, 4
        %v3353 = vshll.u32 %v2615, 16
        %v3355 = vrot.slane %v3353, 5
        %v3356 = vor.u32 %v3352, %v3355
        %v3357 = vrot.slane %v3356, 4
        %v3359 = vshll.u32 %v2616, 16
        %v3361 = vrot.slane %v3359, 5
        %v3362 = vsel %vm1433, %v3357, %v3361
        %v3363 = vshrl.u32 %v2616, 16
        %v3365 = vrot.slane %v3363, 4
        %v3366 = vor.u32 %v3365, %v3361
        %v3367 = vrot.slane %v3366, 4
        %v3369 = vshll.u32 %v2650, 16
        %v3371 = vrot.slane %v3369, 5
        %v3372 = vsel %vm1433, %v3367, %v3371
        %v3374 = vshrl.u32 %v2617, 16
        %v3376 = vrot.slane %v3374, 4
        %v3377 = vshll.u32 %v2617, 16
        %v3379 = vrot.slane %v3377, 5
        %v3380 = vor.u32 %v3376, %v3379
        %v3381 = vrot.slane %v3380, 4
        %v3383 = vshll.u32 %v2618, 16
        %v3385 = vrot.slane %v3383, 5
        %v3386 = vsel %vm1433, %v3381, %v3385
        %v3387 = vshrl.u32 %v2618, 16
        %v3389 = vrot.slane %v3387, 4
        %v3390 = vor.u32 %v3389, %v3385
        %v3391 = vrot.slane %v3390, 4
        %v3393 = vshll.u32 %v2651, 16
        %v3395 = vrot.slane %v3393, 5
        %v3396 = vsel %vm1433, %v3391, %v3395
        %v3398 = vshrl.u32 %v2619, 16
        %v3400 = vrot.slane %v3398, 4
        %v3401 = vshll.u32 %v2619, 16
        %v3403 = vrot.slane %v3401, 5
        %v3404 = vor.u32 %v3400, %v3403
        %v3405 = vrot.slane %v3404, 4
        %v3407 = vshll.u32 %v2620, 16
        %v3409 = vrot.slane %v3407, 5
        %v3410 = vsel %vm1433, %v3405, %v3409
        %v3411 = vshrl.u32 %v2620, 16
        %v3413 = vrot.slane %v3411, 4
        %v3414 = vor.u32 %v3413, %v3409
        %v3415 = vrot.slane %v3414, 4
        %v3417 = vshll.u32 %v2652, 16
        %v3419 = vrot.slane %v3417, 5
        %v3420 = vsel %vm1433, %v3415, %v3419
        %v3421 = vld [vmem:[%s1108] sm:$0xe]
        %v3422 = vld [vmem:[%s1108 + $0xc] sm:$0xe]
        %v3423 = vld [vmem:[%s1108 + $0x18] sm:$0xe]
        %v3424 = vld [vmem:[%s1108 + $0x24] sm:$0xe]
        %v3425 = vld [vmem:[%s1108 + $0x30] sm:$0xe]
        %v3426 = vld [vmem:[%s1108 + $0x3c] sm:$0xe]
        %v3427 = vld [vmem:[%s1108 + $0x48] sm:$0xe]
        %v3428 = vld [vmem:[%s1108 + $0x54] sm:$0xe]
        %v3429 = vld [vmem:[%s1108 + $0x60] sm:$0xe]
        %v3430 = vld [vmem:[%s1108 + $0x6c] sm:$0xe]
        %v3431 = vld [vmem:[%s1108 + $0x78] sm:$0xe]
        %v3432 = vld [vmem:[%s1108 + $0x84] sm:$0xe]
        %v3433 = vld [vmem:[%s1108 + $0x90] sm:$0xe]
        %v3434 = vld [vmem:[%s1108 + $0x9c] sm:$0xe]
        %v3435 = vld [vmem:[%s1108 + $0xa8] sm:$0xe]
        %v3436 = vld [vmem:[%s1108 + $0xb4] sm:$0xe]
        %v3437 = vld [vmem:[%s1108 + $0xd8] sm:$0xe]
        %v3438 = vld [vmem:[%s1108 + $0xe4] sm:$0xe]
        %v3439 = vld [vmem:[%s1108 + $0xf0] sm:$0xe]
        %v3440 = vld [vmem:[%s1108 + $0xfc] sm:$0xe]
        %v3441 = vld [vmem:[%s1108 + $0x108] sm:$0xe]
        %v3442 = vld [vmem:[%s1108 + $0x114] sm:$0xe]
        %v3443 = vld [vmem:[%s1108 + $0x120] sm:$0xe]
        %v3444 = vld [vmem:[%s1108 + $0x12c] sm:$0xe]
        %v3445 = vld [vmem:[%s1108 + $0x138] sm:$0xe]
        %v3446 = vld [vmem:[%s1108 + $0x144] sm:$0xe]
        %v3447 = vld [vmem:[%s1108 + $0x150] sm:$0xe]
        %v3448 = vld [vmem:[%s1108 + $0x15c] sm:$0xe]
        %v3449 = vld [vmem:[%s1108 + $0x168] sm:$0xe]
        %v3450 = vld [vmem:[%s1108 + $0x174] sm:$0xe]
        %v3451 = vld [vmem:[%s1108 + $0x180] sm:$0xe]
        %v3452 = vld [vmem:[%s1108 + $0x18c] sm:$0xe]
        %v3549 = vrot.slane %v3421, 5
        %v3550 = vrot.slane %v3549, 4
        %v3551 = vrot.slane %v2558, 5
        %v3552 = vsel %vm2332, %v3550, %v3551
        %v3553 = vrot.slane %v3551, 4
        %v3554 = vrot.slane %v2621, 5
        %v3555 = vsel %vm2332, %v3553, %v3554
        %v3556 = vrot.slane %v3422, 5
        %v3557 = vrot.slane %v3556, 4
        %v3558 = vrot.slane %v2560, 5
        %v3559 = vsel %vm2332, %v3557, %v3558
        %v3560 = vrot.slane %v3558, 4
        %v3561 = vrot.slane %v2622, 5
        %v3562 = vsel %vm2332, %v3560, %v3561
        %v3563 = vrot.slane %v3423, 5
        %v3564 = vrot.slane %v3563, 4
        %v3565 = vrot.slane %v2562, 5
        %v3566 = vsel %vm2332, %v3564, %v3565
        %v3567 = vrot.slane %v3565, 4
        %v3568 = vrot.slane %v2623, 5
        %v3569 = vsel %vm2332, %v3567, %v3568
        %v3570 = vrot.slane %v3424, 5
        %v3571 = vrot.slane %v3570, 4
        %v3572 = vrot.slane %v2564, 5
        %v3573 = vsel %vm2332, %v3571, %v3572
        %v3574 = vrot.slane %v3572, 4
        %v3575 = vrot.slane %v2624, 5
        %v3576 = vsel %vm2332, %v3574, %v3575
        %v3577 = vrot.slane %v3425, 5
        %v3578 = vrot.slane %v3577, 4
        %v3579 = vrot.slane %v2566, 5
        %v3580 = vsel %vm2332, %v3578, %v3579
        %v3581 = vrot.slane %v3579, 4
        %v3582 = vrot.slane %v2625, 5
        %v3583 = vsel %vm2332, %v3581, %v3582
        %v3584 = vrot.slane %v3426, 5
        %v3585 = vrot.slane %v3584, 4
        %v3586 = vrot.slane %v2568, 5
        %v3587 = vsel %vm2332, %v3585, %v3586
        %v3588 = vrot.slane %v3586, 4
        %v3589 = vrot.slane %v2626, 5
        %v3590 = vsel %vm2332, %v3588, %v3589
        %v3591 = vrot.slane %v3427, 5
        %v3592 = vrot.slane %v3591, 4
        %v3593 = vrot.slane %v2570, 5
        %v3594 = vsel %vm2332, %v3592, %v3593
        %v3595 = vrot.slane %v3593, 4
        %v3596 = vrot.slane %v2627, 5
        %v3597 = vsel %vm2332, %v3595, %v3596
        %v3598 = vrot.slane %v3428, 5
        %v3599 = vrot.slane %v3598, 4
        %v3600 = vrot.slane %v2572, 5
        %v3601 = vsel %vm2332, %v3599, %v3600
        %v3602 = vrot.slane %v3600, 4
        %v3603 = vrot.slane %v2628, 5
        %v3604 = vsel %vm2332, %v3602, %v3603
        %v3605 = vrot.slane %v3429, 5
        %v3606 = vrot.slane %v3605, 4
        %v3607 = vrot.slane %v2574, 5
        %v3608 = vsel %vm2332, %v3606, %v3607
        %v3609 = vrot.slane %v3607, 4
        %v3610 = vrot.slane %v2629, 5
        %v3611 = vsel %vm2332, %v3609, %v3610
        %v3612 = vrot.slane %v3430, 5
        %v3613 = vrot.slane %v3612, 4
        %v3614 = vrot.slane %v2576, 5
        %v3615 = vsel %vm2332, %v3613, %v3614
        %v3616 = vrot.slane %v3614, 4
        %v3617 = vrot.slane %v2630, 5
        %v3618 = vsel %vm2332, %v3616, %v3617
        %v3619 = vrot.slane %v3431, 5
        %v3620 = vrot.slane %v3619, 4
        %v3621 = vrot.slane %v2578, 5
        %v3622 = vsel %vm2332, %v3620, %v3621
        %v3623 = vrot.slane %v3621, 4
        %v3624 = vrot.slane %v2631, 5
        %v3625 = vsel %vm2332, %v3623, %v3624
        %v3626 = vrot.slane %v3432, 5
        %v3627 = vrot.slane %v3626, 4
        %v3628 = vrot.slane %v2580, 5
        %v3629 = vsel %vm2332, %v3627, %v3628
        %v3630 = vrot.slane %v3628, 4
        %v3631 = vrot.slane %v2632, 5
        %v3632 = vsel %vm2332, %v3630, %v3631
        %v3633 = vrot.slane %v3433, 5
        %v3634 = vrot.slane %v3633, 4
        %v3635 = vrot.slane %v2582, 5
        %v3636 = vsel %vm2332, %v3634, %v3635
        %v3637 = vrot.slane %v3635, 4
        %v3638 = vrot.slane %v2633, 5
        %v3639 = vsel %vm2332, %v3637, %v3638
        %v3640 = vrot.slane %v3434, 5
        %v3641 = vrot.slane %v3640, 4
        %v3642 = vrot.slane %v2584, 5
        %v3643 = vsel %vm2332, %v3641, %v3642
        %v3644 = vrot.slane %v3642, 4
        %v3645 = vrot.slane %v2634, 5
        %v3646 = vsel %vm2332, %v3644, %v3645
        %v3647 = vrot.slane %v3435, 5
        %v3648 = vrot.slane %v3647, 4
        %v3649 = vrot.slane %v2586, 5
        %v3650 = vsel %vm2332, %v3648, %v3649
        %v3651 = vrot.slane %v3649, 4
        %v3652 = vrot.slane %v2635, 5
        %v3653 = vsel %vm2332, %v3651, %v3652
        %v3654 = vrot.slane %v3436, 5
        %v3655 = vrot.slane %v3654, 4
        %v3656 = vrot.slane %v2588, 5
        %v3657 = vsel %vm2332, %v3655, %v3656
        %v3658 = vrot.slane %v3656, 4
        %v3659 = vrot.slane %v2636, 5
        %v3660 = vsel %vm2332, %v3658, %v3659
        %v3661 = vrot.slane %v3437, 5
        %v3662 = vrot.slane %v3661, 4
        %v3663 = vrot.slane %v2590, 5
        %v3664 = vsel %vm2332, %v3662, %v3663
        %v3665 = vrot.slane %v3663, 4
        %v3666 = vrot.slane %v2637, 5
        %v3667 = vsel %vm2332, %v3665, %v3666
        %v3668 = vrot.slane %v3438, 5
        %v3669 = vrot.slane %v3668, 4
        %v3670 = vrot.slane %v2592, 5
        %v3671 = vsel %vm2332, %v3669, %v3670
        %v3672 = vrot.slane %v3670, 4
        %v3673 = vrot.slane %v2638, 5
        %v3674 = vsel %vm2332, %v3672, %v3673
        %v3675 = vrot.slane %v3439, 5
        %v3676 = vrot.slane %v3675, 4
        %v3677 = vrot.slane %v2594, 5
        %v3678 = vsel %vm2332, %v3676, %v3677
        %v3679 = vrot.slane %v3677, 4
        %v3680 = vrot.slane %v2639, 5
        %v3681 = vsel %vm2332, %v3679, %v3680
        %v3682 = vrot.slane %v3440, 5
        %v3683 = vrot.slane %v3682, 4
        %v3684 = vrot.slane %v2596, 5
        %v3685 = vsel %vm2332, %v3683, %v3684
        %v3686 = vrot.slane %v3684, 4
        %v3687 = vrot.slane %v2640, 5
        %v3688 = vsel %vm2332, %v3686, %v3687
        %v3689 = vrot.slane %v3441, 5
        %v3690 = vrot.slane %v3689, 4
        %v3691 = vrot.slane %v2598, 5
        %v3692 = vsel %vm2332, %v3690, %v3691
        %v3693 = vrot.slane %v3691, 4
        %v3694 = vrot.slane %v2641, 5
        %v3695 = vsel %vm2332, %v3693, %v3694
        %v3696 = vrot.slane %v3442, 5
        %v3697 = vrot.slane %v3696, 4
        %v3698 = vrot.slane %v2600, 5
        %v3699 = vsel %vm2332, %v3697, %v3698
        %v3700 = vrot.slane %v3698, 4
        %v3701 = vrot.slane %v2642, 5
        %v3702 = vsel %vm2332, %v3700, %v3701
        %v3703 = vrot.slane %v3443, 5
        %v3704 = vrot.slane %v3703, 4
        %v3705 = vrot.slane %v2602, 5
        %v3706 = vsel %vm2332, %v3704, %v3705
        %v3707 = vrot.slane %v3705, 4
        %v3708 = vrot.slane %v2643, 5
        %v3709 = vsel %vm2332, %v3707, %v3708
        %v3710 = vrot.slane %v3444, 5
        %v3711 = vrot.slane %v3710, 4
        %v3712 = vrot.slane %v2604, 5
        %v3713 = vsel %vm2332, %v3711, %v3712
        %v3714 = vrot.slane %v3712, 4
        %v3715 = vrot.slane %v2644, 5
        %v3716 = vsel %vm2332, %v3714, %v3715
        %v3717 = vrot.slane %v3445, 5
        %v3718 = vrot.slane %v3717, 4
        %v3719 = vrot.slane %v2606, 5
        %v3720 = vsel %vm2332, %v3718, %v3719
        %v3721 = vrot.slane %v3719, 4
        %v3722 = vrot.slane %v2645, 5
        %v3723 = vsel %vm2332, %v3721, %v3722
        %v3724 = vrot.slane %v3446, 5
        %v3725 = vrot.slane %v3724, 4
        %v3726 = vrot.slane %v2608, 5
        %v3727 = vsel %vm2332, %v3725, %v3726
        %v3728 = vrot.slane %v3726, 4
        %v3729 = vrot.slane %v2646, 5
        %v3730 = vsel %vm2332, %v3728, %v3729
        %v3731 = vrot.slane %v3447, 5
        %v3732 = vrot.slane %v3731, 4
        %v3733 = vrot.slane %v2610, 5
        %v3734 = vsel %vm2332, %v3732, %v3733
        %v3735 = vrot.slane %v3733, 4
        %v3736 = vrot.slane %v2647, 5
        %v3737 = vsel %vm2332, %v3735, %v3736
        %v3738 = vrot.slane %v3448, 5
        %v3739 = vrot.slane %v3738, 4
        %v3740 = vrot.slane %v2612, 5
        %v3741 = vsel %vm2332, %v3739, %v3740
        %v3742 = vrot.slane %v3740, 4
        %v3743 = vrot.slane %v2648, 5
        %v3744 = vsel %vm2332, %v3742, %v3743
        %v3745 = vrot.slane %v3449, 5
        %v3746 = vrot.slane %v3745, 4
        %v3747 = vrot.slane %v2614, 5
        %v3748 = vsel %vm2332, %v3746, %v3747
        %v3749 = vrot.slane %v3747, 4
        %v3750 = vrot.slane %v2649, 5
        %v3751 = vsel %vm2332, %v3749, %v3750
        %v3752 = vrot.slane %v3450, 5
        %v3753 = vrot.slane %v3752, 4
        %v3754 = vrot.slane %v2616, 5
        %v3755 = vsel %vm2332, %v3753, %v3754
        %v3756 = vrot.slane %v3754, 4
        %v3757 = vrot.slane %v2650, 5
        %v3758 = vsel %vm2332, %v3756, %v3757
        %v3759 = vrot.slane %v3451, 5
        %v3760 = vrot.slane %v3759, 4
        %v3761 = vrot.slane %v2618, 5
        %v3762 = vsel %vm2332, %v3760, %v3761
        %v3763 = vrot.slane %v3761, 4
        %v3764 = vrot.slane %v2651, 5
        %v3765 = vsel %vm2332, %v3763, %v3764
        %v3766 = vrot.slane %v3452, 5
        %v3767 = vrot.slane %v3766, 4
        %v3768 = vrot.slane %v2620, 5
        %v3769 = vsel %vm2332, %v3767, %v3768
        %v3770 = vrot.slane %v3768, 4
        %v3771 = vrot.slane %v2652, 5
        %v3772 = vsel %vm2332, %v3770, %v3771
        %s3773 = scalar_lea.vmem [#allocation2], 24
        %v3774 = vld [vmem:[%s3773] sm:$0xf]
        %v3775 = vld [vmem:[%s3773 + $0x4] sm:$0xf]
        %v3776 = vld [vmem:[%s3773 + $0xc] sm:$0xf]
        %v3777 = vld [vmem:[%s3773 + $0x10] sm:$0xf]
        %v3778 = vld [vmem:[%s3773 + $0x18] sm:$0xf]
        %v3779 = vld [vmem:[%s3773 + $0x1c] sm:$0xf]
        %v3780 = vld [vmem:[%s3773 + $0x24] sm:$0xf]
        %v3781 = vld [vmem:[%s3773 + $0x28] sm:$0xf]
        %v3782 = vld [vmem:[%s3773 + $0x30] sm:$0xf]
        %v3783 = vld [vmem:[%s3773 + $0x34] sm:$0xf]
        %v3784 = vld [vmem:[%s3773 + $0x3c] sm:$0xf]
        %v3785 = vld [vmem:[%s3773 + $0x40] sm:$0xf]
        %v3786 = vld [vmem:[%s3773 + $0x48] sm:$0xf]
        %v3787 = vld [vmem:[%s3773 + $0x4c] sm:$0xf]
        %v3788 = vld [vmem:[%s3773 + $0x54] sm:$0xf]
        %v3789 = vld [vmem:[%s3773 + $0x58] sm:$0xf]
        %v3790 = vld [vmem:[%s3773 + $0x60] sm:$0xf]
        %v3791 = vld [vmem:[%s3773 + $0x64] sm:$0xf]
        %v3792 = vld [vmem:[%s3773 + $0x6c] sm:$0xf]
        %v3793 = vld [vmem:[%s3773 + $0x70] sm:$0xf]
        %v3794 = vld [vmem:[%s3773 + $0x78] sm:$0xf]
        %v3795 = vld [vmem:[%s3773 + $0x7c] sm:$0xf]
        %v3796 = vld [vmem:[%s3773 + $0x84] sm:$0xf]
        %v3797 = vld [vmem:[%s3773 + $0x88] sm:$0xf]
        %v3798 = vld [vmem:[%s3773 + $0x90] sm:$0xf]
        %v3799 = vld [vmem:[%s3773 + $0x94] sm:$0xf]
        %v3800 = vld [vmem:[%s3773 + $0x9c] sm:$0xf]
        %v3801 = vld [vmem:[%s3773 + $0xa0] sm:$0xf]
        %v3802 = vld [vmem:[%s3773 + $0xa8] sm:$0xf]
        %v3803 = vld [vmem:[%s3773 + $0xac] sm:$0xf]
        %v3804 = vld [vmem:[%s3773 + $0xb4] sm:$0xf]
        %v3805 = vld [vmem:[%s3773 + $0xb8] sm:$0xf]
        %v3806 = vld [vmem:[%s3773 + $0xd8] sm:$0xf]
        %v3807 = vld [vmem:[%s3773 + $0xdc] sm:$0xf]
        %v3808 = vld [vmem:[%s3773 + $0xe4] sm:$0xf]
        %v3809 = vld [vmem:[%s3773 + $0xe8] sm:$0xf]
        %v3810 = vld [vmem:[%s3773 + $0xf0] sm:$0xf]
        %v3811 = vld [vmem:[%s3773 + $0xf4] sm:$0xf]
        %v3812 = vld [vmem:[%s3773 + $0xfc] sm:$0xf]
        %v3813 = vld [vmem:[%s3773 + $0x100] sm:$0xf]
        %v3814 = vld [vmem:[%s3773 + $0x108] sm:$0xf]
        %v3815 = vld [vmem:[%s3773 + $0x10c] sm:$0xf]
        %v3816 = vld [vmem:[%s3773 + $0x114] sm:$0xf]
        %v3817 = vld [vmem:[%s3773 + $0x118] sm:$0xf]
        %v3818 = vld [vmem:[%s3773 + $0x120] sm:$0xf]
        %v3819 = vld [vmem:[%s3773 + $0x124] sm:$0xf]
        %v3820 = vld [vmem:[%s3773 + $0x12c] sm:$0xf]
        %v3821 = vld [vmem:[%s3773 + $0x130] sm:$0xf]
        %v3822 = vld [vmem:[%s3773 + $0x138] sm:$0xf]
        %v3823 = vld [vmem:[%s3773 + $0x13c] sm:$0xf]
        %v3824 = vld [vmem:[%s3773 + $0x144] sm:$0xf]
        %v3825 = vld [vmem:[%s3773 + $0x148] sm:$0xf]
        %v3826 = vld [vmem:[%s3773 + $0x150] sm:$0xf]
        %v3827 = vld [vmem:[%s3773 + $0x154] sm:$0xf]
        %v3828 = vld [vmem:[%s3773 + $0x15c] sm:$0xf]
        %v3829 = vld [vmem:[%s3773 + $0x160] sm:$0xf]
        %v3830 = vld [vmem:[%s3773 + $0x168] sm:$0xf]
        %v3831 = vld [vmem:[%s3773 + $0x16c] sm:$0xf]
        %v3832 = vld [vmem:[%s3773 + $0x174] sm:$0xf]
        %v3833 = vld [vmem:[%s3773 + $0x178] sm:$0xf]
        %v3834 = vld [vmem:[%s3773 + $0x180] sm:$0xf]
        %v3835 = vld [vmem:[%s3773 + $0x184] sm:$0xf]
        %v3836 = vld [vmem:[%s3773 + $0x18c] sm:$0xf]
        %v3837 = vld [vmem:[%s3773 + $0x190] sm:$0xf]
        %v3838 = vld [vmem:[%s3773 + $0x8] sm:$0x1]
        %v3839 = vld [vmem:[%s3773 + $0x14] sm:$0x1]
        %v3840 = vld [vmem:[%s3773 + $0x20] sm:$0x1]
        %v3841 = vld [vmem:[%s3773 + $0x2c] sm:$0x1]
        %v3842 = vld [vmem:[%s3773 + $0x38] sm:$0x1]
        %v3843 = vld [vmem:[%s3773 + $0x44] sm:$0x1]
        %v3844 = vld [vmem:[%s3773 + $0x50] sm:$0x1]
        %v3845 = vld [vmem:[%s3773 + $0x5c] sm:$0x1]
        %v3846 = vld [vmem:[%s3773 + $0x68] sm:$0x1]
        %v3847 = vld [vmem:[%s3773 + $0x74] sm:$0x1]
        %v3848 = vld [vmem:[%s3773 + $0x80] sm:$0x1]
        %v3849 = vld [vmem:[%s3773 + $0x8c] sm:$0x1]
        %v3850 = vld [vmem:[%s3773 + $0x98] sm:$0x1]
        %v3851 = vld [vmem:[%s3773 + $0xa4] sm:$0x1]
        %v3852 = vld [vmem:[%s3773 + $0xb0] sm:$0x1]
        %v3853 = vld [vmem:[%s3773 + $0xbc] sm:$0x1]
        %v3854 = vld [vmem:[%s3773 + $0xe0] sm:$0x1]
        %v3855 = vld [vmem:[%s3773 + $0xec] sm:$0x1]
        %v3856 = vld [vmem:[%s3773 + $0xf8] sm:$0x1]
        %v3857 = vld [vmem:[%s3773 + $0x104] sm:$0x1]
        %v3858 = vld [vmem:[%s3773 + $0x110] sm:$0x1]
        %v3859 = vld [vmem:[%s3773 + $0x11c] sm:$0x1]
        %v3860 = vld [vmem:[%s3773 + $0x128] sm:$0x1]
        %v3861 = vld [vmem:[%s3773 + $0x134] sm:$0x1]
        %v3862 = vld [vmem:[%s3773 + $0x140] sm:$0x1]
        %v3863 = vld [vmem:[%s3773 + $0x14c] sm:$0x1]
        %v3864 = vld [vmem:[%s3773 + $0x158] sm:$0x1]
        %v3865 = vld [vmem:[%s3773 + $0x164] sm:$0x1]
        %v3866 = vld [vmem:[%s3773 + $0x170] sm:$0x1]
        %v3867 = vld [vmem:[%s3773 + $0x17c] sm:$0x1]
        %v3868 = vld [vmem:[%s3773 + $0x188] sm:$0x1]
        %v3869 = vld [vmem:[%s3773 + $0x194] sm:$0x1]
        %v3871 = vshrl.u32 %v3774, 16
        %v3873 = vrot.slane %v3871, 4
        %v3874 = vshll.u32 %v3774, 16
        %v3876 = vrot.slane %v3874, 5
        %v3877 = vor.u32 %v3873, %v3876
        %v3878 = vrot.slane %v3877, 4
        %v3880 = vshll.u32 %v3775, 16
        %v3882 = vrot.slane %v3880, 5
        %v3883 = vsel %vm1433, %v3878, %v3882
        %v3884 = vshrl.u32 %v3775, 16
        %v3886 = vrot.slane %v3884, 4
        %v3887 = vor.u32 %v3886, %v3882
        %v3888 = vrot.slane %v3887, 4
        %v3890 = vshll.u32 %v3838, 16
        %v3892 = vrot.slane %v3890, 5
        %v3893 = vsel %vm1433, %v3888, %v3892
        %v3895 = vshrl.u32 %v3776, 16
        %v3897 = vrot.slane %v3895, 4
        %v3898 = vshll.u32 %v3776, 16
        %v3900 = vrot.slane %v3898, 5
        %v3901 = vor.u32 %v3897, %v3900
        %v3902 = vrot.slane %v3901, 4
        %v3904 = vshll.u32 %v3777, 16
        %v3906 = vrot.slane %v3904, 5
        %v3907 = vsel %vm1433, %v3902, %v3906
        %v3908 = vshrl.u32 %v3777, 16
        %v3910 = vrot.slane %v3908, 4
        %v3911 = vor.u32 %v3910, %v3906
        %v3912 = vrot.slane %v3911, 4
        %v3914 = vshll.u32 %v3839, 16
        %v3916 = vrot.slane %v3914, 5
        %v3917 = vsel %vm1433, %v3912, %v3916
        %v3919 = vshrl.u32 %v3778, 16
        %v3921 = vrot.slane %v3919, 4
        %v3922 = vshll.u32 %v3778, 16
        %v3924 = vrot.slane %v3922, 5
        %v3925 = vor.u32 %v3921, %v3924
        %v3926 = vrot.slane %v3925, 4
        %v3928 = vshll.u32 %v3779, 16
        %v3930 = vrot.slane %v3928, 5
        %v3931 = vsel %vm1433, %v3926, %v3930
        %v3932 = vshrl.u32 %v3779, 16
        %v3934 = vrot.slane %v3932, 4
        %v3935 = vor.u32 %v3934, %v3930
        %v3936 = vrot.slane %v3935, 4
        %v3938 = vshll.u32 %v3840, 16
        %v3940 = vrot.slane %v3938, 5
        %v3941 = vsel %vm1433, %v3936, %v3940
        %v3943 = vshrl.u32 %v3780, 16
        %v3945 = vrot.slane %v3943, 4
        %v3946 = vshll.u32 %v3780, 16
        %v3948 = vrot.slane %v3946, 5
        %v3949 = vor.u32 %v3945, %v3948
        %v3950 = vrot.slane %v3949, 4
        %v3952 = vshll.u32 %v3781, 16
        %v3954 = vrot.slane %v3952, 5
        %v3955 = vsel %vm1433, %v3950, %v3954
        %v3956 = vshrl.u32 %v3781, 16
        %v3958 = vrot.slane %v3956, 4
        %v3959 = vor.u32 %v3958, %v3954
        %v3960 = vrot.slane %v3959, 4
        %v3962 = vshll.u32 %v3841, 16
        %v3964 = vrot.slane %v3962, 5
        %v3965 = vsel %vm1433, %v3960, %v3964
        %v3967 = vshrl.u32 %v3782, 16
        %v3969 = vrot.slane %v3967, 4
        %v3970 = vshll.u32 %v3782, 16
        %v3972 = vrot.slane %v3970, 5
        %v3973 = vor.u32 %v3969, %v3972
        %v3974 = vrot.slane %v3973, 4
        %v3976 = vshll.u32 %v3783, 16
        %v3978 = vrot.slane %v3976, 5
        %v3979 = vsel %vm1433, %v3974, %v3978
        %v3980 = vshrl.u32 %v3783, 16
        %v3982 = vrot.slane %v3980, 4
        %v3983 = vor.u32 %v3982, %v3978
        %v3984 = vrot.slane %v3983, 4
        %v3986 = vshll.u32 %v3842, 16
        %v3988 = vrot.slane %v3986, 5
        %v3989 = vsel %vm1433, %v3984, %v3988
        %v3991 = vshrl.u32 %v3784, 16
        %v3993 = vrot.slane %v3991, 4
        %v3994 = vshll.u32 %v3784, 16
        %v3996 = vrot.slane %v3994, 5
        %v3997 = vor.u32 %v3993, %v3996
        %v3998 = vrot.slane %v3997, 4
        %v4000 = vshll.u32 %v3785, 16
        %v4002 = vrot.slane %v4000, 5
        %v4003 = vsel %vm1433, %v3998, %v4002
        %v4004 = vshrl.u32 %v3785, 16
        %v4006 = vrot.slane %v4004, 4
        %v4007 = vor.u32 %v4006, %v4002
        %v4008 = vrot.slane %v4007, 4
        %v4010 = vshll.u32 %v3843, 16
        %v4012 = vrot.slane %v4010, 5
        %v4013 = vsel %vm1433, %v4008, %v4012
        %v4015 = vshrl.u32 %v3786, 16
        %v4017 = vrot.slane %v4015, 4
        %v4018 = vshll.u32 %v3786, 16
        %v4020 = vrot.slane %v4018, 5
        %v4021 = vor.u32 %v4017, %v4020
        %v4022 = vrot.slane %v4021, 4
        %v4024 = vshll.u32 %v3787, 16
        %v4026 = vrot.slane %v4024, 5
        %v4027 = vsel %vm1433, %v4022, %v4026
        %v4028 = vshrl.u32 %v3787, 16
        %v4030 = vrot.slane %v4028, 4
        %v4031 = vor.u32 %v4030, %v4026
        %v4032 = vrot.slane %v4031, 4
        %v4034 = vshll.u32 %v3844, 16
        %v4036 = vrot.slane %v4034, 5
        %v4037 = vsel %vm1433, %v4032, %v4036
        %v4039 = vshrl.u32 %v3788, 16
        %v4041 = vrot.slane %v4039, 4
        %v4042 = vshll.u32 %v3788, 16
        %v4044 = vrot.slane %v4042, 5
        %v4045 = vor.u32 %v4041, %v4044
        %v4046 = vrot.slane %v4045, 4
        %v4048 = vshll.u32 %v3789, 16
        %v4050 = vrot.slane %v4048, 5
        %v4051 = vsel %vm1433, %v4046, %v4050
        %v4052 = vshrl.u32 %v3789, 16
        %v4054 = vrot.slane %v4052, 4
        %v4055 = vor.u32 %v4054, %v4050
        %v4056 = vrot.slane %v4055, 4
        %v4058 = vshll.u32 %v3845, 16
        %v4060 = vrot.slane %v4058, 5
        %v4061 = vsel %vm1433, %v4056, %v4060
        %v4063 = vshrl.u32 %v3790, 16
        %v4065 = vrot.slane %v4063, 4
        %v4066 = vshll.u32 %v3790, 16
        %v4068 = vrot.slane %v4066, 5
        %v4069 = vor.u32 %v4065, %v4068
        %v4070 = vrot.slane %v4069, 4
        %v4072 = vshll.u32 %v3791, 16
        %v4074 = vrot.slane %v4072, 5
        %v4075 = vsel %vm1433, %v4070, %v4074
        %v4076 = vshrl.u32 %v3791, 16
        %v4078 = vrot.slane %v4076, 4
        %v4079 = vor.u32 %v4078, %v4074
        %v4080 = vrot.slane %v4079, 4
        %v4082 = vshll.u32 %v3846, 16
        %v4084 = vrot.slane %v4082, 5
        %v4085 = vsel %vm1433, %v4080, %v4084
        %v4087 = vshrl.u32 %v3792, 16
        %v4089 = vrot.slane %v4087, 4
        %v4090 = vshll.u32 %v3792, 16
        %v4092 = vrot.slane %v4090, 5
        %v4093 = vor.u32 %v4089, %v4092
        %v4094 = vrot.slane %v4093, 4
        %v4096 = vshll.u32 %v3793, 16
        %v4098 = vrot.slane %v4096, 5
        %v4099 = vsel %vm1433, %v4094, %v4098
        %v4100 = vshrl.u32 %v3793, 16
        %v4102 = vrot.slane %v4100, 4
        %v4103 = vor.u32 %v4102, %v4098
        %v4104 = vrot.slane %v4103, 4
        %v4106 = vshll.u32 %v3847, 16
        %v4108 = vrot.slane %v4106, 5
        %v4109 = vsel %vm1433, %v4104, %v4108
        %v4111 = vshrl.u32 %v3794, 16
        %v4113 = vrot.slane %v4111, 4
        %v4114 = vshll.u32 %v3794, 16
        %v4116 = vrot.slane %v4114, 5
        %v4117 = vor.u32 %v4113, %v4116
        %v4118 = vrot.slane %v4117, 4
        %v4120 = vshll.u32 %v3795, 16
        %v4122 = vrot.slane %v4120, 5
        %v4123 = vsel %vm1433, %v4118, %v4122
        %v4124 = vshrl.u32 %v3795, 16
        %v4126 = vrot.slane %v4124, 4
        %v4127 = vor.u32 %v4126, %v4122
        %v4128 = vrot.slane %v4127, 4
        %v4130 = vshll.u32 %v3848, 16
        %v4132 = vrot.slane %v4130, 5
        %v4133 = vsel %vm1433, %v4128, %v4132
        %v4135 = vshrl.u32 %v3796, 16
        %v4137 = vrot.slane %v4135, 4
        %v4138 = vshll.u32 %v3796, 16
        %v4140 = vrot.slane %v4138, 5
        %v4141 = vor.u32 %v4137, %v4140
        %v4142 = vrot.slane %v4141, 4
        %v4144 = vshll.u32 %v3797, 16
        %v4146 = vrot.slane %v4144, 5
        %v4147 = vsel %vm1433, %v4142, %v4146
        %v4148 = vshrl.u32 %v3797, 16
        %v4150 = vrot.slane %v4148, 4
        %v4151 = vor.u32 %v4150, %v4146
        %v4152 = vrot.slane %v4151, 4
        %v4154 = vshll.u32 %v3849, 16
        %v4156 = vrot.slane %v4154, 5
        %v4157 = vsel %vm1433, %v4152, %v4156
        %v4159 = vshrl.u32 %v3798, 16
        %v4161 = vrot.slane %v4159, 4
        %v4162 = vshll.u32 %v3798, 16
        %v4164 = vrot.slane %v4162, 5
        %v4165 = vor.u32 %v4161, %v4164
        %v4166 = vrot.slane %v4165, 4
        %v4168 = vshll.u32 %v3799, 16
        %v4170 = vrot.slane %v4168, 5
        %v4171 = vsel %vm1433, %v4166, %v4170
        %v4172 = vshrl.u32 %v3799, 16
        %v4174 = vrot.slane %v4172, 4
        %v4175 = vor.u32 %v4174, %v4170
        %v4176 = vrot.slane %v4175, 4
        %v4178 = vshll.u32 %v3850, 16
        %v4180 = vrot.slane %v4178, 5
        %v4181 = vsel %vm1433, %v4176, %v4180
        %v4183 = vshrl.u32 %v3800, 16
        %v4185 = vrot.slane %v4183, 4
        %v4186 = vshll.u32 %v3800, 16
        %v4188 = vrot.slane %v4186, 5
        %v4189 = vor.u32 %v4185, %v4188
        %v4190 = vrot.slane %v4189, 4
        %v4192 = vshll.u32 %v3801, 16
        %v4194 = vrot.slane %v4192, 5
        %v4195 = vsel %vm1433, %v4190, %v4194
        %v4196 = vshrl.u32 %v3801, 16
        %v4198 = vrot.slane %v4196, 4
        %v4199 = vor.u32 %v4198, %v4194
        %v4200 = vrot.slane %v4199, 4
        %v4202 = vshll.u32 %v3851, 16
        %v4204 = vrot.slane %v4202, 5
        %v4205 = vsel %vm1433, %v4200, %v4204
        %v4207 = vshrl.u32 %v3802, 16
        %v4209 = vrot.slane %v4207, 4
        %v4210 = vshll.u32 %v3802, 16
        %v4212 = vrot.slane %v4210, 5
        %v4213 = vor.u32 %v4209, %v4212
        %v4214 = vrot.slane %v4213, 4
        %v4216 = vshll.u32 %v3803, 16
        %v4218 = vrot.slane %v4216, 5
        %v4219 = vsel %vm1433, %v4214, %v4218
        %v4220 = vshrl.u32 %v3803, 16
        %v4222 = vrot.slane %v4220, 4
        %v4223 = vor.u32 %v4222, %v4218
        %v4224 = vrot.slane %v4223, 4
        %v4226 = vshll.u32 %v3852, 16
        %v4228 = vrot.slane %v4226, 5
        %v4229 = vsel %vm1433, %v4224, %v4228
        %v4231 = vshrl.u32 %v3804, 16
        %v4233 = vrot.slane %v4231, 4
        %v4234 = vshll.u32 %v3804, 16
        %v4236 = vrot.slane %v4234, 5
        %v4237 = vor.u32 %v4233, %v4236
        %v4238 = vrot.slane %v4237, 4
        %v4240 = vshll.u32 %v3805, 16
        %v4242 = vrot.slane %v4240, 5
        %v4243 = vsel %vm1433, %v4238, %v4242
        %v4244 = vshrl.u32 %v3805, 16
        %v4246 = vrot.slane %v4244, 4
        %v4247 = vor.u32 %v4246, %v4242
        %v4248 = vrot.slane %v4247, 4
        %v4250 = vshll.u32 %v3853, 16
        %v4252 = vrot.slane %v4250, 5
        %v4253 = vsel %vm1433, %v4248, %v4252
        %v4255 = vshrl.u32 %v3806, 16
        %v4257 = vrot.slane %v4255, 4
        %v4258 = vshll.u32 %v3806, 16
        %v4260 = vrot.slane %v4258, 5
        %v4261 = vor.u32 %v4257, %v4260
        %v4262 = vrot.slane %v4261, 4
        %v4264 = vshll.u32 %v3807, 16
        %v4266 = vrot.slane %v4264, 5
        %v4267 = vsel %vm1433, %v4262, %v4266
        %v4268 = vshrl.u32 %v3807, 16
        %v4270 = vrot.slane %v4268, 4
        %v4271 = vor.u32 %v4270, %v4266
        %v4272 = vrot.slane %v4271, 4
        %v4274 = vshll.u32 %v3854, 16
        %v4276 = vrot.slane %v4274, 5
        %v4277 = vsel %vm1433, %v4272, %v4276
        %v4279 = vshrl.u32 %v3808, 16
        %v4281 = vrot.slane %v4279, 4
        %v4282 = vshll.u32 %v3808, 16
        %v4284 = vrot.slane %v4282, 5
        %v4285 = vor.u32 %v4281, %v4284
        %v4286 = vrot.slane %v4285, 4
        %v4288 = vshll.u32 %v3809, 16
        %v4290 = vrot.slane %v4288, 5
        %v4291 = vsel %vm1433, %v4286, %v4290
        %v4292 = vshrl.u32 %v3809, 16
        %v4294 = vrot.slane %v4292, 4
        %v4295 = vor.u32 %v4294, %v4290
        %v4296 = vrot.slane %v4295, 4
        %v4298 = vshll.u32 %v3855, 16
        %v4300 = vrot.slane %v4298, 5
        %v4301 = vsel %vm1433, %v4296, %v4300
        %v4303 = vshrl.u32 %v3810, 16
        %v4305 = vrot.slane %v4303, 4
        %v4306 = vshll.u32 %v3810, 16
        %v4308 = vrot.slane %v4306, 5
        %v4309 = vor.u32 %v4305, %v4308
        %v4310 = vrot.slane %v4309, 4
        %v4312 = vshll.u32 %v3811, 16
        %v4314 = vrot.slane %v4312, 5
        %v4315 = vsel %vm1433, %v4310, %v4314
        %v4316 = vshrl.u32 %v3811, 16
        %v4318 = vrot.slane %v4316, 4
        %v4319 = vor.u32 %v4318, %v4314
        %v4320 = vrot.slane %v4319, 4
        %v4322 = vshll.u32 %v3856, 16
        %v4324 = vrot.slane %v4322, 5
        %v4325 = vsel %vm1433, %v4320, %v4324
        %v4327 = vshrl.u32 %v3812, 16
        %v4329 = vrot.slane %v4327, 4
        %v4330 = vshll.u32 %v3812, 16
        %v4332 = vrot.slane %v4330, 5
        %v4333 = vor.u32 %v4329, %v4332
        %v4334 = vrot.slane %v4333, 4
        %v4336 = vshll.u32 %v3813, 16
        %v4338 = vrot.slane %v4336, 5
        %v4339 = vsel %vm1433, %v4334, %v4338
        %v4340 = vshrl.u32 %v3813, 16
        %v4342 = vrot.slane %v4340, 4
        %v4343 = vor.u32 %v4342, %v4338
        %v4344 = vrot.slane %v4343, 4
        %v4346 = vshll.u32 %v3857, 16
        %v4348 = vrot.slane %v4346, 5
        %v4349 = vsel %vm1433, %v4344, %v4348
        %v4351 = vshrl.u32 %v3814, 16
        %v4353 = vrot.slane %v4351, 4
        %v4354 = vshll.u32 %v3814, 16
        %v4356 = vrot.slane %v4354, 5
        %v4357 = vor.u32 %v4353, %v4356
        %v4358 = vrot.slane %v4357, 4
        %v4360 = vshll.u32 %v3815, 16
        %v4362 = vrot.slane %v4360, 5
        %v4363 = vsel %vm1433, %v4358, %v4362
        %v4364 = vshrl.u32 %v3815, 16
        %v4366 = vrot.slane %v4364, 4
        %v4367 = vor.u32 %v4366, %v4362
        %v4368 = vrot.slane %v4367, 4
        %v4370 = vshll.u32 %v3858, 16
        %v4372 = vrot.slane %v4370, 5
        %v4373 = vsel %vm1433, %v4368, %v4372
        %v4375 = vshrl.u32 %v3816, 16
        %v4377 = vrot.slane %v4375, 4
        %v4378 = vshll.u32 %v3816, 16
        %v4380 = vrot.slane %v4378, 5
        %v4381 = vor.u32 %v4377, %v4380
        %v4382 = vrot.slane %v4381, 4
        %v4384 = vshll.u32 %v3817, 16
        %v4386 = vrot.slane %v4384, 5
        %v4387 = vsel %vm1433, %v4382, %v4386
        %v4388 = vshrl.u32 %v3817, 16
        %v4390 = vrot.slane %v4388, 4
        %v4391 = vor.u32 %v4390, %v4386
        %v4392 = vrot.slane %v4391, 4
        %v4394 = vshll.u32 %v3859, 16
        %v4396 = vrot.slane %v4394, 5
        %v4397 = vsel %vm1433, %v4392, %v4396
        %v4399 = vshrl.u32 %v3818, 16
        %v4401 = vrot.slane %v4399, 4
        %v4402 = vshll.u32 %v3818, 16
        %v4404 = vrot.slane %v4402, 5
        %v4405 = vor.u32 %v4401, %v4404
        %v4406 = vrot.slane %v4405, 4
        %v4408 = vshll.u32 %v3819, 16
        %v4410 = vrot.slane %v4408, 5
        %v4411 = vsel %vm1433, %v4406, %v4410
        %v4412 = vshrl.u32 %v3819, 16
        %v4414 = vrot.slane %v4412, 4
        %v4415 = vor.u32 %v4414, %v4410
        %v4416 = vrot.slane %v4415, 4
        %v4418 = vshll.u32 %v3860, 16
        %v4420 = vrot.slane %v4418, 5
        %v4421 = vsel %vm1433, %v4416, %v4420
        %v4423 = vshrl.u32 %v3820, 16
        %v4425 = vrot.slane %v4423, 4
        %v4426 = vshll.u32 %v3820, 16
        %v4428 = vrot.slane %v4426, 5
        %v4429 = vor.u32 %v4425, %v4428
        %v4430 = vrot.slane %v4429, 4
        %v4432 = vshll.u32 %v3821, 16
        %v4434 = vrot.slane %v4432, 5
        %v4435 = vsel %vm1433, %v4430, %v4434
        %v4436 = vshrl.u32 %v3821, 16
        %v4438 = vrot.slane %v4436, 4
        %v4439 = vor.u32 %v4438, %v4434
        %v4440 = vrot.slane %v4439, 4
        %v4442 = vshll.u32 %v3861, 16
        %v4444 = vrot.slane %v4442, 5
        %v4445 = vsel %vm1433, %v4440, %v4444
        %v4447 = vshrl.u32 %v3822, 16
        %v4449 = vrot.slane %v4447, 4
        %v4450 = vshll.u32 %v3822, 16
        %v4452 = vrot.slane %v4450, 5
        %v4453 = vor.u32 %v4449, %v4452
        %v4454 = vrot.slane %v4453, 4
        %v4456 = vshll.u32 %v3823, 16
        %v4458 = vrot.slane %v4456, 5
        %v4459 = vsel %vm1433, %v4454, %v4458
        %v4460 = vshrl.u32 %v3823, 16
        %v4462 = vrot.slane %v4460, 4
        %v4463 = vor.u32 %v4462, %v4458
        %v4464 = vrot.slane %v4463, 4
        %v4466 = vshll.u32 %v3862, 16
        %v4468 = vrot.slane %v4466, 5
        %v4469 = vsel %vm1433, %v4464, %v4468
        %v4471 = vshrl.u32 %v3824, 16
        %v4473 = vrot.slane %v4471, 4
        %v4474 = vshll.u32 %v3824, 16
        %v4476 = vrot.slane %v4474, 5
        %v4477 = vor.u32 %v4473, %v4476
        %v4478 = vrot.slane %v4477, 4
        %v4480 = vshll.u32 %v3825, 16
        %v4482 = vrot.slane %v4480, 5
        %v4483 = vsel %vm1433, %v4478, %v4482
        %v4484 = vshrl.u32 %v3825, 16
        %v4486 = vrot.slane %v4484, 4
        %v4487 = vor.u32 %v4486, %v4482
        %v4488 = vrot.slane %v4487, 4
        %v4490 = vshll.u32 %v3863, 16
        %v4492 = vrot.slane %v4490, 5
        %v4493 = vsel %vm1433, %v4488, %v4492
        %v4495 = vshrl.u32 %v3826, 16
        %v4497 = vrot.slane %v4495, 4
        %v4498 = vshll.u32 %v3826, 16
        %v4500 = vrot.slane %v4498, 5
        %v4501 = vor.u32 %v4497, %v4500
        %v4502 = vrot.slane %v4501, 4
        %v4504 = vshll.u32 %v3827, 16
        %v4506 = vrot.slane %v4504, 5
        %v4507 = vsel %vm1433, %v4502, %v4506
        %v4508 = vshrl.u32 %v3827, 16
        %v4510 = vrot.slane %v4508, 4
        %v4511 = vor.u32 %v4510, %v4506
        %v4512 = vrot.slane %v4511, 4
        %v4514 = vshll.u32 %v3864, 16
        %v4516 = vrot.slane %v4514, 5
        %v4517 = vsel %vm1433, %v4512, %v4516
        %v4519 = vshrl.u32 %v3828, 16
        %v4521 = vrot.slane %v4519, 4
        %v4522 = vshll.u32 %v3828, 16
        %v4524 = vrot.slane %v4522, 5
        %v4525 = vor.u32 %v4521, %v4524
        %v4526 = vrot.slane %v4525, 4
        %v4528 = vshll.u32 %v3829, 16
        %v4530 = vrot.slane %v4528, 5
        %v4531 = vsel %vm1433, %v4526, %v4530
        %v4532 = vshrl.u32 %v3829, 16
        %v4534 = vrot.slane %v4532, 4
        %v4535 = vor.u32 %v4534, %v4530
        %v4536 = vrot.slane %v4535, 4
        %v4538 = vshll.u32 %v3865, 16
        %v4540 = vrot.slane %v4538, 5
        %v4541 = vsel %vm1433, %v4536, %v4540
        %v4543 = vshrl.u32 %v3830, 16
        %v4545 = vrot.slane %v4543, 4
        %v4546 = vshll.u32 %v3830, 16
        %v4548 = vrot.slane %v4546, 5
        %v4549 = vor.u32 %v4545, %v4548
        %v4550 = vrot.slane %v4549, 4
        %v4552 = vshll.u32 %v3831, 16
        %v4554 = vrot.slane %v4552, 5
        %v4555 = vsel %vm1433, %v4550, %v4554
        %v4556 = vshrl.u32 %v3831, 16
        %v4558 = vrot.slane %v4556, 4
        %v4559 = vor.u32 %v4558, %v4554
        %v4560 = vrot.slane %v4559, 4
        %v4562 = vshll.u32 %v3866, 16
        %v4564 = vrot.slane %v4562, 5
        %v4565 = vsel %vm1433, %v4560, %v4564
        %v4567 = vshrl.u32 %v3832, 16
        %v4569 = vrot.slane %v4567, 4
        %v4570 = vshll.u32 %v3832, 16
        %v4572 = vrot.slane %v4570, 5
        %v4573 = vor.u32 %v4569, %v4572
        %v4574 = vrot.slane %v4573, 4
        %v4576 = vshll.u32 %v3833, 16
        %v4578 = vrot.slane %v4576, 5
        %v4579 = vsel %vm1433, %v4574, %v4578
        %v4580 = vshrl.u32 %v3833, 16
        %v4582 = vrot.slane %v4580, 4
        %v4583 = vor.u32 %v4582, %v4578
        %v4584 = vrot.slane %v4583, 4
        %v4586 = vshll.u32 %v3867, 16
        %v4588 = vrot.slane %v4586, 5
        %v4589 = vsel %vm1433, %v4584, %v4588
        %v4591 = vshrl.u32 %v3834, 16
        %v4593 = vrot.slane %v4591, 4
        %v4594 = vshll.u32 %v3834, 16
        %v4596 = vrot.slane %v4594, 5
        %v4597 = vor.u32 %v4593, %v4596
        %v4598 = vrot.slane %v4597, 4
        %v4600 = vshll.u32 %v3835, 16
        %v4602 = vrot.slane %v4600, 5
        %v4603 = vsel %vm1433, %v4598, %v4602
        %v4604 = vshrl.u32 %v3835, 16
        %v4606 = vrot.slane %v4604, 4
        %v4607 = vor.u32 %v4606, %v4602
        %v4608 = vrot.slane %v4607, 4
        %v4610 = vshll.u32 %v3868, 16
        %v4612 = vrot.slane %v4610, 5
        %v4613 = vsel %vm1433, %v4608, %v4612
        %v4615 = vshrl.u32 %v3836, 16
        %v4617 = vrot.slane %v4615, 4
        %v4618 = vshll.u32 %v3836, 16
        %v4620 = vrot.slane %v4618, 5
        %v4621 = vor.u32 %v4617, %v4620
        %v4622 = vrot.slane %v4621, 4
        %v4624 = vshll.u32 %v3837, 16
        %v4626 = vrot.slane %v4624, 5
        %v4627 = vsel %vm1433, %v4622, %v4626
        %v4628 = vshrl.u32 %v3837, 16
        %v4630 = vrot.slane %v4628, 4
        %v4631 = vor.u32 %v4630, %v4626
        %v4632 = vrot.slane %v4631, 4
        %v4634 = vshll.u32 %v3869, 16
        %v4636 = vrot.slane %v4634, 5
        %v4637 = vsel %vm1433, %v4632, %v4636
        %v4638 = vld [vmem:[%s3773] sm:$0xe]
        %v4639 = vld [vmem:[%s3773 + $0xc] sm:$0xe]
        %v4640 = vld [vmem:[%s3773 + $0x18] sm:$0xe]
        %v4641 = vld [vmem:[%s3773 + $0x24] sm:$0xe]
        %v4642 = vld [vmem:[%s3773 + $0x30] sm:$0xe]
        %v4643 = vld [vmem:[%s3773 + $0x3c] sm:$0xe]
        %v4644 = vld [vmem:[%s3773 + $0x48] sm:$0xe]
        %v4645 = vld [vmem:[%s3773 + $0x54] sm:$0xe]
        %v4646 = vld [vmem:[%s3773 + $0x60] sm:$0xe]
        %v4647 = vld [vmem:[%s3773 + $0x6c] sm:$0xe]
        %v4648 = vld [vmem:[%s3773 + $0x78] sm:$0xe]
        %v4649 = vld [vmem:[%s3773 + $0x84] sm:$0xe]
        %v4650 = vld [vmem:[%s3773 + $0x90] sm:$0xe]
        %v4651 = vld [vmem:[%s3773 + $0x9c] sm:$0xe]
        %v4652 = vld [vmem:[%s3773 + $0xa8] sm:$0xe]
        %v4653 = vld [vmem:[%s3773 + $0xb4] sm:$0xe]
        %v4654 = vld [vmem:[%s3773 + $0xd8] sm:$0xe]
        %v4655 = vld [vmem:[%s3773 + $0xe4] sm:$0xe]
        %v4656 = vld [vmem:[%s3773 + $0xf0] sm:$0xe]
        %v4657 = vld [vmem:[%s3773 + $0xfc] sm:$0xe]
        %v4658 = vld [vmem:[%s3773 + $0x108] sm:$0xe]
        %v4659 = vld [vmem:[%s3773 + $0x114] sm:$0xe]
        %v4660 = vld [vmem:[%s3773 + $0x120] sm:$0xe]
        %v4661 = vld [vmem:[%s3773 + $0x12c] sm:$0xe]
        %v4662 = vld [vmem:[%s3773 + $0x138] sm:$0xe]
        %v4663 = vld [vmem:[%s3773 + $0x144] sm:$0xe]
        %v4664 = vld [vmem:[%s3773 + $0x150] sm:$0xe]
        %v4665 = vld [vmem:[%s3773 + $0x15c] sm:$0xe]
        %v4666 = vld [vmem:[%s3773 + $0x168] sm:$0xe]
        %v4667 = vld [vmem:[%s3773 + $0x174] sm:$0xe]
        %v4668 = vld [vmem:[%s3773 + $0x180] sm:$0xe]
        %v4669 = vld [vmem:[%s3773 + $0x18c] sm:$0xe]
        %v4766 = vrot.slane %v4638, 5
        %v4767 = vrot.slane %v4766, 4
        %v4768 = vrot.slane %v3775, 5
        %v4769 = vsel %vm2332, %v4767, %v4768
        %v4770 = vrot.slane %v4768, 4
        %v4771 = vrot.slane %v3838, 5
        %v4772 = vsel %vm2332, %v4770, %v4771
        %v4773 = vrot.slane %v4639, 5
        %v4774 = vrot.slane %v4773, 4
        %v4775 = vrot.slane %v3777, 5
        %v4776 = vsel %vm2332, %v4774, %v4775
        %v4777 = vrot.slane %v4775, 4
        %v4778 = vrot.slane %v3839, 5
        %v4779 = vsel %vm2332, %v4777, %v4778
        %v4780 = vrot.slane %v4640, 5
        %v4781 = vrot.slane %v4780, 4
        %v4782 = vrot.slane %v3779, 5
        %v4783 = vsel %vm2332, %v4781, %v4782
        %v4784 = vrot.slane %v4782, 4
        %v4785 = vrot.slane %v3840, 5
        %v4786 = vsel %vm2332, %v4784, %v4785
        %v4787 = vrot.slane %v4641, 5
        %v4788 = vrot.slane %v4787, 4
        %v4789 = vrot.slane %v3781, 5
        %v4790 = vsel %vm2332, %v4788, %v4789
        %v4791 = vrot.slane %v4789, 4
        %v4792 = vrot.slane %v3841, 5
        %v4793 = vsel %vm2332, %v4791, %v4792
        %v4794 = vrot.slane %v4642, 5
        %v4795 = vrot.slane %v4794, 4
        %v4796 = vrot.slane %v3783, 5
        %v4797 = vsel %vm2332, %v4795, %v4796
        %v4798 = vrot.slane %v4796, 4
        %v4799 = vrot.slane %v3842, 5
        %v4800 = vsel %vm2332, %v4798, %v4799
        %v4801 = vrot.slane %v4643, 5
        %v4802 = vrot.slane %v4801, 4
        %v4803 = vrot.slane %v3785, 5
        %v4804 = vsel %vm2332, %v4802, %v4803
        %v4805 = vrot.slane %v4803, 4
        %v4806 = vrot.slane %v3843, 5
        %v4807 = vsel %vm2332, %v4805, %v4806
        %v4808 = vrot.slane %v4644, 5
        %v4809 = vrot.slane %v4808, 4
        %v4810 = vrot.slane %v3787, 5
        %v4811 = vsel %vm2332, %v4809, %v4810
        %v4812 = vrot.slane %v4810, 4
        %v4813 = vrot.slane %v3844, 5
        %v4814 = vsel %vm2332, %v4812, %v4813
        %v4815 = vrot.slane %v4645, 5
        %v4816 = vrot.slane %v4815, 4
        %v4817 = vrot.slane %v3789, 5
        %v4818 = vsel %vm2332, %v4816, %v4817
        %v4819 = vrot.slane %v4817, 4
        %v4820 = vrot.slane %v3845, 5
        %v4821 = vsel %vm2332, %v4819, %v4820
        %v4822 = vrot.slane %v4646, 5
        %v4823 = vrot.slane %v4822, 4
        %v4824 = vrot.slane %v3791, 5
        %v4825 = vsel %vm2332, %v4823, %v4824
        %v4826 = vrot.slane %v4824, 4
        %v4827 = vrot.slane %v3846, 5
        %v4828 = vsel %vm2332, %v4826, %v4827
        %v4829 = vrot.slane %v4647, 5
        %v4830 = vrot.slane %v4829, 4
        %v4831 = vrot.slane %v3793, 5
        %v4832 = vsel %vm2332, %v4830, %v4831
        %v4833 = vrot.slane %v4831, 4
        %v4834 = vrot.slane %v3847, 5
        %v4835 = vsel %vm2332, %v4833, %v4834
        %v4836 = vrot.slane %v4648, 5
        %v4837 = vrot.slane %v4836, 4
        %v4838 = vrot.slane %v3795, 5
        %v4839 = vsel %vm2332, %v4837, %v4838
        %v4840 = vrot.slane %v4838, 4
        %v4841 = vrot.slane %v3848, 5
        %v4842 = vsel %vm2332, %v4840, %v4841
        %v4843 = vrot.slane %v4649, 5
        %v4844 = vrot.slane %v4843, 4
        %v4845 = vrot.slane %v3797, 5
        %v4846 = vsel %vm2332, %v4844, %v4845
        %v4847 = vrot.slane %v4845, 4
        %v4848 = vrot.slane %v3849, 5
        %v4849 = vsel %vm2332, %v4847, %v4848
        %v4850 = vrot.slane %v4650, 5
        %v4851 = vrot.slane %v4850, 4
        %v4852 = vrot.slane %v3799, 5
        %v4853 = vsel %vm2332, %v4851, %v4852
        %v4854 = vrot.slane %v4852, 4
        %v4855 = vrot.slane %v3850, 5
        %v4856 = vsel %vm2332, %v4854, %v4855
        %v4857 = vrot.slane %v4651, 5
        %v4858 = vrot.slane %v4857, 4
        %v4859 = vrot.slane %v3801, 5
        %v4860 = vsel %vm2332, %v4858, %v4859
        %v4861 = vrot.slane %v4859, 4
        %v4862 = vrot.slane %v3851, 5
        %v4863 = vsel %vm2332, %v4861, %v4862
        %v4864 = vrot.slane %v4652, 5
        %v4865 = vrot.slane %v4864, 4
        %v4866 = vrot.slane %v3803, 5
        %v4867 = vsel %vm2332, %v4865, %v4866
        %v4868 = vrot.slane %v4866, 4
        %v4869 = vrot.slane %v3852, 5
        %v4870 = vsel %vm2332, %v4868, %v4869
        %v4871 = vrot.slane %v4653, 5
        %v4872 = vrot.slane %v4871, 4
        %v4873 = vrot.slane %v3805, 5
        %v4874 = vsel %vm2332, %v4872, %v4873
        %v4875 = vrot.slane %v4873, 4
        %v4876 = vrot.slane %v3853, 5
        %v4877 = vsel %vm2332, %v4875, %v4876
        %v4878 = vrot.slane %v4654, 5
        %v4879 = vrot.slane %v4878, 4
        %v4880 = vrot.slane %v3807, 5
        %v4881 = vsel %vm2332, %v4879, %v4880
        %v4882 = vrot.slane %v4880, 4
        %v4883 = vrot.slane %v3854, 5
        %v4884 = vsel %vm2332, %v4882, %v4883
        %v4885 = vrot.slane %v4655, 5
        %v4886 = vrot.slane %v4885, 4
        %v4887 = vrot.slane %v3809, 5
        %v4888 = vsel %vm2332, %v4886, %v4887
        %v4889 = vrot.slane %v4887, 4
        %v4890 = vrot.slane %v3855, 5
        %v4891 = vsel %vm2332, %v4889, %v4890
        %v4892 = vrot.slane %v4656, 5
        %v4893 = vrot.slane %v4892, 4
        %v4894 = vrot.slane %v3811, 5
        %v4895 = vsel %vm2332, %v4893, %v4894
        %v4896 = vrot.slane %v4894, 4
        %v4897 = vrot.slane %v3856, 5
        %v4898 = vsel %vm2332, %v4896, %v4897
        %v4899 = vrot.slane %v4657, 5
        %v4900 = vrot.slane %v4899, 4
        %v4901 = vrot.slane %v3813, 5
        %v4902 = vsel %vm2332, %v4900, %v4901
        %v4903 = vrot.slane %v4901, 4
        %v4904 = vrot.slane %v3857, 5
        %v4905 = vsel %vm2332, %v4903, %v4904
        %v4906 = vrot.slane %v4658, 5
        %v4907 = vrot.slane %v4906, 4
        %v4908 = vrot.slane %v3815, 5
        %v4909 = vsel %vm2332, %v4907, %v4908
        %v4910 = vrot.slane %v4908, 4
        %v4911 = vrot.slane %v3858, 5
        %v4912 = vsel %vm2332, %v4910, %v4911
        %v4913 = vrot.slane %v4659, 5
        %v4914 = vrot.slane %v4913, 4
        %v4915 = vrot.slane %v3817, 5
        %v4916 = vsel %vm2332, %v4914, %v4915
        %v4917 = vrot.slane %v4915, 4
        %v4918 = vrot.slane %v3859, 5
        %v4919 = vsel %vm2332, %v4917, %v4918
        %v4920 = vrot.slane %v4660, 5
        %v4921 = vrot.slane %v4920, 4
        %v4922 = vrot.slane %v3819, 5
        %v4923 = vsel %vm2332, %v4921, %v4922
        %v4924 = vrot.slane %v4922, 4
        %v4925 = vrot.slane %v3860, 5
        %v4926 = vsel %vm2332, %v4924, %v4925
        %v4927 = vrot.slane %v4661, 5
        %v4928 = vrot.slane %v4927, 4
        %v4929 = vrot.slane %v3821, 5
        %v4930 = vsel %vm2332, %v4928, %v4929
        %v4931 = vrot.slane %v4929, 4
        %v4932 = vrot.slane %v3861, 5
        %v4933 = vsel %vm2332, %v4931, %v4932
        %v4934 = vrot.slane %v4662, 5
        %v4935 = vrot.slane %v4934, 4
        %v4936 = vrot.slane %v3823, 5
        %v4937 = vsel %vm2332, %v4935, %v4936
        %v4938 = vrot.slane %v4936, 4
        %v4939 = vrot.slane %v3862, 5
        %v4940 = vsel %vm2332, %v4938, %v4939
        %v4941 = vrot.slane %v4663, 5
        %v4942 = vrot.slane %v4941, 4
        %v4943 = vrot.slane %v3825, 5
        %v4944 = vsel %vm2332, %v4942, %v4943
        %v4945 = vrot.slane %v4943, 4
        %v4946 = vrot.slane %v3863, 5
        %v4947 = vsel %vm2332, %v4945, %v4946
        %v4948 = vrot.slane %v4664, 5
        %v4949 = vrot.slane %v4948, 4
        %v4950 = vrot.slane %v3827, 5
        %v4951 = vsel %vm2332, %v4949, %v4950
        %v4952 = vrot.slane %v4950, 4
        %v4953 = vrot.slane %v3864, 5
        %v4954 = vsel %vm2332, %v4952, %v4953
        %v4955 = vrot.slane %v4665, 5
        %v4956 = vrot.slane %v4955, 4
        %v4957 = vrot.slane %v3829, 5
        %v4958 = vsel %vm2332, %v4956, %v4957
        %v4959 = vrot.slane %v4957, 4
        %v4960 = vrot.slane %v3865, 5
        %v4961 = vsel %vm2332, %v4959, %v4960
        %v4962 = vrot.slane %v4666, 5
        %v4963 = vrot.slane %v4962, 4
        %v4964 = vrot.slane %v3831, 5
        %v4965 = vsel %vm2332, %v4963, %v4964
        %v4966 = vrot.slane %v4964, 4
        %v4967 = vrot.slane %v3866, 5
        %v4968 = vsel %vm2332, %v4966, %v4967
        %v4969 = vrot.slane %v4667, 5
        %v4970 = vrot.slane %v4969, 4
        %v4971 = vrot.slane %v3833, 5
        %v4972 = vsel %vm2332, %v4970, %v4971
        %v4973 = vrot.slane %v4971, 4
        %v4974 = vrot.slane %v3867, 5
        %v4975 = vsel %vm2332, %v4973, %v4974
        %v4976 = vrot.slane %v4668, 5
        %v4977 = vrot.slane %v4976, 4
        %v4978 = vrot.slane %v3835, 5
        %v4979 = vsel %vm2332, %v4977, %v4978
        %v4980 = vrot.slane %v4978, 4
        %v4981 = vrot.slane %v3868, 5
        %v4982 = vsel %vm2332, %v4980, %v4981
        %v4983 = vrot.slane %v4669, 5
        %v4984 = vrot.slane %v4983, 4
        %v4985 = vrot.slane %v3837, 5
        %v4986 = vsel %vm2332, %v4984, %v4985
        %v4987 = vrot.slane %v4985, 4
        %v4988 = vrot.slane %v3869, 5
        %v4989 = vsel %vm2332, %v4987, %v4988
        %v5022 = vunpack.c.l.b16 %v1335
        %v5023 = vunpack.c.l.b16 %v1336
        %v5024 = vunpack.c.l.b16 %v1337
        %v5025 = vunpack.c.l.b16 %v1338
        %v5026 = vunpack.c.l.b16 %v1339
        %v5027 = vunpack.c.l.b16 %v1340
        %v5028 = vunpack.c.l.b16 %v1341
        %v5029 = vunpack.c.l.b16 %v1342
        %v5030 = vunpack.c.l.b16 %v1343
        %v5031 = vunpack.c.l.b16 %v1344
        %v5032 = vunpack.c.l.b16 %v1345
        %v5033 = vunpack.c.l.b16 %v1346
        %v5034 = vunpack.c.l.b16 %v1347
        %v5035 = vunpack.c.l.b16 %v1348
        %v5036 = vunpack.c.l.b16 %v1349
        %v5037 = vunpack.c.l.b16 %v1350
        %v5038 = vunpack.c.l.b16 %v1351
        %v5039 = vunpack.c.l.b16 %v1352
        %v5040 = vunpack.c.l.b16 %v1353
        %v5041 = vunpack.c.l.b16 %v1354
        %v5042 = vunpack.c.l.b16 %v1355
        %v5043 = vunpack.c.l.b16 %v1356
        %v5044 = vunpack.c.l.b16 %v1357
        %v5045 = vunpack.c.l.b16 %v1358
        %v5046 = vunpack.c.l.b16 %v1359
        %v5047 = vunpack.c.l.b16 %v1360
        %v5048 = vunpack.c.l.b16 %v1361
        %v5049 = vunpack.c.l.b16 %v1362
        %v5050 = vunpack.c.l.b16 %v1363
        %v5051 = vunpack.c.l.b16 %v1364
        %v5052 = vunpack.c.l.b16 %v1365
        %v5053 = vunpack.c.l.b16 %v1366
        %v5054 = vunpack.c.l.b16 %v1367
        %v5055 = vunpack.c.l.b16 %v1368
        %v5056 = vunpack.c.l.b16 %v1369
        %v5057 = vunpack.c.l.b16 %v1370
        %v5058 = vunpack.c.l.b16 %v1371
        %v5059 = vunpack.c.l.b16 %v1372
        %v5060 = vunpack.c.l.b16 %v1373
        %v5061 = vunpack.c.l.b16 %v1374
        %v5062 = vunpack.c.l.b16 %v1375
        %v5063 = vunpack.c.l.b16 %v1376
        %v5064 = vunpack.c.l.b16 %v1377
        %v5065 = vunpack.c.l.b16 %v1378
        %v5066 = vunpack.c.l.b16 %v1379
        %v5067 = vunpack.c.l.b16 %v1380
        %v5068 = vunpack.c.l.b16 %v1381
        %v5069 = vunpack.c.l.b16 %v1382
        %v5070 = vunpack.c.l.b16 %v1383
        %v5071 = vunpack.c.l.b16 %v1384
        %v5072 = vunpack.c.l.b16 %v1385
        %v5073 = vunpack.c.l.b16 %v1386
        %v5074 = vunpack.c.l.b16 %v1387
        %v5075 = vunpack.c.l.b16 %v1388
        %v5076 = vunpack.c.l.b16 %v1389
        %v5077 = vunpack.c.l.b16 %v1390
        %v5078 = vunpack.c.l.b16 %v1391
        %v5079 = vunpack.c.l.b16 %v1392
        %v5080 = vunpack.c.l.b16 %v1393
        %v5081 = vunpack.c.l.b16 %v1394
        %v5082 = vunpack.c.l.b16 %v1395
        %v5083 = vunpack.c.l.b16 %v1396
        %v5084 = vunpack.c.l.b16 %v1397
        %v5085 = vunpack.c.l.b16 %v1398
        %v5086 = vpack.c.b16 %v5023, %v5022
        %v5087 = vpack.c.b16 %v5025, %v5024
        %v5088 = vpack.c.b16 %v5027, %v5026
        %v5089 = vpack.c.b16 %v5029, %v5028
        %v5090 = vpack.c.b16 %v5031, %v5030
        %v5091 = vpack.c.b16 %v5033, %v5032
        %v5092 = vpack.c.b16 %v5035, %v5034
        %v5093 = vpack.c.b16 %v5037, %v5036
        %v5094 = vpack.c.b16 %v5039, %v5038
        %v5095 = vpack.c.b16 %v5041, %v5040
        %v5096 = vpack.c.b16 %v5043, %v5042
        %v5097 = vpack.c.b16 %v5045, %v5044
        %v5098 = vpack.c.b16 %v5047, %v5046
        %v5099 = vpack.c.b16 %v5049, %v5048
        %v5100 = vpack.c.b16 %v5051, %v5050
        %v5101 = vpack.c.b16 %v5053, %v5052
        %v5102 = vpack.c.b16 %v5055, %v5054
        %v5103 = vpack.c.b16 %v5057, %v5056
        %v5104 = vpack.c.b16 %v5059, %v5058
        %v5105 = vpack.c.b16 %v5061, %v5060
        %v5106 = vpack.c.b16 %v5063, %v5062
        %v5107 = vpack.c.b16 %v5065, %v5064
        %v5108 = vpack.c.b16 %v5067, %v5066
        %v5109 = vpack.c.b16 %v5069, %v5068
        %v5110 = vpack.c.b16 %v5071, %v5070
        %v5111 = vpack.c.b16 %v5073, %v5072
        %v5112 = vpack.c.b16 %v5075, %v5074
        %v5113 = vpack.c.b16 %v5077, %v5076
        %v5114 = vpack.c.b16 %v5079, %v5078
        %v5115 = vpack.c.b16 %v5081, %v5080
        %v5116 = vpack.c.b16 %v5083, %v5082
        %v5117 = vpack.c.b16 %v5085, %v5084
        %v5118 = vunpack.c.l.b16 %v1447
        %v5119 = vunpack.c.l.b16 %v1457
        %v5120 = vunpack.c.l.b16 %v1471
        %v5121 = vunpack.c.l.b16 %v1481
        %v5122 = vunpack.c.l.b16 %v1495
        %v5123 = vunpack.c.l.b16 %v1505
        %v5124 = vunpack.c.l.b16 %v1519
        %v5125 = vunpack.c.l.b16 %v1529
        %v5126 = vunpack.c.l.b16 %v1543
        %v5127 = vunpack.c.l.b16 %v1553
        %v5128 = vunpack.c.l.b16 %v1567
        %v5129 = vunpack.c.l.b16 %v1577
        %v5130 = vunpack.c.l.b16 %v1591
        %v5131 = vunpack.c.l.b16 %v1601
        %v5132 = vunpack.c.l.b16 %v1615
        %v5133 = vunpack.c.l.b16 %v1625
        %v5134 = vunpack.c.l.b16 %v1639
        %v5135 = vunpack.c.l.b16 %v1649
        %v5136 = vunpack.c.l.b16 %v1663
        %v5137 = vunpack.c.l.b16 %v1673
        %v5138 = vunpack.c.l.b16 %v1687
        %v5139 = vunpack.c.l.b16 %v1697
        %v5140 = vunpack.c.l.b16 %v1711
        %v5141 = vunpack.c.l.b16 %v1721
        %v5142 = vunpack.c.l.b16 %v1735
        %v5143 = vunpack.c.l.b16 %v1745
        %v5144 = vunpack.c.l.b16 %v1759
        %v5145 = vunpack.c.l.b16 %v1769
        %v5146 = vunpack.c.l.b16 %v1783
        %v5147 = vunpack.c.l.b16 %v1793
        %v5148 = vunpack.c.l.b16 %v1807
        %v5149 = vunpack.c.l.b16 %v1817
        %v5150 = vunpack.c.l.b16 %v1831
        %v5151 = vunpack.c.l.b16 %v1841
        %v5152 = vunpack.c.l.b16 %v1855
        %v5153 = vunpack.c.l.b16 %v1865
        %v5154 = vunpack.c.l.b16 %v1879
        %v5155 = vunpack.c.l.b16 %v1889
        %v5156 = vunpack.c.l.b16 %v1903
        %v5157 = vunpack.c.l.b16 %v1913
        %v5158 = vunpack.c.l.b16 %v1927
        %v5159 = vunpack.c.l.b16 %v1937
        %v5160 = vunpack.c.l.b16 %v1951
        %v5161 = vunpack.c.l.b16 %v1961
        %v5162 = vunpack.c.l.b16 %v1975
        %v5163 = vunpack.c.l.b16 %v1985
        %v5164 = vunpack.c.l.b16 %v1999
        %v5165 = vunpack.c.l.b16 %v2009
        %v5166 = vunpack.c.l.b16 %v2023
        %v5167 = vunpack.c.l.b16 %v2033
        %v5168 = vunpack.c.l.b16 %v2047
        %v5169 = vunpack.c.l.b16 %v2057
        %v5170 = vunpack.c.l.b16 %v2071
        %v5171 = vunpack.c.l.b16 %v2081
        %v5172 = vunpack.c.l.b16 %v2095
        %v5173 = vunpack.c.l.b16 %v2105
        %v5174 = vunpack.c.l.b16 %v2119
        %v5175 = vunpack.c.l.b16 %v2129
        %v5176 = vunpack.c.l.b16 %v2143
        %v5177 = vunpack.c.l.b16 %v2153
        %v5178 = vunpack.c.l.b16 %v2167
        %v5179 = vunpack.c.l.b16 %v2177
        %v5180 = vunpack.c.l.b16 %v2191
        %v5181 = vunpack.c.l.b16 %v2201
        %v5182 = vpack.c.b16 %v5119, %v5118
        %v5183 = vpack.c.b16 %v5121, %v5120
        %v5184 = vpack.c.b16 %v5123, %v5122
        %v5185 = vpack.c.b16 %v5125, %v5124
        %v5186 = vpack.c.b16 %v5127, %v5126
        %v5187 = vpack.c.b16 %v5129, %v5128
        %v5188 = vpack.c.b16 %v5131, %v5130
        %v5189 = vpack.c.b16 %v5133, %v5132
        %v5190 = vpack.c.b16 %v5135, %v5134
        %v5191 = vpack.c.b16 %v5137, %v5136
        %v5192 = vpack.c.b16 %v5139, %v5138
        %v5193 = vpack.c.b16 %v5141, %v5140
        %v5194 = vpack.c.b16 %v5143, %v5142
        %v5195 = vpack.c.b16 %v5145, %v5144
        %v5196 = vpack.c.b16 %v5147, %v5146
        %v5197 = vpack.c.b16 %v5149, %v5148
        %v5198 = vpack.c.b16 %v5151, %v5150
        %v5199 = vpack.c.b16 %v5153, %v5152
        %v5200 = vpack.c.b16 %v5155, %v5154
        %v5201 = vpack.c.b16 %v5157, %v5156
        %v5202 = vpack.c.b16 %v5159, %v5158
        %v5203 = vpack.c.b16 %v5161, %v5160
        %v5204 = vpack.c.b16 %v5163, %v5162
        %v5205 = vpack.c.b16 %v5165, %v5164
        %v5206 = vpack.c.b16 %v5167, %v5166
        %v5207 = vpack.c.b16 %v5169, %v5168
        %v5208 = vpack.c.b16 %v5171, %v5170
        %v5209 = vpack.c.b16 %v5173, %v5172
        %v5210 = vpack.c.b16 %v5175, %v5174
        %v5211 = vpack.c.b16 %v5177, %v5176
        %v5212 = vpack.c.b16 %v5179, %v5178
        %v5213 = vpack.c.b16 %v5181, %v5180
        %5214 = vrot.lane.b32.xlu0 %v5182, 16
        %v5215 = vpop.permute.xlu0 %5214
        %5216 = vrot.lane.b32.xlu0 %v5183, 16
        %v5217 = vpop.permute.xlu0 %5216
        %5218 = vrot.lane.b32.xlu0 %v5184, 16
        %v5219 = vpop.permute.xlu0 %5218
        %5220 = vrot.lane.b32.xlu0 %v5185, 16
        %v5221 = vpop.permute.xlu0 %5220
        %5222 = vrot.lane.b32.xlu0 %v5186, 16
        %v5223 = vpop.permute.xlu0 %5222
        %5224 = vrot.lane.b32.xlu0 %v5187, 16
        %v5225 = vpop.permute.xlu0 %5224
        %5226 = vrot.lane.b32.xlu0 %v5188, 16
        %v5227 = vpop.permute.xlu0 %5226
        %5228 = vrot.lane.b32.xlu0 %v5189, 16
        %v5229 = vpop.permute.xlu0 %5228
        %5230 = vrot.lane.b32.xlu0 %v5190, 16
        %v5231 = vpop.permute.xlu0 %5230
        %5232 = vrot.lane.b32.xlu0 %v5191, 16
        %v5233 = vpop.permute.xlu0 %5232
        %5234 = vrot.lane.b32.xlu0 %v5192, 16
        %v5235 = vpop.permute.xlu0 %5234
        %5236 = vrot.lane.b32.xlu0 %v5193, 16
        %v5237 = vpop.permute.xlu0 %5236
        %5238 = vrot.lane.b32.xlu0 %v5194, 16
        %v5239 = vpop.permute.xlu0 %5238
        %5240 = vrot.lane.b32.xlu0 %v5195, 16
        %v5241 = vpop.permute.xlu0 %5240
        %5242 = vrot.lane.b32.xlu0 %v5196, 16
        %v5243 = vpop.permute.xlu0 %5242
        %5244 = vrot.lane.b32.xlu0 %v5197, 16
        %v5245 = vpop.permute.xlu0 %5244
        %5246 = vrot.lane.b32.xlu0 %v5198, 16
        %v5247 = vpop.permute.xlu0 %5246
        %5248 = vrot.lane.b32.xlu0 %v5199, 16
        %v5249 = vpop.permute.xlu0 %5248
        %5250 = vrot.lane.b32.xlu0 %v5200, 16
        %v5251 = vpop.permute.xlu0 %5250
        %5252 = vrot.lane.b32.xlu0 %v5201, 16
        %v5253 = vpop.permute.xlu0 %5252
        %5254 = vrot.lane.b32.xlu0 %v5202, 16
        %v5255 = vpop.permute.xlu0 %5254
        %5256 = vrot.lane.b32.xlu0 %v5203, 16
        %v5257 = vpop.permute.xlu0 %5256
        %5258 = vrot.lane.b32.xlu0 %v5204, 16
        %v5259 = vpop.permute.xlu0 %5258
        %5260 = vrot.lane.b32.xlu0 %v5205, 16
        %v5261 = vpop.permute.xlu0 %5260
        %5262 = vrot.lane.b32.xlu0 %v5206, 16
        %v5263 = vpop.permute.xlu0 %5262
        %5264 = vrot.lane.b32.xlu0 %v5207, 16
        %v5265 = vpop.permute.xlu0 %5264
        %5266 = vrot.lane.b32.xlu0 %v5208, 16
        %v5267 = vpop.permute.xlu0 %5266
        %5268 = vrot.lane.b32.xlu0 %v5209, 16
        %v5269 = vpop.permute.xlu0 %5268
        %5270 = vrot.lane.b32.xlu0 %v5210, 16
        %v5271 = vpop.permute.xlu0 %5270
        %5272 = vrot.lane.b32.xlu0 %v5211, 16
        %v5273 = vpop.permute.xlu0 %5272
        %5274 = vrot.lane.b32.xlu0 %v5212, 16
        %v5275 = vpop.permute.xlu0 %5274
        %5276 = vrot.lane.b32.xlu0 %v5213, 16
        %v5277 = vpop.permute.xlu0 %5276
        %v5278 = vunpack.c.l.b16 %v2336
        %v5279 = vunpack.c.l.b16 %v2339
        %v5280 = vunpack.c.l.b16 %v2343
        %v5281 = vunpack.c.l.b16 %v2346
        %v5282 = vunpack.c.l.b16 %v2350
        %v5283 = vunpack.c.l.b16 %v2353
        %v5284 = vunpack.c.l.b16 %v2357
        %v5285 = vunpack.c.l.b16 %v2360
        %v5286 = vunpack.c.l.b16 %v2364
        %v5287 = vunpack.c.l.b16 %v2367
        %v5288 = vunpack.c.l.b16 %v2371
        %v5289 = vunpack.c.l.b16 %v2374
        %v5290 = vunpack.c.l.b16 %v2378
        %v5291 = vunpack.c.l.b16 %v2381
        %v5292 = vunpack.c.l.b16 %v2385
        %v5293 = vunpack.c.l.b16 %v2388
        %v5294 = vunpack.c.l.b16 %v2392
        %v5295 = vunpack.c.l.b16 %v2395
        %v5296 = vunpack.c.l.b16 %v2399
        %v5297 = vunpack.c.l.b16 %v2402
        %v5298 = vunpack.c.l.b16 %v2406
        %v5299 = vunpack.c.l.b16 %v2409
        %v5300 = vunpack.c.l.b16 %v2413
        %v5301 = vunpack.c.l.b16 %v2416
        %v5302 = vunpack.c.l.b16 %v2420
        %v5303 = vunpack.c.l.b16 %v2423
        %v5304 = vunpack.c.l.b16 %v2427
        %v5305 = vunpack.c.l.b16 %v2430
        %v5306 = vunpack.c.l.b16 %v2434
        %v5307 = vunpack.c.l.b16 %v2437
        %v5308 = vunpack.c.l.b16 %v2441
        %v5309 = vunpack.c.l.b16 %v2444
        %v5310 = vunpack.c.l.b16 %v2448
        %v5311 = vunpack.c.l.b16 %v2451
        %v5312 = vunpack.c.l.b16 %v2455
        %v5313 = vunpack.c.l.b16 %v2458
        %v5314 = vunpack.c.l.b16 %v2462
        %v5315 = vunpack.c.l.b16 %v2465
        %v5316 = vunpack.c.l.b16 %v2469
        %v5317 = vunpack.c.l.b16 %v2472
        %v5318 = vunpack.c.l.b16 %v2476
        %v5319 = vunpack.c.l.b16 %v2479
        %v5320 = vunpack.c.l.b16 %v2483
        %v5321 = vunpack.c.l.b16 %v2486
        %v5322 = vunpack.c.l.b16 %v2490
        %v5323 = vunpack.c.l.b16 %v2493
        %v5324 = vunpack.c.l.b16 %v2497
        %v5325 = vunpack.c.l.b16 %v2500
        %v5326 = vunpack.c.l.b16 %v2504
        %v5327 = vunpack.c.l.b16 %v2507
        %v5328 = vunpack.c.l.b16 %v2511
        %v5329 = vunpack.c.l.b16 %v2514
        %v5330 = vunpack.c.l.b16 %v2518
        %v5331 = vunpack.c.l.b16 %v2521
        %v5332 = vunpack.c.l.b16 %v2525
        %v5333 = vunpack.c.l.b16 %v2528
        %v5334 = vunpack.c.l.b16 %v2532
        %v5335 = vunpack.c.l.b16 %v2535
        %v5336 = vunpack.c.l.b16 %v2539
        %v5337 = vunpack.c.l.b16 %v2542
        %v5338 = vunpack.c.l.b16 %v2546
        %v5339 = vunpack.c.l.b16 %v2549
        %v5340 = vunpack.c.l.b16 %v2553
        %v5341 = vunpack.c.l.b16 %v2556
        %v5342 = vpack.c.b16 %v5279, %v5278
        %v5343 = vpack.c.b16 %v5281, %v5280
        %v5344 = vpack.c.b16 %v5283, %v5282
        %v5345 = vpack.c.b16 %v5285, %v5284
        %v5346 = vpack.c.b16 %v5287, %v5286
        %v5347 = vpack.c.b16 %v5289, %v5288
        %v5348 = vpack.c.b16 %v5291, %v5290
        %v5349 = vpack.c.b16 %v5293, %v5292
        %v5350 = vpack.c.b16 %v5295, %v5294
        %v5351 = vpack.c.b16 %v5297, %v5296
        %v5352 = vpack.c.b16 %v5299, %v5298
        %v5353 = vpack.c.b16 %v5301, %v5300
        %v5354 = vpack.c.b16 %v5303, %v5302
        %v5355 = vpack.c.b16 %v5305, %v5304
        %v5356 = vpack.c.b16 %v5307, %v5306
        %v5357 = vpack.c.b16 %v5309, %v5308
        %v5358 = vpack.c.b16 %v5311, %v5310
        %v5359 = vpack.c.b16 %v5313, %v5312
        %v5360 = vpack.c.b16 %v5315, %v5314
        %v5361 = vpack.c.b16 %v5317, %v5316
        %v5362 = vpack.c.b16 %v5319, %v5318
        %v5363 = vpack.c.b16 %v5321, %v5320
        %v5364 = vpack.c.b16 %v5323, %v5322
        %v5365 = vpack.c.b16 %v5325, %v5324
        %v5366 = vpack.c.b16 %v5327, %v5326
        %v5367 = vpack.c.b16 %v5329, %v5328
        %v5368 = vpack.c.b16 %v5331, %v5330
        %v5369 = vpack.c.b16 %v5333, %v5332
        %v5370 = vpack.c.b16 %v5335, %v5334
        %v5371 = vpack.c.b16 %v5337, %v5336
        %v5372 = vpack.c.b16 %v5339, %v5338
        %v5373 = vpack.c.b16 %v5341, %v5340
        %5374 = vrot.lane.b32.xlu0 %v5342, 32
        %v5375 = vpop.permute.xlu0 %5374
        %5376 = vrot.lane.b32.xlu0 %v5343, 32
        %v5377 = vpop.permute.xlu0 %5376
        %5378 = vrot.lane.b32.xlu0 %v5344, 32
        %v5379 = vpop.permute.xlu0 %5378
        %5380 = vrot.lane.b32.xlu0 %v5345, 32
        %v5381 = vpop.permute.xlu0 %5380
        %5382 = vrot.lane.b32.xlu0 %v5346, 32
        %v5383 = vpop.permute.xlu0 %5382
        %5384 = vrot.lane.b32.xlu0 %v5347, 32
        %v5385 = vpop.permute.xlu0 %5384
        %5386 = vrot.lane.b32.xlu0 %v5348, 32
        %v5387 = vpop.permute.xlu0 %5386
        %5388 = vrot.lane.b32.xlu0 %v5349, 32
        %v5389 = vpop.permute.xlu0 %5388
        %5390 = vrot.lane.b32.xlu0 %v5350, 32
        %v5391 = vpop.permute.xlu0 %5390
        %5392 = vrot.lane.b32.xlu0 %v5351, 32
        %v5393 = vpop.permute.xlu0 %5392
        %5394 = vrot.lane.b32.xlu0 %v5352, 32
        %v5395 = vpop.permute.xlu0 %5394
        %5396 = vrot.lane.b32.xlu0 %v5353, 32
        %v5397 = vpop.permute.xlu0 %5396
        %5398 = vrot.lane.b32.xlu0 %v5354, 32
        %v5399 = vpop.permute.xlu0 %5398
        %5400 = vrot.lane.b32.xlu0 %v5355, 32
        %v5401 = vpop.permute.xlu0 %5400
        %5402 = vrot.lane.b32.xlu0 %v5356, 32
        %v5403 = vpop.permute.xlu0 %5402
        %5404 = vrot.lane.b32.xlu0 %v5357, 32
        %v5405 = vpop.permute.xlu0 %5404
        %5406 = vrot.lane.b32.xlu0 %v5358, 32
        %v5407 = vpop.permute.xlu0 %5406
        %5408 = vrot.lane.b32.xlu0 %v5359, 32
        %v5409 = vpop.permute.xlu0 %5408
        %5410 = vrot.lane.b32.xlu0 %v5360, 32
        %v5411 = vpop.permute.xlu0 %5410
        %5412 = vrot.lane.b32.xlu0 %v5361, 32
        %v5413 = vpop.permute.xlu0 %5412
        %5414 = vrot.lane.b32.xlu0 %v5362, 32
        %v5415 = vpop.permute.xlu0 %5414
        %5416 = vrot.lane.b32.xlu0 %v5363, 32
        %v5417 = vpop.permute.xlu0 %5416
        %5418 = vrot.lane.b32.xlu0 %v5364, 32
        %v5419 = vpop.permute.xlu0 %5418
        %5420 = vrot.lane.b32.xlu0 %v5365, 32
        %v5421 = vpop.permute.xlu0 %5420
        %5422 = vrot.lane.b32.xlu0 %v5366, 32
        %v5423 = vpop.permute.xlu0 %5422
        %5424 = vrot.lane.b32.xlu0 %v5367, 32
        %v5425 = vpop.permute.xlu0 %5424
        %5426 = vrot.lane.b32.xlu0 %v5368, 32
        %v5427 = vpop.permute.xlu0 %5426
        %5428 = vrot.lane.b32.xlu0 %v5369, 32
        %v5429 = vpop.permute.xlu0 %5428
        %5430 = vrot.lane.b32.xlu0 %v5370, 32
        %v5431 = vpop.permute.xlu0 %5430
        %5432 = vrot.lane.b32.xlu0 %v5371, 32
        %v5433 = vpop.permute.xlu0 %5432
        %5434 = vrot.lane.b32.xlu0 %v5372, 32
        %v5435 = vpop.permute.xlu0 %5434
        %5436 = vrot.lane.b32.xlu0 %v5373, 32
        %v5437 = vpop.permute.xlu0 %5436
        %v5470 = vunpack.c.l.b16 %v2557
        %v5471 = vunpack.c.l.b16 %v2558
        %v5472 = vunpack.c.l.b16 %v2559
        %v5473 = vunpack.c.l.b16 %v2560
        %v5474 = vunpack.c.l.b16 %v2561
        %v5475 = vunpack.c.l.b16 %v2562
        %v5476 = vunpack.c.l.b16 %v2563
        %v5477 = vunpack.c.l.b16 %v2564
        %v5478 = vunpack.c.l.b16 %v2565
        %v5479 = vunpack.c.l.b16 %v2566
        %v5480 = vunpack.c.l.b16 %v2567
        %v5481 = vunpack.c.l.b16 %v2568
        %v5482 = vunpack.c.l.b16 %v2569
        %v5483 = vunpack.c.l.b16 %v2570
        %v5484 = vunpack.c.l.b16 %v2571
        %v5485 = vunpack.c.l.b16 %v2572
        %v5486 = vunpack.c.l.b16 %v2573
        %v5487 = vunpack.c.l.b16 %v2574
        %v5488 = vunpack.c.l.b16 %v2575
        %v5489 = vunpack.c.l.b16 %v2576
        %v5490 = vunpack.c.l.b16 %v2577
        %v5491 = vunpack.c.l.b16 %v2578
        %v5492 = vunpack.c.l.b16 %v2579
        %v5493 = vunpack.c.l.b16 %v2580
        %v5494 = vunpack.c.l.b16 %v2581
        %v5495 = vunpack.c.l.b16 %v2582
        %v5496 = vunpack.c.l.b16 %v2583
        %v5497 = vunpack.c.l.b16 %v2584
        %v5498 = vunpack.c.l.b16 %v2585
        %v5499 = vunpack.c.l.b16 %v2586
        %v5500 = vunpack.c.l.b16 %v2587
        %v5501 = vunpack.c.l.b16 %v2588
        %v5502 = vunpack.c.l.b16 %v2589
        %v5503 = vunpack.c.l.b16 %v2590
        %v5504 = vunpack.c.l.b16 %v2591
        %v5505 = vunpack.c.l.b16 %v2592
        %v5506 = vunpack.c.l.b16 %v2593
        %v5507 = vunpack.c.l.b16 %v2594
        %v5508 = vunpack.c.l.b16 %v2595
        %v5509 = vunpack.c.l.b16 %v2596
        %v5510 = vunpack.c.l.b16 %v2597
        %v5511 = vunpack.c.l.b16 %v2598
        %v5512 = vunpack.c.l.b16 %v2599
        %v5513 = vunpack.c.l.b16 %v2600
        %v5514 = vunpack.c.l.b16 %v2601
        %v5515 = vunpack.c.l.b16 %v2602
        %v5516 = vunpack.c.l.b16 %v2603
        %v5517 = vunpack.c.l.b16 %v2604
        %v5518 = vunpack.c.l.b16 %v2605
        %v5519 = vunpack.c.l.b16 %v2606
        %v5520 = vunpack.c.l.b16 %v2607
        %v5521 = vunpack.c.l.b16 %v2608
        %v5522 = vunpack.c.l.b16 %v2609
        %v5523 = vunpack.c.l.b16 %v2610
        %v5524 = vunpack.c.l.b16 %v2611
        %v5525 = vunpack.c.l.b16 %v2612
        %v5526 = vunpack.c.l.b16 %v2613
        %v5527 = vunpack.c.l.b16 %v2614
        %v5528 = vunpack.c.l.b16 %v2615
        %v5529 = vunpack.c.l.b16 %v2616
        %v5530 = vunpack.c.l.b16 %v2617
        %v5531 = vunpack.c.l.b16 %v2618
        %v5532 = vunpack.c.l.b16 %v2619
        %v5533 = vunpack.c.l.b16 %v2620
        %v5534 = vpack.c.b16 %v5471, %v5470
        %v5535 = vpack.c.b16 %v5473, %v5472
        %v5536 = vpack.c.b16 %v5475, %v5474
        %v5537 = vpack.c.b16 %v5477, %v5476
        %v5538 = vpack.c.b16 %v5479, %v5478
        %v5539 = vpack.c.b16 %v5481, %v5480
        %v5540 = vpack.c.b16 %v5483, %v5482
        %v5541 = vpack.c.b16 %v5485, %v5484
        %v5542 = vpack.c.b16 %v5487, %v5486
        %v5543 = vpack.c.b16 %v5489, %v5488
        %v5544 = vpack.c.b16 %v5491, %v5490
        %v5545 = vpack.c.b16 %v5493, %v5492
        %v5546 = vpack.c.b16 %v5495, %v5494
        %v5547 = vpack.c.b16 %v5497, %v5496
        %v5548 = vpack.c.b16 %v5499, %v5498
        %v5549 = vpack.c.b16 %v5501, %v5500
        %v5550 = vpack.c.b16 %v5503, %v5502
        %v5551 = vpack.c.b16 %v5505, %v5504
        %v5552 = vpack.c.b16 %v5507, %v5506
        %v5553 = vpack.c.b16 %v5509, %v5508
        %v5554 = vpack.c.b16 %v5511, %v5510
        %v5555 = vpack.c.b16 %v5513, %v5512
        %v5556 = vpack.c.b16 %v5515, %v5514
        %v5557 = vpack.c.b16 %v5517, %v5516
        %v5558 = vpack.c.b16 %v5519, %v5518
        %v5559 = vpack.c.b16 %v5521, %v5520
        %v5560 = vpack.c.b16 %v5523, %v5522
        %v5561 = vpack.c.b16 %v5525, %v5524
        %v5562 = vpack.c.b16 %v5527, %v5526
        %v5563 = vpack.c.b16 %v5529, %v5528
        %v5564 = vpack.c.b16 %v5531, %v5530
        %v5565 = vpack.c.b16 %v5533, %v5532
        %5566 = vrot.lane.b32.xlu0 %v5534, 48
        %v5567 = vpop.permute.xlu0 %5566
        %5568 = vrot.lane.b32.xlu0 %v5535, 48
        %v5569 = vpop.permute.xlu0 %5568
        %5570 = vrot.lane.b32.xlu0 %v5536, 48
        %v5571 = vpop.permute.xlu0 %5570
        %5572 = vrot.lane.b32.xlu0 %v5537, 48
        %v5573 = vpop.permute.xlu0 %5572
        %5574 = vrot.lane.b32.xlu0 %v5538, 48
        %v5575 = vpop.permute.xlu0 %5574
        %5576 = vrot.lane.b32.xlu0 %v5539, 48
        %v5577 = vpop.permute.xlu0 %5576
        %5578 = vrot.lane.b32.xlu0 %v5540, 48
        %v5579 = vpop.permute.xlu0 %5578
        %5580 = vrot.lane.b32.xlu0 %v5541, 48
        %v5581 = vpop.permute.xlu0 %5580
        %5582 = vrot.lane.b32.xlu0 %v5542, 48
        %v5583 = vpop.permute.xlu0 %5582
        %5584 = vrot.lane.b32.xlu0 %v5543, 48
        %v5585 = vpop.permute.xlu0 %5584
        %5586 = vrot.lane.b32.xlu0 %v5544, 48
        %v5587 = vpop.permute.xlu0 %5586
        %5588 = vrot.lane.b32.xlu0 %v5545, 48
        %v5589 = vpop.permute.xlu0 %5588
        %5590 = vrot.lane.b32.xlu0 %v5546, 48
        %v5591 = vpop.permute.xlu0 %5590
        %5592 = vrot.lane.b32.xlu0 %v5547, 48
        %v5593 = vpop.permute.xlu0 %5592
        %5594 = vrot.lane.b32.xlu0 %v5548, 48
        %v5595 = vpop.permute.xlu0 %5594
        %5596 = vrot.lane.b32.xlu0 %v5549, 48
        %v5597 = vpop.permute.xlu0 %5596
        %5598 = vrot.lane.b32.xlu0 %v5550, 48
        %v5599 = vpop.permute.xlu0 %5598
        %5600 = vrot.lane.b32.xlu0 %v5551, 48
        %v5601 = vpop.permute.xlu0 %5600
        %5602 = vrot.lane.b32.xlu0 %v5552, 48
        %v5603 = vpop.permute.xlu0 %5602
        %5604 = vrot.lane.b32.xlu0 %v5553, 48
        %v5605 = vpop.permute.xlu0 %5604
        %5606 = vrot.lane.b32.xlu0 %v5554, 48
        %v5607 = vpop.permute.xlu0 %5606
        %5608 = vrot.lane.b32.xlu0 %v5555, 48
        %v5609 = vpop.permute.xlu0 %5608
        %5610 = vrot.lane.b32.xlu0 %v5556, 48
        %v5611 = vpop.permute.xlu0 %5610
        %5612 = vrot.lane.b32.xlu0 %v5557, 48
        %v5613 = vpop.permute.xlu0 %5612
        %5614 = vrot.lane.b32.xlu0 %v5558, 48
        %v5615 = vpop.permute.xlu0 %5614
        %5616 = vrot.lane.b32.xlu0 %v5559, 48
        %v5617 = vpop.permute.xlu0 %5616
        %5618 = vrot.lane.b32.xlu0 %v5560, 48
        %v5619 = vpop.permute.xlu0 %5618
        %5620 = vrot.lane.b32.xlu0 %v5561, 48
        %v5621 = vpop.permute.xlu0 %5620
        %5622 = vrot.lane.b32.xlu0 %v5562, 48
        %v5623 = vpop.permute.xlu0 %5622
        %5624 = vrot.lane.b32.xlu0 %v5563, 48
        %v5625 = vpop.permute.xlu0 %5624
        %5626 = vrot.lane.b32.xlu0 %v5564, 48
        %v5627 = vpop.permute.xlu0 %5626
        %5628 = vrot.lane.b32.xlu0 %v5565, 48
        %v5629 = vpop.permute.xlu0 %5628
        %v5630 = vunpack.c.l.b16 %v2666
        %v5631 = vunpack.c.l.b16 %v2676
        %v5632 = vunpack.c.l.b16 %v2690
        %v5633 = vunpack.c.l.b16 %v2700
        %v5634 = vunpack.c.l.b16 %v2714
        %v5635 = vunpack.c.l.b16 %v2724
        %v5636 = vunpack.c.l.b16 %v2738
        %v5637 = vunpack.c.l.b16 %v2748
        %v5638 = vunpack.c.l.b16 %v2762
        %v5639 = vunpack.c.l.b16 %v2772
        %v5640 = vunpack.c.l.b16 %v2786
        %v5641 = vunpack.c.l.b16 %v2796
        %v5642 = vunpack.c.l.b16 %v2810
        %v5643 = vunpack.c.l.b16 %v2820
        %v5644 = vunpack.c.l.b16 %v2834
        %v5645 = vunpack.c.l.b16 %v2844
        %v5646 = vunpack.c.l.b16 %v2858
        %v5647 = vunpack.c.l.b16 %v2868
        %v5648 = vunpack.c.l.b16 %v2882
        %v5649 = vunpack.c.l.b16 %v2892
        %v5650 = vunpack.c.l.b16 %v2906
        %v5651 = vunpack.c.l.b16 %v2916
        %v5652 = vunpack.c.l.b16 %v2930
        %v5653 = vunpack.c.l.b16 %v2940
        %v5654 = vunpack.c.l.b16 %v2954
        %v5655 = vunpack.c.l.b16 %v2964
        %v5656 = vunpack.c.l.b16 %v2978
        %v5657 = vunpack.c.l.b16 %v2988
        %v5658 = vunpack.c.l.b16 %v3002
        %v5659 = vunpack.c.l.b16 %v3012
        %v5660 = vunpack.c.l.b16 %v3026
        %v5661 = vunpack.c.l.b16 %v3036
        %v5662 = vunpack.c.l.b16 %v3050
        %v5663 = vunpack.c.l.b16 %v3060
        %v5664 = vunpack.c.l.b16 %v3074
        %v5665 = vunpack.c.l.b16 %v3084
        %v5666 = vunpack.c.l.b16 %v3098
        %v5667 = vunpack.c.l.b16 %v3108
        %v5668 = vunpack.c.l.b16 %v3122
        %v5669 = vunpack.c.l.b16 %v3132
        %v5670 = vunpack.c.l.b16 %v3146
        %v5671 = vunpack.c.l.b16 %v3156
        %v5672 = vunpack.c.l.b16 %v3170
        %v5673 = vunpack.c.l.b16 %v3180
        %v5674 = vunpack.c.l.b16 %v3194
        %v5675 = vunpack.c.l.b16 %v3204
        %v5676 = vunpack.c.l.b16 %v3218
        %v5677 = vunpack.c.l.b16 %v3228
        %v5678 = vunpack.c.l.b16 %v3242
        %v5679 = vunpack.c.l.b16 %v3252
        %v5680 = vunpack.c.l.b16 %v3266
        %v5681 = vunpack.c.l.b16 %v3276
        %v5682 = vunpack.c.l.b16 %v3290
        %v5683 = vunpack.c.l.b16 %v3300
        %v5684 = vunpack.c.l.b16 %v3314
        %v5685 = vunpack.c.l.b16 %v3324
        %v5686 = vunpack.c.l.b16 %v3338
        %v5687 = vunpack.c.l.b16 %v3348
        %v5688 = vunpack.c.l.b16 %v3362
        %v5689 = vunpack.c.l.b16 %v3372
        %v5690 = vunpack.c.l.b16 %v3386
        %v5691 = vunpack.c.l.b16 %v3396
        %v5692 = vunpack.c.l.b16 %v3410
        %v5693 = vunpack.c.l.b16 %v3420
        %v5694 = vpack.c.b16 %v5631, %v5630
        %v5695 = vpack.c.b16 %v5633, %v5632
        %v5696 = vpack.c.b16 %v5635, %v5634
        %v5697 = vpack.c.b16 %v5637, %v5636
        %v5698 = vpack.c.b16 %v5639, %v5638
        %v5699 = vpack.c.b16 %v5641, %v5640
        %v5700 = vpack.c.b16 %v5643, %v5642
        %v5701 = vpack.c.b16 %v5645, %v5644
        %v5702 = vpack.c.b16 %v5647, %v5646
        %v5703 = vpack.c.b16 %v5649, %v5648
        %v5704 = vpack.c.b16 %v5651, %v5650
        %v5705 = vpack.c.b16 %v5653, %v5652
        %v5706 = vpack.c.b16 %v5655, %v5654
        %v5707 = vpack.c.b16 %v5657, %v5656
        %v5708 = vpack.c.b16 %v5659, %v5658
        %v5709 = vpack.c.b16 %v5661, %v5660
        %v5710 = vpack.c.b16 %v5663, %v5662
        %v5711 = vpack.c.b16 %v5665, %v5664
        %v5712 = vpack.c.b16 %v5667, %v5666
        %v5713 = vpack.c.b16 %v5669, %v5668
        %v5714 = vpack.c.b16 %v5671, %v5670
        %v5715 = vpack.c.b16 %v5673, %v5672
        %v5716 = vpack.c.b16 %v5675, %v5674
        %v5717 = vpack.c.b16 %v5677, %v5676
        %v5718 = vpack.c.b16 %v5679, %v5678
        %v5719 = vpack.c.b16 %v5681, %v5680
        %v5720 = vpack.c.b16 %v5683, %v5682
        %v5721 = vpack.c.b16 %v5685, %v5684
        %v5722 = vpack.c.b16 %v5687, %v5686
        %v5723 = vpack.c.b16 %v5689, %v5688
        %v5724 = vpack.c.b16 %v5691, %v5690
        %v5725 = vpack.c.b16 %v5693, %v5692
        %5726 = vrot.lane.b32.xlu0 %v5694, 64
        %v5727 = vpop.permute.xlu0 %5726
        %5728 = vrot.lane.b32.xlu0 %v5695, 64
        %v5729 = vpop.permute.xlu0 %5728
        %5730 = vrot.lane.b32.xlu0 %v5696, 64
        %v5731 = vpop.permute.xlu0 %5730
        %5732 = vrot.lane.b32.xlu0 %v5697, 64
        %v5733 = vpop.permute.xlu0 %5732
        %5734 = vrot.lane.b32.xlu0 %v5698, 64
        %v5735 = vpop.permute.xlu0 %5734
        %5736 = vrot.lane.b32.xlu0 %v5699, 64
        %v5737 = vpop.permute.xlu0 %5736
        %5738 = vrot.lane.b32.xlu0 %v5700, 64
        %v5739 = vpop.permute.xlu0 %5738
        %5740 = vrot.lane.b32.xlu0 %v5701, 64
        %v5741 = vpop.permute.xlu0 %5740
        %5742 = vrot.lane.b32.xlu0 %v5702, 64
        %v5743 = vpop.permute.xlu0 %5742
        %5744 = vrot.lane.b32.xlu0 %v5703, 64
        %v5745 = vpop.permute.xlu0 %5744
        %5746 = vrot.lane.b32.xlu0 %v5704, 64
        %v5747 = vpop.permute.xlu0 %5746
        %5748 = vrot.lane.b32.xlu0 %v5705, 64
        %v5749 = vpop.permute.xlu0 %5748
        %5750 = vrot.lane.b32.xlu0 %v5706, 64
        %v5751 = vpop.permute.xlu0 %5750
        %5752 = vrot.lane.b32.xlu0 %v5707, 64
        %v5753 = vpop.permute.xlu0 %5752
        %5754 = vrot.lane.b32.xlu0 %v5708, 64
        %v5755 = vpop.permute.xlu0 %5754
        %5756 = vrot.lane.b32.xlu0 %v5709, 64
        %v5757 = vpop.permute.xlu0 %5756
        %5758 = vrot.lane.b32.xlu0 %v5710, 64
        %v5759 = vpop.permute.xlu0 %5758
        %5760 = vrot.lane.b32.xlu0 %v5711, 64
        %v5761 = vpop.permute.xlu0 %5760
        %5762 = vrot.lane.b32.xlu0 %v5712, 64
        %v5763 = vpop.permute.xlu0 %5762
        %5764 = vrot.lane.b32.xlu0 %v5713, 64
        %v5765 = vpop.permute.xlu0 %5764
        %5766 = vrot.lane.b32.xlu0 %v5714, 64
        %v5767 = vpop.permute.xlu0 %5766
        %5768 = vrot.lane.b32.xlu0 %v5715, 64
        %v5769 = vpop.permute.xlu0 %5768
        %5770 = vrot.lane.b32.xlu0 %v5716, 64
        %v5771 = vpop.permute.xlu0 %5770
        %5772 = vrot.lane.b32.xlu0 %v5717, 64
        %v5773 = vpop.permute.xlu0 %5772
        %5774 = vrot.lane.b32.xlu0 %v5718, 64
        %v5775 = vpop.permute.xlu0 %5774
        %5776 = vrot.lane.b32.xlu0 %v5719, 64
        %v5777 = vpop.permute.xlu0 %5776
        %5778 = vrot.lane.b32.xlu0 %v5720, 64
        %v5779 = vpop.permute.xlu0 %5778
        %5780 = vrot.lane.b32.xlu0 %v5721, 64
        %v5781 = vpop.permute.xlu0 %5780
        %5782 = vrot.lane.b32.xlu0 %v5722, 64
        %v5783 = vpop.permute.xlu0 %5782
        %5784 = vrot.lane.b32.xlu0 %v5723, 64
        %v5785 = vpop.permute.xlu0 %5784
        %5786 = vrot.lane.b32.xlu0 %v5724, 64
        %v5787 = vpop.permute.xlu0 %5786
        %5788 = vrot.lane.b32.xlu0 %v5725, 64
        %v5789 = vpop.permute.xlu0 %5788
        %v5790 = vunpack.c.l.b16 %v3552
        %v5791 = vunpack.c.l.b16 %v3555
        %v5792 = vunpack.c.l.b16 %v3559
        %v5793 = vunpack.c.l.b16 %v3562
        %v5794 = vunpack.c.l.b16 %v3566
        %v5795 = vunpack.c.l.b16 %v3569
        %v5796 = vunpack.c.l.b16 %v3573
        %v5797 = vunpack.c.l.b16 %v3576
        %v5798 = vunpack.c.l.b16 %v3580
        %v5799 = vunpack.c.l.b16 %v3583
        %v5800 = vunpack.c.l.b16 %v3587
        %v5801 = vunpack.c.l.b16 %v3590
        %v5802 = vunpack.c.l.b16 %v3594
        %v5803 = vunpack.c.l.b16 %v3597
        %v5804 = vunpack.c.l.b16 %v3601
        %v5805 = vunpack.c.l.b16 %v3604
        %v5806 = vunpack.c.l.b16 %v3608
        %v5807 = vunpack.c.l.b16 %v3611
        %v5808 = vunpack.c.l.b16 %v3615
        %v5809 = vunpack.c.l.b16 %v3618
        %v5810 = vunpack.c.l.b16 %v3622
        %v5811 = vunpack.c.l.b16 %v3625
        %v5812 = vunpack.c.l.b16 %v3629
        %v5813 = vunpack.c.l.b16 %v3632
        %v5814 = vunpack.c.l.b16 %v3636
        %v5815 = vunpack.c.l.b16 %v3639
        %v5816 = vunpack.c.l.b16 %v3643
        %v5817 = vunpack.c.l.b16 %v3646
        %v5818 = vunpack.c.l.b16 %v3650
        %v5819 = vunpack.c.l.b16 %v3653
        %v5820 = vunpack.c.l.b16 %v3657
        %v5821 = vunpack.c.l.b16 %v3660
        %v5822 = vunpack.c.l.b16 %v3664
        %v5823 = vunpack.c.l.b16 %v3667
        %v5824 = vunpack.c.l.b16 %v3671
        %v5825 = vunpack.c.l.b16 %v3674
        %v5826 = vunpack.c.l.b16 %v3678
        %v5827 = vunpack.c.l.b16 %v3681
        %v5828 = vunpack.c.l.b16 %v3685
        %v5829 = vunpack.c.l.b16 %v3688
        %v5830 = vunpack.c.l.b16 %v3692
        %v5831 = vunpack.c.l.b16 %v3695
        %v5832 = vunpack.c.l.b16 %v3699
        %v5833 = vunpack.c.l.b16 %v3702
        %v5834 = vunpack.c.l.b16 %v3706
        %v5835 = vunpack.c.l.b16 %v3709
        %v5836 = vunpack.c.l.b16 %v3713
        %v5837 = vunpack.c.l.b16 %v3716
        %v5838 = vunpack.c.l.b16 %v3720
        %v5839 = vunpack.c.l.b16 %v3723
        %v5840 = vunpack.c.l.b16 %v3727
        %v5841 = vunpack.c.l.b16 %v3730
        %v5842 = vunpack.c.l.b16 %v3734
        %v5843 = vunpack.c.l.b16 %v3737
        %v5844 = vunpack.c.l.b16 %v3741
        %v5845 = vunpack.c.l.b16 %v3744
        %v5846 = vunpack.c.l.b16 %v3748
        %v5847 = vunpack.c.l.b16 %v3751
        %v5848 = vunpack.c.l.b16 %v3755
        %v5849 = vunpack.c.l.b16 %v3758
        %v5850 = vunpack.c.l.b16 %v3762
        %v5851 = vunpack.c.l.b16 %v3765
        %v5852 = vunpack.c.l.b16 %v3769
        %v5853 = vunpack.c.l.b16 %v3772
        %v5854 = vpack.c.b16 %v5791, %v5790
        %v5855 = vpack.c.b16 %v5793, %v5792
        %v5856 = vpack.c.b16 %v5795, %v5794
        %v5857 = vpack.c.b16 %v5797, %v5796
        %v5858 = vpack.c.b16 %v5799, %v5798
        %v5859 = vpack.c.b16 %v5801, %v5800
        %v5860 = vpack.c.b16 %v5803, %v5802
        %v5861 = vpack.c.b16 %v5805, %v5804
        %v5862 = vpack.c.b16 %v5807, %v5806
        %v5863 = vpack.c.b16 %v5809, %v5808
        %v5864 = vpack.c.b16 %v5811, %v5810
        %v5865 = vpack.c.b16 %v5813, %v5812
        %v5866 = vpack.c.b16 %v5815, %v5814
        %v5867 = vpack.c.b16 %v5817, %v5816
        %v5868 = vpack.c.b16 %v5819, %v5818
        %v5869 = vpack.c.b16 %v5821, %v5820
        %v5870 = vpack.c.b16 %v5823, %v5822
        %v5871 = vpack.c.b16 %v5825, %v5824
        %v5872 = vpack.c.b16 %v5827, %v5826
        %v5873 = vpack.c.b16 %v5829, %v5828
        %v5874 = vpack.c.b16 %v5831, %v5830
        %v5875 = vpack.c.b16 %v5833, %v5832
        %v5876 = vpack.c.b16 %v5835, %v5834
        %v5877 = vpack.c.b16 %v5837, %v5836
        %v5878 = vpack.c.b16 %v5839, %v5838
        %v5879 = vpack.c.b16 %v5841, %v5840
        %v5880 = vpack.c.b16 %v5843, %v5842
        %v5881 = vpack.c.b16 %v5845, %v5844
        %v5882 = vpack.c.b16 %v5847, %v5846
        %v5883 = vpack.c.b16 %v5849, %v5848
        %v5884 = vpack.c.b16 %v5851, %v5850
        %v5885 = vpack.c.b16 %v5853, %v5852
        %5886 = vrot.lane.b32.xlu0 %v5854, 80
        %v5887 = vpop.permute.xlu0 %5886
        %5888 = vrot.lane.b32.xlu0 %v5855, 80
        %v5889 = vpop.permute.xlu0 %5888
        %5890 = vrot.lane.b32.xlu0 %v5856, 80
        %v5891 = vpop.permute.xlu0 %5890
        %5892 = vrot.lane.b32.xlu0 %v5857, 80
        %v5893 = vpop.permute.xlu0 %5892
        %5894 = vrot.lane.b32.xlu0 %v5858, 80
        %v5895 = vpop.permute.xlu0 %5894
        %5896 = vrot.lane.b32.xlu0 %v5859, 80
        %v5897 = vpop.permute.xlu0 %5896
        %5898 = vrot.lane.b32.xlu0 %v5860, 80
        %v5899 = vpop.permute.xlu0 %5898
        %5900 = vrot.lane.b32.xlu0 %v5861, 80
        %v5901 = vpop.permute.xlu0 %5900
        %5902 = vrot.lane.b32.xlu0 %v5862, 80
        %v5903 = vpop.permute.xlu0 %5902
        %5904 = vrot.lane.b32.xlu0 %v5863, 80
        %v5905 = vpop.permute.xlu0 %5904
        %5906 = vrot.lane.b32.xlu0 %v5864, 80
        %v5907 = vpop.permute.xlu0 %5906
        %5908 = vrot.lane.b32.xlu0 %v5865, 80
        %v5909 = vpop.permute.xlu0 %5908
        %5910 = vrot.lane.b32.xlu0 %v5866, 80
        %v5911 = vpop.permute.xlu0 %5910
        %5912 = vrot.lane.b32.xlu0 %v5867, 80
        %v5913 = vpop.permute.xlu0 %5912
        %5914 = vrot.lane.b32.xlu0 %v5868, 80
        %v5915 = vpop.permute.xlu0 %5914
        %5916 = vrot.lane.b32.xlu0 %v5869, 80
        %v5917 = vpop.permute.xlu0 %5916
        %5918 = vrot.lane.b32.xlu0 %v5870, 80
        %v5919 = vpop.permute.xlu0 %5918
        %5920 = vrot.lane.b32.xlu0 %v5871, 80
        %v5921 = vpop.permute.xlu0 %5920
        %5922 = vrot.lane.b32.xlu0 %v5872, 80
        %v5923 = vpop.permute.xlu0 %5922
        %5924 = vrot.lane.b32.xlu0 %v5873, 80
        %v5925 = vpop.permute.xlu0 %5924
        %5926 = vrot.lane.b32.xlu0 %v5874, 80
        %v5927 = vpop.permute.xlu0 %5926
        %5928 = vrot.lane.b32.xlu0 %v5875, 80
        %v5929 = vpop.permute.xlu0 %5928
        %5930 = vrot.lane.b32.xlu0 %v5876, 80
        %v5931 = vpop.permute.xlu0 %5930
        %5932 = vrot.lane.b32.xlu0 %v5877, 80
        %v5933 = vpop.permute.xlu0 %5932
        %5934 = vrot.lane.b32.xlu0 %v5878, 80
        %v5935 = vpop.permute.xlu0 %5934
        %5936 = vrot.lane.b32.xlu0 %v5879, 80
        %v5937 = vpop.permute.xlu0 %5936
        %5938 = vrot.lane.b32.xlu0 %v5880, 80
        %v5939 = vpop.permute.xlu0 %5938
        %5940 = vrot.lane.b32.xlu0 %v5881, 80
        %v5941 = vpop.permute.xlu0 %5940
        %5942 = vrot.lane.b32.xlu0 %v5882, 80
        %v5943 = vpop.permute.xlu0 %5942
        %5944 = vrot.lane.b32.xlu0 %v5883, 80
        %v5945 = vpop.permute.xlu0 %5944
        %5946 = vrot.lane.b32.xlu0 %v5884, 80
        %v5947 = vpop.permute.xlu0 %5946
        %5948 = vrot.lane.b32.xlu0 %v5885, 80
        %v5949 = vpop.permute.xlu0 %5948
        %v5982 = vunpack.c.l.b16 %v3774
        %v5983 = vunpack.c.l.b16 %v3775
        %v5984 = vunpack.c.l.b16 %v3776
        %v5985 = vunpack.c.l.b16 %v3777
        %v5986 = vunpack.c.l.b16 %v3778
        %v5987 = vunpack.c.l.b16 %v3779
        %v5988 = vunpack.c.l.b16 %v3780
        %v5989 = vunpack.c.l.b16 %v3781
        %v5990 = vunpack.c.l.b16 %v3782
        %v5991 = vunpack.c.l.b16 %v3783
        %v5992 = vunpack.c.l.b16 %v3784
        %v5993 = vunpack.c.l.b16 %v3785
        %v5994 = vunpack.c.l.b16 %v3786
        %v5995 = vunpack.c.l.b16 %v3787
        %v5996 = vunpack.c.l.b16 %v3788
        %v5997 = vunpack.c.l.b16 %v3789
        %v5998 = vunpack.c.l.b16 %v3790
        %v5999 = vunpack.c.l.b16 %v3791
        %v6000 = vunpack.c.l.b16 %v3792
        %v6001 = vunpack.c.l.b16 %v3793
        %v6002 = vunpack.c.l.b16 %v3794
        %v6003 = vunpack.c.l.b16 %v3795
        %v6004 = vunpack.c.l.b16 %v3796
        %v6005 = vunpack.c.l.b16 %v3797
        %v6006 = vunpack.c.l.b16 %v3798
        %v6007 = vunpack.c.l.b16 %v3799
        %v6008 = vunpack.c.l.b16 %v3800
        %v6009 = vunpack.c.l.b16 %v3801
        %v6010 = vunpack.c.l.b16 %v3802
        %v6011 = vunpack.c.l.b16 %v3803
        %v6012 = vunpack.c.l.b16 %v3804
        %v6013 = vunpack.c.l.b16 %v3805
        %v6014 = vunpack.c.l.b16 %v3806
        %v6015 = vunpack.c.l.b16 %v3807
        %v6016 = vunpack.c.l.b16 %v3808
        %v6017 = vunpack.c.l.b16 %v3809
        %v6018 = vunpack.c.l.b16 %v3810
        %v6019 = vunpack.c.l.b16 %v3811
        %v6020 = vunpack.c.l.b16 %v3812
        %v6021 = vunpack.c.l.b16 %v3813
        %v6022 = vunpack.c.l.b16 %v3814
        %v6023 = vunpack.c.l.b16 %v3815
        %v6024 = vunpack.c.l.b16 %v3816
        %v6025 = vunpack.c.l.b16 %v3817
        %v6026 = vunpack.c.l.b16 %v3818
        %v6027 = vunpack.c.l.b16 %v3819
        %v6028 = vunpack.c.l.b16 %v3820
        %v6029 = vunpack.c.l.b16 %v3821
        %v6030 = vunpack.c.l.b16 %v3822
        %v6031 = vunpack.c.l.b16 %v3823
        %v6032 = vunpack.c.l.b16 %v3824
        %v6033 = vunpack.c.l.b16 %v3825
        %v6034 = vunpack.c.l.b16 %v3826
        %v6035 = vunpack.c.l.b16 %v3827
        %v6036 = vunpack.c.l.b16 %v3828
        %v6037 = vunpack.c.l.b16 %v3829
        %v6038 = vunpack.c.l.b16 %v3830
        %v6039 = vunpack.c.l.b16 %v3831
        %v6040 = vunpack.c.l.b16 %v3832
        %v6041 = vunpack.c.l.b16 %v3833
        %v6042 = vunpack.c.l.b16 %v3834
        %v6043 = vunpack.c.l.b16 %v3835
        %v6044 = vunpack.c.l.b16 %v3836
        %v6045 = vunpack.c.l.b16 %v3837
        %v6046 = vpack.c.b16 %v5983, %v5982
        %v6047 = vpack.c.b16 %v5985, %v5984
        %v6048 = vpack.c.b16 %v5987, %v5986
        %v6049 = vpack.c.b16 %v5989, %v5988
        %v6050 = vpack.c.b16 %v5991, %v5990
        %v6051 = vpack.c.b16 %v5993, %v5992
        %v6052 = vpack.c.b16 %v5995, %v5994
        %v6053 = vpack.c.b16 %v5997, %v5996
        %v6054 = vpack.c.b16 %v5999, %v5998
        %v6055 = vpack.c.b16 %v6001, %v6000
        %v6056 = vpack.c.b16 %v6003, %v6002
        %v6057 = vpack.c.b16 %v6005, %v6004
        %v6058 = vpack.c.b16 %v6007, %v6006
        %v6059 = vpack.c.b16 %v6009, %v6008
        %v6060 = vpack.c.b16 %v6011, %v6010
        %v6061 = vpack.c.b16 %v6013, %v6012
        %v6062 = vpack.c.b16 %v6015, %v6014
        %v6063 = vpack.c.b16 %v6017, %v6016
        %v6064 = vpack.c.b16 %v6019, %v6018
        %v6065 = vpack.c.b16 %v6021, %v6020
        %v6066 = vpack.c.b16 %v6023, %v6022
        %v6067 = vpack.c.b16 %v6025, %v6024
        %v6068 = vpack.c.b16 %v6027, %v6026
        %v6069 = vpack.c.b16 %v6029, %v6028
        %v6070 = vpack.c.b16 %v6031, %v6030
        %v6071 = vpack.c.b16 %v6033, %v6032
        %v6072 = vpack.c.b16 %v6035, %v6034
        %v6073 = vpack.c.b16 %v6037, %v6036
        %v6074 = vpack.c.b16 %v6039, %v6038
        %v6075 = vpack.c.b16 %v6041, %v6040
        %v6076 = vpack.c.b16 %v6043, %v6042
        %v6077 = vpack.c.b16 %v6045, %v6044
        %6078 = vrot.lane.b32.xlu0 %v6046, 96
        %v6079 = vpop.permute.xlu0 %6078
        %6080 = vrot.lane.b32.xlu0 %v6047, 96
        %v6081 = vpop.permute.xlu0 %6080
        %6082 = vrot.lane.b32.xlu0 %v6048, 96
        %v6083 = vpop.permute.xlu0 %6082
        %6084 = vrot.lane.b32.xlu0 %v6049, 96
        %v6085 = vpop.permute.xlu0 %6084
        %6086 = vrot.lane.b32.xlu0 %v6050, 96
        %v6087 = vpop.permute.xlu0 %6086
        %6088 = vrot.lane.b32.xlu0 %v6051, 96
        %v6089 = vpop.permute.xlu0 %6088
        %6090 = vrot.lane.b32.xlu0 %v6052, 96
        %v6091 = vpop.permute.xlu0 %6090
        %6092 = vrot.lane.b32.xlu0 %v6053, 96
        %v6093 = vpop.permute.xlu0 %6092
        %6094 = vrot.lane.b32.xlu0 %v6054, 96
        %v6095 = vpop.permute.xlu0 %6094
        %6096 = vrot.lane.b32.xlu0 %v6055, 96
        %v6097 = vpop.permute.xlu0 %6096
        %6098 = vrot.lane.b32.xlu0 %v6056, 96
        %v6099 = vpop.permute.xlu0 %6098
        %6100 = vrot.lane.b32.xlu0 %v6057, 96
        %v6101 = vpop.permute.xlu0 %6100
        %6102 = vrot.lane.b32.xlu0 %v6058, 96
        %v6103 = vpop.permute.xlu0 %6102
        %6104 = vrot.lane.b32.xlu0 %v6059, 96
        %v6105 = vpop.permute.xlu0 %6104
        %6106 = vrot.lane.b32.xlu0 %v6060, 96
        %v6107 = vpop.permute.xlu0 %6106
        %6108 = vrot.lane.b32.xlu0 %v6061, 96
        %v6109 = vpop.permute.xlu0 %6108
        %6110 = vrot.lane.b32.xlu0 %v6062, 96
        %v6111 = vpop.permute.xlu0 %6110
        %6112 = vrot.lane.b32.xlu0 %v6063, 96
        %v6113 = vpop.permute.xlu0 %6112
        %6114 = vrot.lane.b32.xlu0 %v6064, 96
        %v6115 = vpop.permute.xlu0 %6114
        %6116 = vrot.lane.b32.xlu0 %v6065, 96
        %v6117 = vpop.permute.xlu0 %6116
        %6118 = vrot.lane.b32.xlu0 %v6066, 96
        %v6119 = vpop.permute.xlu0 %6118
        %6120 = vrot.lane.b32.xlu0 %v6067, 96
        %v6121 = vpop.permute.xlu0 %6120
        %6122 = vrot.lane.b32.xlu0 %v6068, 96
        %v6123 = vpop.permute.xlu0 %6122
        %6124 = vrot.lane.b32.xlu0 %v6069, 96
        %v6125 = vpop.permute.xlu0 %6124
        %6126 = vrot.lane.b32.xlu0 %v6070, 96
        %v6127 = vpop.permute.xlu0 %6126
        %6128 = vrot.lane.b32.xlu0 %v6071, 96
        %v6129 = vpop.permute.xlu0 %6128
        %6130 = vrot.lane.b32.xlu0 %v6072, 96
        %v6131 = vpop.permute.xlu0 %6130
        %6132 = vrot.lane.b32.xlu0 %v6073, 96
        %v6133 = vpop.permute.xlu0 %6132
        %6134 = vrot.lane.b32.xlu0 %v6074, 96
        %v6135 = vpop.permute.xlu0 %6134
        %6136 = vrot.lane.b32.xlu0 %v6075, 96
        %v6137 = vpop.permute.xlu0 %6136
        %6138 = vrot.lane.b32.xlu0 %v6076, 96
        %v6139 = vpop.permute.xlu0 %6138
        %6140 = vrot.lane.b32.xlu0 %v6077, 96
        %v6141 = vpop.permute.xlu0 %6140
        %v6142 = vunpack.c.l.b16 %v3883
        %v6143 = vunpack.c.l.b16 %v3893
        %v6144 = vunpack.c.l.b16 %v3907
        %v6145 = vunpack.c.l.b16 %v3917
        %v6146 = vunpack.c.l.b16 %v3931
        %v6147 = vunpack.c.l.b16 %v3941
        %v6148 = vunpack.c.l.b16 %v3955
        %v6149 = vunpack.c.l.b16 %v3965
        %v6150 = vunpack.c.l.b16 %v3979
        %v6151 = vunpack.c.l.b16 %v3989
        %v6152 = vunpack.c.l.b16 %v4003
        %v6153 = vunpack.c.l.b16 %v4013
        %v6154 = vunpack.c.l.b16 %v4027
        %v6155 = vunpack.c.l.b16 %v4037
        %v6156 = vunpack.c.l.b16 %v4051
        %v6157 = vunpack.c.l.b16 %v4061
        %v6158 = vunpack.c.l.b16 %v4075
        %v6159 = vunpack.c.l.b16 %v4085
        %v6160 = vunpack.c.l.b16 %v4099
        %v6161 = vunpack.c.l.b16 %v4109
        %v6162 = vunpack.c.l.b16 %v4123
        %v6163 = vunpack.c.l.b16 %v4133
        %v6164 = vunpack.c.l.b16 %v4147
        %v6165 = vunpack.c.l.b16 %v4157
        %v6166 = vunpack.c.l.b16 %v4171
        %v6167 = vunpack.c.l.b16 %v4181
        %v6168 = vunpack.c.l.b16 %v4195
        %v6169 = vunpack.c.l.b16 %v4205
        %v6170 = vunpack.c.l.b16 %v4219
        %v6171 = vunpack.c.l.b16 %v4229
        %v6172 = vunpack.c.l.b16 %v4243
        %v6173 = vunpack.c.l.b16 %v4253
        %v6174 = vunpack.c.l.b16 %v4267
        %v6175 = vunpack.c.l.b16 %v4277
        %v6176 = vunpack.c.l.b16 %v4291
        %v6177 = vunpack.c.l.b16 %v4301
        %v6178 = vunpack.c.l.b16 %v4315
        %v6179 = vunpack.c.l.b16 %v4325
        %v6180 = vunpack.c.l.b16 %v4339
        %v6181 = vunpack.c.l.b16 %v4349
        %v6182 = vunpack.c.l.b16 %v4363
        %v6183 = vunpack.c.l.b16 %v4373
        %v6184 = vunpack.c.l.b16 %v4387
        %v6185 = vunpack.c.l.b16 %v4397
        %v6186 = vunpack.c.l.b16 %v4411
        %v6187 = vunpack.c.l.b16 %v4421
        %v6188 = vunpack.c.l.b16 %v4435
        %v6189 = vunpack.c.l.b16 %v4445
        %v6190 = vunpack.c.l.b16 %v4459
        %v6191 = vunpack.c.l.b16 %v4469
        %v6192 = vunpack.c.l.b16 %v4483
        %v6193 = vunpack.c.l.b16 %v4493
        %v6194 = vunpack.c.l.b16 %v4507
        %v6195 = vunpack.c.l.b16 %v4517
        %v6196 = vunpack.c.l.b16 %v4531
        %v6197 = vunpack.c.l.b16 %v4541
        %v6198 = vunpack.c.l.b16 %v4555
        %v6199 = vunpack.c.l.b16 %v4565
        %v6200 = vunpack.c.l.b16 %v4579
        %v6201 = vunpack.c.l.b16 %v4589
        %v6202 = vunpack.c.l.b16 %v4603
        %v6203 = vunpack.c.l.b16 %v4613
        %v6204 = vunpack.c.l.b16 %v4627
        %v6205 = vunpack.c.l.b16 %v4637
        %v6206 = vpack.c.b16 %v6143, %v6142
        %v6207 = vpack.c.b16 %v6145, %v6144
        %v6208 = vpack.c.b16 %v6147, %v6146
        %v6209 = vpack.c.b16 %v6149, %v6148
        %v6210 = vpack.c.b16 %v6151, %v6150
        %v6211 = vpack.c.b16 %v6153, %v6152
        %v6212 = vpack.c.b16 %v6155, %v6154
        %v6213 = vpack.c.b16 %v6157, %v6156
        %v6214 = vpack.c.b16 %v6159, %v6158
        %v6215 = vpack.c.b16 %v6161, %v6160
        %v6216 = vpack.c.b16 %v6163, %v6162
        %v6217 = vpack.c.b16 %v6165, %v6164
        %v6218 = vpack.c.b16 %v6167, %v6166
        %v6219 = vpack.c.b16 %v6169, %v6168
        %v6220 = vpack.c.b16 %v6171, %v6170
        %v6221 = vpack.c.b16 %v6173, %v6172
        %v6222 = vpack.c.b16 %v6175, %v6174
        %v6223 = vpack.c.b16 %v6177, %v6176
        %v6224 = vpack.c.b16 %v6179, %v6178
        %v6225 = vpack.c.b16 %v6181, %v6180
        %v6226 = vpack.c.b16 %v6183, %v6182
        %v6227 = vpack.c.b16 %v6185, %v6184
        %v6228 = vpack.c.b16 %v6187, %v6186
        %v6229 = vpack.c.b16 %v6189, %v6188
        %v6230 = vpack.c.b16 %v6191, %v6190
        %v6231 = vpack.c.b16 %v6193, %v6192
        %v6232 = vpack.c.b16 %v6195, %v6194
        %v6233 = vpack.c.b16 %v6197, %v6196
        %v6234 = vpack.c.b16 %v6199, %v6198
        %v6235 = vpack.c.b16 %v6201, %v6200
        %v6236 = vpack.c.b16 %v6203, %v6202
        %v6237 = vpack.c.b16 %v6205, %v6204
        %6238 = vrot.lane.b32.xlu0 %v6206, 112
        %v6239 = vpop.permute.xlu0 %6238
        %6240 = vrot.lane.b32.xlu0 %v6207, 112
        %v6241 = vpop.permute.xlu0 %6240
        %6242 = vrot.lane.b32.xlu0 %v6208, 112
        %v6243 = vpop.permute.xlu0 %6242
        %6244 = vrot.lane.b32.xlu0 %v6209, 112
        %v6245 = vpop.permute.xlu0 %6244
        %6246 = vrot.lane.b32.xlu0 %v6210, 112
        %v6247 = vpop.permute.xlu0 %6246
        %6248 = vrot.lane.b32.xlu0 %v6211, 112
        %v6249 = vpop.permute.xlu0 %6248
        %6250 = vrot.lane.b32.xlu0 %v6212, 112
        %v6251 = vpop.permute.xlu0 %6250
        %6252 = vrot.lane.b32.xlu0 %v6213, 112
        %v6253 = vpop.permute.xlu0 %6252
        %6254 = vrot.lane.b32.xlu0 %v6214, 112
        %v6255 = vpop.permute.xlu0 %6254
        %6256 = vrot.lane.b32.xlu0 %v6215, 112
        %v6257 = vpop.permute.xlu0 %6256
        %6258 = vrot.lane.b32.xlu0 %v6216, 112
        %v6259 = vpop.permute.xlu0 %6258
        %6260 = vrot.lane.b32.xlu0 %v6217, 112
        %v6261 = vpop.permute.xlu0 %6260
        %6262 = vrot.lane.b32.xlu0 %v6218, 112
        %v6263 = vpop.permute.xlu0 %6262
        %6264 = vrot.lane.b32.xlu0 %v6219, 112
        %v6265 = vpop.permute.xlu0 %6264
        %6266 = vrot.lane.b32.xlu0 %v6220, 112
        %v6267 = vpop.permute.xlu0 %6266
        %6268 = vrot.lane.b32.xlu0 %v6221, 112
        %v6269 = vpop.permute.xlu0 %6268
        %6270 = vrot.lane.b32.xlu0 %v6222, 112
        %v6271 = vpop.permute.xlu0 %6270
        %6272 = vrot.lane.b32.xlu0 %v6223, 112
        %v6273 = vpop.permute.xlu0 %6272
        %6274 = vrot.lane.b32.xlu0 %v6224, 112
        %v6275 = vpop.permute.xlu0 %6274
        %6276 = vrot.lane.b32.xlu0 %v6225, 112
        %v6277 = vpop.permute.xlu0 %6276
        %6278 = vrot.lane.b32.xlu0 %v6226, 112
        %v6279 = vpop.permute.xlu0 %6278
        %6280 = vrot.lane.b32.xlu0 %v6227, 112
        %v6281 = vpop.permute.xlu0 %6280
        %6282 = vrot.lane.b32.xlu0 %v6228, 112
        %v6283 = vpop.permute.xlu0 %6282
        %6284 = vrot.lane.b32.xlu0 %v6229, 112
        %v6285 = vpop.permute.xlu0 %6284
        %6286 = vrot.lane.b32.xlu0 %v6230, 112
        %v6287 = vpop.permute.xlu0 %6286
        %6288 = vrot.lane.b32.xlu0 %v6231, 112
        %v6289 = vpop.permute.xlu0 %6288
        %6290 = vrot.lane.b32.xlu0 %v6232, 112
        %v6291 = vpop.permute.xlu0 %6290
        %6292 = vrot.lane.b32.xlu0 %v6233, 112
        %v6293 = vpop.permute.xlu0 %6292
        %6294 = vrot.lane.b32.xlu0 %v6234, 112
        %v6295 = vpop.permute.xlu0 %6294
        %6296 = vrot.lane.b32.xlu0 %v6235, 112
        %v6297 = vpop.permute.xlu0 %6296
        %6298 = vrot.lane.b32.xlu0 %v6236, 112
        %v6299 = vpop.permute.xlu0 %6298
        %6300 = vrot.lane.b32.xlu0 %v6237, 112
        %v6301 = vpop.permute.xlu0 %6300
        %v6302 = vunpack.c.l.b16 %v4769
        %v6303 = vunpack.c.l.b16 %v4772
        %v6304 = vunpack.c.l.b16 %v4776
        %v6305 = vunpack.c.l.b16 %v4779
        %v6306 = vunpack.c.l.b16 %v4783
        %v6307 = vunpack.c.l.b16 %v4786
        %v6308 = vunpack.c.l.b16 %v4790
        %v6309 = vunpack.c.l.b16 %v4793
        %v6310 = vunpack.c.l.b16 %v4797
        %v6311 = vunpack.c.l.b16 %v4800
        %v6312 = vunpack.c.l.b16 %v4804
        %v6313 = vunpack.c.l.b16 %v4807
        %v6314 = vunpack.c.l.b16 %v4811
        %v6315 = vunpack.c.l.b16 %v4814
        %v6316 = vunpack.c.l.b16 %v4818
        %v6317 = vunpack.c.l.b16 %v4821
        %v6318 = vunpack.c.l.b16 %v4825
        %v6319 = vunpack.c.l.b16 %v4828
        %v6320 = vunpack.c.l.b16 %v4832
        %v6321 = vunpack.c.l.b16 %v4835
        %v6322 = vunpack.c.l.b16 %v4839
        %v6323 = vunpack.c.l.b16 %v4842
        %v6324 = vunpack.c.l.b16 %v4846
        %v6325 = vunpack.c.l.b16 %v4849
        %v6326 = vunpack.c.l.b16 %v4853
        %v6327 = vunpack.c.l.b16 %v4856
        %v6328 = vunpack.c.l.b16 %v4860
        %v6329 = vunpack.c.l.b16 %v4863
        %v6330 = vunpack.c.l.b16 %v4867
        %v6331 = vunpack.c.l.b16 %v4870
        %v6332 = vunpack.c.l.b16 %v4874
        %v6333 = vunpack.c.l.b16 %v4877
        %v6334 = vunpack.c.l.b16 %v4881
        %v6335 = vunpack.c.l.b16 %v4884
        %v6336 = vunpack.c.l.b16 %v4888
        %v6337 = vunpack.c.l.b16 %v4891
        %v6338 = vunpack.c.l.b16 %v4895
        %v6339 = vunpack.c.l.b16 %v4898
        %v6340 = vunpack.c.l.b16 %v4902
        %v6341 = vunpack.c.l.b16 %v4905
        %v6342 = vunpack.c.l.b16 %v4909
        %v6343 = vunpack.c.l.b16 %v4912
        %v6344 = vunpack.c.l.b16 %v4916
        %v6345 = vunpack.c.l.b16 %v4919
        %v6346 = vunpack.c.l.b16 %v4923
        %v6347 = vunpack.c.l.b16 %v4926
        %v6348 = vunpack.c.l.b16 %v4930
        %v6349 = vunpack.c.l.b16 %v4933
        %v6350 = vunpack.c.l.b16 %v4937
        %v6351 = vunpack.c.l.b16 %v4940
        %v6352 = vunpack.c.l.b16 %v4944
        %v6353 = vunpack.c.l.b16 %v4947
        %v6354 = vunpack.c.l.b16 %v4951
        %v6355 = vunpack.c.l.b16 %v4954
        %v6356 = vunpack.c.l.b16 %v4958
        %v6357 = vunpack.c.l.b16 %v4961
        %v6358 = vunpack.c.l.b16 %v4965
        %v6359 = vunpack.c.l.b16 %v4968
        %v6360 = vunpack.c.l.b16 %v4972
        %v6361 = vunpack.c.l.b16 %v4975
        %v6362 = vunpack.c.l.b16 %v4979
        %v6363 = vunpack.c.l.b16 %v4982
        %v6364 = vunpack.c.l.b16 %v4986
        %v6365 = vunpack.c.l.b16 %v4989
        %v6366 = vpack.c.b16 %v6303, %v6302
        %v6367 = vpack.c.b16 %v6305, %v6304
        %v6368 = vpack.c.b16 %v6307, %v6306
        %v6369 = vpack.c.b16 %v6309, %v6308
        %v6370 = vpack.c.b16 %v6311, %v6310
        %v6371 = vpack.c.b16 %v6313, %v6312
        %v6372 = vpack.c.b16 %v6315, %v6314
        %v6373 = vpack.c.b16 %v6317, %v6316
        %v6374 = vpack.c.b16 %v6319, %v6318
        %v6375 = vpack.c.b16 %v6321, %v6320
        %v6376 = vpack.c.b16 %v6323, %v6322
        %v6377 = vpack.c.b16 %v6325, %v6324
        %v6378 = vpack.c.b16 %v6327, %v6326
        %v6379 = vpack.c.b16 %v6329, %v6328
        %v6380 = vpack.c.b16 %v6331, %v6330
        %v6381 = vpack.c.b16 %v6333, %v6332
        %v6382 = vpack.c.b16 %v6335, %v6334
        %v6383 = vpack.c.b16 %v6337, %v6336
        %v6384 = vpack.c.b16 %v6339, %v6338
        %v6385 = vpack.c.b16 %v6341, %v6340
        %v6386 = vpack.c.b16 %v6343, %v6342
        %v6387 = vpack.c.b16 %v6345, %v6344
        %v6388 = vpack.c.b16 %v6347, %v6346
        %v6389 = vpack.c.b16 %v6349, %v6348
        %v6390 = vpack.c.b16 %v6351, %v6350
        %v6391 = vpack.c.b16 %v6353, %v6352
        %v6392 = vpack.c.b16 %v6355, %v6354
        %v6393 = vpack.c.b16 %v6357, %v6356
        %v6394 = vpack.c.b16 %v6359, %v6358
        %v6395 = vpack.c.b16 %v6361, %v6360
        %v6396 = vpack.c.b16 %v6363, %v6362
        %v6397 = vpack.c.b16 %v6365, %v6364
        %vm6398 = vcmask 130048
        %v6401 = vsel %vm6398, %v5086, %v5215
        %v6404 = vsel %vm6398, %v5087, %v5217
        %v6407 = vsel %vm6398, %v5088, %v5219
        %v6410 = vsel %vm6398, %v5089, %v5221
        %v6413 = vsel %vm6398, %v5090, %v5223
        %v6416 = vsel %vm6398, %v5091, %v5225
        %v6419 = vsel %vm6398, %v5092, %v5227
        %v6422 = vsel %vm6398, %v5093, %v5229
        %v6425 = vsel %vm6398, %v5094, %v5231
        %v6428 = vsel %vm6398, %v5095, %v5233
        %v6431 = vsel %vm6398, %v5096, %v5235
        %v6434 = vsel %vm6398, %v5097, %v5237
        %v6437 = vsel %vm6398, %v5098, %v5239
        %v6440 = vsel %vm6398, %v5099, %v5241
        %v6443 = vsel %vm6398, %v5100, %v5243
        %v6446 = vsel %vm6398, %v5101, %v5245
        %v6449 = vsel %vm6398, %v5102, %v5247
        %v6452 = vsel %vm6398, %v5103, %v5249
        %v6455 = vsel %vm6398, %v5104, %v5251
        %v6458 = vsel %vm6398, %v5105, %v5253
        %v6461 = vsel %vm6398, %v5106, %v5255
        %v6464 = vsel %vm6398, %v5107, %v5257
        %v6467 = vsel %vm6398, %v5108, %v5259
        %v6470 = vsel %vm6398, %v5109, %v5261
        %v6473 = vsel %vm6398, %v5110, %v5263
        %v6476 = vsel %vm6398, %v5111, %v5265
        %v6479 = vsel %vm6398, %v5112, %v5267
        %v6482 = vsel %vm6398, %v5113, %v5269
        %v6485 = vsel %vm6398, %v5114, %v5271
        %v6488 = vsel %vm6398, %v5115, %v5273
        %v6491 = vsel %vm6398, %v5116, %v5275
        %v6494 = vsel %vm6398, %v5117, %v5277
        %vm6495 = vcmask 261120
        %v6497 = vsel %vm6495, %v6401, %v5375
        %v6499 = vsel %vm6495, %v6404, %v5377
        %v6501 = vsel %vm6495, %v6407, %v5379
        %v6503 = vsel %vm6495, %v6410, %v5381
        %v6505 = vsel %vm6495, %v6413, %v5383
        %v6507 = vsel %vm6495, %v6416, %v5385
        %v6509 = vsel %vm6495, %v6419, %v5387
        %v6511 = vsel %vm6495, %v6422, %v5389
        %v6513 = vsel %vm6495, %v6425, %v5391
        %v6515 = vsel %vm6495, %v6428, %v5393
        %v6517 = vsel %vm6495, %v6431, %v5395
        %v6519 = vsel %vm6495, %v6434, %v5397
        %v6521 = vsel %vm6495, %v6437, %v5399
        %v6523 = vsel %vm6495, %v6440, %v5401
        %v6525 = vsel %vm6495, %v6443, %v5403
        %v6527 = vsel %vm6495, %v6446, %v5405
        %v6529 = vsel %vm6495, %v6449, %v5407
        %v6531 = vsel %vm6495, %v6452, %v5409
        %v6533 = vsel %vm6495, %v6455, %v5411
        %v6535 = vsel %vm6495, %v6458, %v5413
        %v6537 = vsel %vm6495, %v6461, %v5415
        %v6539 = vsel %vm6495, %v6464, %v5417
        %v6541 = vsel %vm6495, %v6467, %v5419
        %v6543 = vsel %vm6495, %v6470, %v5421
        %v6545 = vsel %vm6495, %v6473, %v5423
        %v6547 = vsel %vm6495, %v6476, %v5425
        %v6549 = vsel %vm6495, %v6479, %v5427
        %v6551 = vsel %vm6495, %v6482, %v5429
        %v6553 = vsel %vm6495, %v6485, %v5431
        %v6555 = vsel %vm6495, %v6488, %v5433
        %v6557 = vsel %vm6495, %v6491, %v5435
        %v6559 = vsel %vm6495, %v6494, %v5437
        %vm6560 = vcmask 392192
        %v6562 = vsel %vm6560, %v6497, %v5567
        %v6564 = vsel %vm6560, %v6499, %v5569
        %v6566 = vsel %vm6560, %v6501, %v5571
        %v6568 = vsel %vm6560, %v6503, %v5573
        %v6570 = vsel %vm6560, %v6505, %v5575
        %v6572 = vsel %vm6560, %v6507, %v5577
        %v6574 = vsel %vm6560, %v6509, %v5579
        %v6576 = vsel %vm6560, %v6511, %v5581
        %v6578 = vsel %vm6560, %v6513, %v5583
        %v6580 = vsel %vm6560, %v6515, %v5585
        %v6582 = vsel %vm6560, %v6517, %v5587
        %v6584 = vsel %vm6560, %v6519, %v5589
        %v6586 = vsel %vm6560, %v6521, %v5591
        %v6588 = vsel %vm6560, %v6523, %v5593
        %v6590 = vsel %vm6560, %v6525, %v5595
        %v6592 = vsel %vm6560, %v6527, %v5597
        %v6594 = vsel %vm6560, %v6529, %v5599
        %v6596 = vsel %vm6560, %v6531, %v5601
        %v6598 = vsel %vm6560, %v6533, %v5603
        %v6600 = vsel %vm6560, %v6535, %v5605
        %v6602 = vsel %vm6560, %v6537, %v5607
        %v6604 = vsel %vm6560, %v6539, %v5609
        %v6606 = vsel %vm6560, %v6541, %v5611
        %v6608 = vsel %vm6560, %v6543, %v5613
        %v6610 = vsel %vm6560, %v6545, %v5615
        %v6612 = vsel %vm6560, %v6547, %v5617
        %v6614 = vsel %vm6560, %v6549, %v5619
        %v6616 = vsel %vm6560, %v6551, %v5621
        %v6618 = vsel %vm6560, %v6553, %v5623
        %v6620 = vsel %vm6560, %v6555, %v5625
        %v6622 = vsel %vm6560, %v6557, %v5627
        %v6624 = vsel %vm6560, %v6559, %v5629
        %vm6625 = vcmask 523264
        %v6627 = vsel %vm6625, %v6562, %v5727
        %v6629 = vsel %vm6625, %v6564, %v5729
        %v6631 = vsel %vm6625, %v6566, %v5731
        %v6633 = vsel %vm6625, %v6568, %v5733
        %v6635 = vsel %vm6625, %v6570, %v5735
        %v6637 = vsel %vm6625, %v6572, %v5737
        %v6639 = vsel %vm6625, %v6574, %v5739
        %v6641 = vsel %vm6625, %v6576, %v5741
        %v6643 = vsel %vm6625, %v6578, %v5743
        %v6645 = vsel %vm6625, %v6580, %v5745
        %v6647 = vsel %vm6625, %v6582, %v5747
        %v6649 = vsel %vm6625, %v6584, %v5749
        %v6651 = vsel %vm6625, %v6586, %v5751
        %v6653 = vsel %vm6625, %v6588, %v5753
        %v6655 = vsel %vm6625, %v6590, %v5755
        %v6657 = vsel %vm6625, %v6592, %v5757
        %v6659 = vsel %vm6625, %v6594, %v5759
        %v6661 = vsel %vm6625, %v6596, %v5761
        %v6663 = vsel %vm6625, %v6598, %v5763
        %v6665 = vsel %vm6625, %v6600, %v5765
        %v6667 = vsel %vm6625, %v6602, %v5767
        %v6669 = vsel %vm6625, %v6604, %v5769
        %v6671 = vsel %vm6625, %v6606, %v5771
        %v6673 = vsel %vm6625, %v6608, %v5773
        %v6675 = vsel %vm6625, %v6610, %v5775
        %v6677 = vsel %vm6625, %v6612, %v5777
        %v6679 = vsel %vm6625, %v6614, %v5779
        %v6681 = vsel %vm6625, %v6616, %v5781
        %v6683 = vsel %vm6625, %v6618, %v5783
        %v6685 = vsel %vm6625, %v6620, %v5785
        %v6687 = vsel %vm6625, %v6622, %v5787
        %v6689 = vsel %vm6625, %v6624, %v5789
        %vm6690 = vcmask 654336
        %v6692 = vsel %vm6690, %v6627, %v5887
        %v6694 = vsel %vm6690, %v6629, %v5889
        %v6696 = vsel %vm6690, %v6631, %v5891
        %v6698 = vsel %vm6690, %v6633, %v5893
        %v6700 = vsel %vm6690, %v6635, %v5895
        %v6702 = vsel %vm6690, %v6637, %v5897
        %v6704 = vsel %vm6690, %v6639, %v5899
        %v6706 = vsel %vm6690, %v6641, %v5901
        %v6708 = vsel %vm6690, %v6643, %v5903
        %v6710 = vsel %vm6690, %v6645, %v5905
        %v6712 = vsel %vm6690, %v6647, %v5907
        %v6714 = vsel %vm6690, %v6649, %v5909
        %v6716 = vsel %vm6690, %v6651, %v5911
        %v6718 = vsel %vm6690, %v6653, %v5913
        %v6720 = vsel %vm6690, %v6655, %v5915
        %v6722 = vsel %vm6690, %v6657, %v5917
        %v6724 = vsel %vm6690, %v6659, %v5919
        %v6726 = vsel %vm6690, %v6661, %v5921
        %v6728 = vsel %vm6690, %v6663, %v5923
        %v6730 = vsel %vm6690, %v6665, %v5925
        %v6732 = vsel %vm6690, %v6667, %v5927
        %v6734 = vsel %vm6690, %v6669, %v5929
        %v6736 = vsel %vm6690, %v6671, %v5931
        %v6738 = vsel %vm6690, %v6673, %v5933
        %v6740 = vsel %vm6690, %v6675, %v5935
        %v6742 = vsel %vm6690, %v6677, %v5937
        %v6744 = vsel %vm6690, %v6679, %v5939
        %v6746 = vsel %vm6690, %v6681, %v5941
        %v6748 = vsel %vm6690, %v6683, %v5943
        %v6750 = vsel %vm6690, %v6685, %v5945
        %v6752 = vsel %vm6690, %v6687, %v5947
        %v6754 = vsel %vm6690, %v6689, %v5949
        %vm6755 = vcmask 785408
        %v6757 = vsel %vm6755, %v6692, %v6079
        %v6759 = vsel %vm6755, %v6694, %v6081
        %v6761 = vsel %vm6755, %v6696, %v6083
        %v6763 = vsel %vm6755, %v6698, %v6085
        %v6765 = vsel %vm6755, %v6700, %v6087
        %v6767 = vsel %vm6755, %v6702, %v6089
        %v6769 = vsel %vm6755, %v6704, %v6091
        %v6771 = vsel %vm6755, %v6706, %v6093
        %v6773 = vsel %vm6755, %v6708, %v6095
        %v6775 = vsel %vm6755, %v6710, %v6097
        %v6777 = vsel %vm6755, %v6712, %v6099
        %v6779 = vsel %vm6755, %v6714, %v6101
        %v6781 = vsel %vm6755, %v6716, %v6103
        %v6783 = vsel %vm6755, %v6718, %v6105
        %v6785 = vsel %vm6755, %v6720, %v6107
        %v6787 = vsel %vm6755, %v6722, %v6109
        %v6789 = vsel %vm6755, %v6724, %v6111
        %v6791 = vsel %vm6755, %v6726, %v6113
        %v6793 = vsel %vm6755, %v6728, %v6115
        %v6795 = vsel %vm6755, %v6730, %v6117
        %v6797 = vsel %vm6755, %v6732, %v6119
        %v6799 = vsel %vm6755, %v6734, %v6121
        %v6801 = vsel %vm6755, %v6736, %v6123
        %v6803 = vsel %vm6755, %v6738, %v6125
        %v6805 = vsel %vm6755, %v6740, %v6127
        %v6807 = vsel %vm6755, %v6742, %v6129
        %v6809 = vsel %vm6755, %v6744, %v6131
        %v6811 = vsel %vm6755, %v6746, %v6133
        %v6813 = vsel %vm6755, %v6748, %v6135
        %v6815 = vsel %vm6755, %v6750, %v6137
        %v6817 = vsel %vm6755, %v6752, %v6139
        %v6819 = vsel %vm6755, %v6754, %v6141
        %vm6820 = vcmask 916480
        %v6822 = vsel %vm6820, %v6757, %v6239
        %v6825 = vsel %vm6820, %v6759, %v6241
        %v6828 = vsel %vm6820, %v6761, %v6243
        %v6831 = vsel %vm6820, %v6763, %v6245
        %v6834 = vsel %vm6820, %v6765, %v6247
        %v6837 = vsel %vm6820, %v6767, %v6249
        %v6840 = vsel %vm6820, %v6769, %v6251
        %v6843 = vsel %vm6820, %v6771, %v6253
        %v6846 = vsel %vm6820, %v6773, %v6255
        %v6849 = vsel %vm6820, %v6775, %v6257
        %v6852 = vsel %vm6820, %v6777, %v6259
        %v6855 = vsel %vm6820, %v6779, %v6261
        %v6858 = vsel %vm6820, %v6781, %v6263
        %v6861 = vsel %vm6820, %v6783, %v6265
        %v6864 = vsel %vm6820, %v6785, %v6267
        %v6867 = vsel %vm6820, %v6787, %v6269
        %v6870 = vsel %vm6820, %v6789, %v6271
        %v6873 = vsel %vm6820, %v6791, %v6273
        %v6876 = vsel %vm6820, %v6793, %v6275
        %v6879 = vsel %vm6820, %v6795, %v6277
        %v6882 = vsel %vm6820, %v6797, %v6279
        %v6885 = vsel %vm6820, %v6799, %v6281
        %v6888 = vsel %vm6820, %v6801, %v6283
        %v6891 = vsel %vm6820, %v6803, %v6285
        %v6894 = vsel %vm6820, %v6805, %v6287
        %v6897 = vsel %vm6820, %v6807, %v6289
        %v6900 = vsel %vm6820, %v6809, %v6291
        %v6903 = vsel %vm6820, %v6811, %v6293
        %v6906 = vsel %vm6820, %v6813, %v6295
        %v6909 = vsel %vm6820, %v6815, %v6297
        %v6912 = vsel %vm6820, %v6817, %v6299
        %v6915 = vsel %vm6820, %v6819, %v6301
        %v6917 = vld [vmem:[%s1] sm:$0xf]
        %v6918 = vld [vmem:[%s1 + $0x4] sm:$0xf]
        %v6919 = vld [vmem:[%s1 + $0x8] sm:$0xf]
        %v6920 = vld [vmem:[%s1 + $0xc] sm:$0xf]
        %v6921 = vld [vmem:[%s1 + $0x10] sm:$0xf]
        %v6922 = vld [vmem:[%s1 + $0x14] sm:$0xf]
        %v6923 = vld [vmem:[%s1 + $0x18] sm:$0xf]
        %v6924 = vld [vmem:[%s1 + $0x1c] sm:$0xf]
        %v6925 = vld [vmem:[%s1 + $0x20] sm:$0xf]
        %v6926 = vld [vmem:[%s1 + $0x24] sm:$0xf]
        %v6927 = vld [vmem:[%s1 + $0x28] sm:$0xf]
        %v6928 = vld [vmem:[%s1 + $0x2c] sm:$0xf]
        %v6929 = vld [vmem:[%s1 + $0x30] sm:$0xf]
        %v6930 = vld [vmem:[%s1 + $0x34] sm:$0xf]
        %v6931 = vld [vmem:[%s1 + $0x38] sm:$0xf]
        %v6932 = vld [vmem:[%s1 + $0x3c] sm:$0xf]
        %v6933 = vld [vmem:[%s1 + $0x40] sm:$0xf]
        %v6934 = vld [vmem:[%s1 + $0x44] sm:$0xf]
        %v6953 = vunpack.c.l.b16 %v6917
        %v6954 = vunpack.c.l.b16 %v6918
        %v6955 = vunpack.c.l.b16 %v6919
        %v6956 = vunpack.c.l.b16 %v6920
        %v6957 = vunpack.c.l.b16 %v6921
        %v6958 = vunpack.c.l.b16 %v6922
        %v6959 = vunpack.c.l.b16 %v6923
        %v6960 = vunpack.c.l.b16 %v6924
        %v6961 = vunpack.c.l.b16 %v6925
        %v6962 = vunpack.c.l.b16 %v6926
        %v6963 = vunpack.c.l.b16 %v6927
        %v6964 = vunpack.c.l.b16 %v6928
        %v6965 = vunpack.c.l.b16 %v6929
        %v6966 = vunpack.c.l.b16 %v6930
        %v6967 = vunpack.c.l.b16 %v6931
        %v6968 = vunpack.c.l.b16 %v6932
        %v6969 = vunpack.c.l.b16 %v6933
        %v6970 = vunpack.c.l.b16 %v6934
        %v6971 = vpack.c.b16 %v6954, %v6953
        %v6972 = vpack.c.b16 %v6956, %v6955
        %v6973 = vpack.c.b16 %v6958, %v6957
        %v6974 = vpack.c.b16 %v6960, %v6959
        %v6975 = vpack.c.b16 %v6962, %v6961
        %v6976 = vpack.c.b16 %v6964, %v6963
        %v6977 = vpack.c.b16 %v6966, %v6965
        %v6978 = vpack.c.b16 %v6968, %v6967
        %v6979 = vpack.c.b16 %v6970, %v6969
        %v6990 = vsel %vm6398, %v6366, 0
        %v6993 = vsel %vm6398, %v6367, 0
        %v6996 = vsel %vm6398, %v6368, 0
        %v6999 = vsel %vm6398, %v6369, 0
        %v7002 = vsel %vm6398, %v6370, 0
        %v7005 = vsel %vm6398, %v6371, 0
        %v7008 = vsel %vm6398, %v6372, 0
        %v7011 = vsel %vm6398, %v6373, 0
        %v7014 = vsel %vm6398, %v6374, 0
        %v7017 = vsel %vm6398, %v6375, 0
        %v7020 = vsel %vm6398, %v6376, 0
        %v7023 = vsel %vm6398, %v6377, 0
        %v7026 = vsel %vm6398, %v6378, 0
        %v7029 = vsel %vm6398, %v6379, 0
        %v7032 = vsel %vm6398, %v6380, 0
        %v7035 = vsel %vm6398, %v6381, 0
        %v7038 = vsel %vm6398, %v6382, 0
        %v7041 = vsel %vm6398, %v6383, 0
        %v7044 = vsel %vm6398, %v6384, 0
        %v7047 = vsel %vm6398, %v6385, 0
        %v7050 = vsel %vm6398, %v6386, 0
        %v7053 = vsel %vm6398, %v6387, 0
        %v7056 = vsel %vm6398, %v6388, 0
        %v7059 = vsel %vm6398, %v6389, 0
        %v7062 = vsel %vm6398, %v6390, 0
        %v7065 = vsel %vm6398, %v6391, 0
        %v7068 = vsel %vm6398, %v6392, 0
        %v7071 = vsel %vm6398, %v6393, 0
        %v7074 = vsel %vm6398, %v6394, 0
        %v7077 = vsel %vm6398, %v6395, 0
        %v7080 = vsel %vm6398, %v6396, 0
        %v7083 = vsel %vm6398, %v6397, 0
        %7085 = vmatprep.subr.bf16.mxu0 0
        %7086 = vmatpush1.bf16.msra.mxu0 %v6971
        %7087 = vmatprep.subr.bf16.mxu0 0
        %7088 = vmatpush1.bf16.msra.mxu0 %v6972
        %7089 = vmatprep.subr.bf16.mxu0 0
        %7090 = vmatpush1.bf16.msra.mxu0 %v6973
        %7091 = vmatprep.subr.bf16.mxu0 0
        %7092 = vmatpush1.bf16.msra.mxu0 %v6974
        %7093 = vmatprep.subr.bf16.mxu0 0
        %7094 = vmatpush1.bf16.msra.mxu0 %v6975
        %7095 = vmatprep.subr.bf16.mxu0 0
        %7096 = vmatpush1.bf16.msra.mxu0 %v6976
        %7097 = vmatprep.subr.bf16.mxu0 0
        %7098 = vmatpush1.bf16.msra.mxu0 %v6977
        %7099 = vmatprep.subr.bf16.mxu0 0
        %7100 = vmatpush1.bf16.msra.mxu0 %v6978
        %7101 = vmatprep.subr.bf16.mxu0 0
        %7102 = vmatpush1.bf16.msra.mxu0 %v6979
        %7103 = vmatprep.subr.bf16.mxu0 0
        %7104 = vmatpush1.bf16.msra.mxu0 0
        %7105 = vmatprep.subr.bf16.mxu0 0
        %7106 = vmatpush1.bf16.msra.mxu0 0
        %7107 = vmatprep.subr.bf16.mxu0 0
        %7108 = vmatpush1.bf16.msra.mxu0 0
        %7109 = vmatprep.subr.bf16.mxu0 0
        %7110 = vmatpush1.bf16.msra.mxu0 0
        %7111 = vmatprep.subr.bf16.mxu0 0
        %7112 = vmatpush1.bf16.msra.mxu0 0
        %7113 = vmatprep.subr.bf16.mxu0 0
        %7114 = vmatpush1.bf16.msra.mxu0 0
        %7115 = vmatprep.subr.bf16.mxu0 0
        %7116 = vmatpush1.bf16.msra.mxu0 0
        %7117 = vmatprep.mubr.bf16.mxu0 %v6990
        %7118 = vmatmul.mubr.bf16.gmra.mrb[0].mxu0 %v6822
        %v7119 = vpop.f32.mrb[0].mxu0
        %v7120 = vadd.f32 0.0, %v7119
        %v7121 = vpop.f32.mrb[0].mxu0
        %v7122 = vpop.f32.mrb[0].mxu0
        %v7123 = vadd.f32 0.0, %v7122
        %v7124 = vpop.f32.mrb[0].mxu0
        %7125 = vmatprep.mubr.bf16.mxu0 %v6993
        %7126 = vmatmul.mubr.bf16.gmra.mrb[0].mxu0 %v6825
        %v7127 = vpop.f32.mrb[0].mxu0
        %v7128 = vadd.f32 0.0, %v7127
        %v7129 = vpop.f32.mrb[0].mxu0
        %v7130 = vpop.f32.mrb[0].mxu0
        %v7131 = vadd.f32 0.0, %v7130
        %v7132 = vpop.f32.mrb[0].mxu0
        %7133 = vmatprep.mubr.bf16.mxu0 %v6996
        %7134 = vmatmul.mubr.bf16.gmra.mrb[0].mxu0 %v6828
        %v7135 = vpop.f32.mrb[0].mxu0
        %v7136 = vadd.f32 0.0, %v7135
        %v7137 = vpop.f32.mrb[0].mxu0
        %v7138 = vpop.f32.mrb[0].mxu0
        %v7139 = vadd.f32 0.0, %v7138
        %v7140 = vpop.f32.mrb[0].mxu0
        %7141 = vmatprep.mubr.bf16.mxu0 %v6999
        %7142 = vmatmul.mubr.bf16.gmra.mrb[0].mxu0 %v6831
        %v7143 = vpop.f32.mrb[0].mxu0
        %v7144 = vadd.f32 0.0, %v7143
        %v7145 = vpop.f32.mrb[0].mxu0
        %v7146 = vpop.f32.mrb[0].mxu0
        %v7147 = vadd.f32 0.0, %v7146
        %v7148 = vpop.f32.mrb[0].mxu0
        %7149 = vmatprep.mubr.bf16.mxu0 %v7002
        %7150 = vmatmul.mubr.bf16.gmra.mrb[0].mxu0 %v6834
        %v7151 = vpop.f32.mrb[0].mxu0
        %v7152 = vadd.f32 0.0, %v7151
        %v7153 = vpop.f32.mrb[0].mxu0
        %v7154 = vpop.f32.mrb[0].mxu0
        %v7155 = vadd.f32 0.0, %v7154
        %v7156 = vpop.f32.mrb[0].mxu0
        %7157 = vmatprep.mubr.bf16.mxu0 %v7005
        %7158 = vmatmul.mubr.bf16.gmra.mrb[0].mxu0 %v6837
        %v7159 = vpop.f32.mrb[0].mxu0
        %v7160 = vadd.f32 0.0, %v7159
        %v7161 = vpop.f32.mrb[0].mxu0
        %v7162 = vpop.f32.mrb[0].mxu0
        %v7163 = vadd.f32 0.0, %v7162
        %v7164 = vpop.f32.mrb[0].mxu0
        %7165 = vmatprep.mubr.bf16.mxu0 %v7008
        %7166 = vmatmul.mubr.bf16.gmra.mrb[0].mxu0 %v6840
        %v7167 = vpop.f32.mrb[0].mxu0
        %v7168 = vadd.f32 0.0, %v7167
        %v7169 = vpop.f32.mrb[0].mxu0
        %v7170 = vpop.f32.mrb[0].mxu0
        %v7171 = vadd.f32 0.0, %v7170
        %v7172 = vpop.f32.mrb[0].mxu0
        %7173 = vmatprep.mubr.bf16.mxu0 %v7011
        %7174 = vmatmul.mubr.bf16.gmra.mrb[0].mxu0 %v6843
        %v7175 = vpop.f32.mrb[0].mxu0
        %v7176 = vadd.f32 0.0, %v7175
        %v7177 = vpop.f32.mrb[0].mxu0
        %v7178 = vpop.f32.mrb[0].mxu0
        %v7179 = vadd.f32 0.0, %v7178
        %v7180 = vpop.f32.mrb[0].mxu0
        %7181 = vmatprep.mubr.bf16.mxu0 %v7014
        %7182 = vmatmul.mubr.bf16.gmra.mrb[0].mxu0 %v6846
        %v7183 = vpop.f32.mrb[0].mxu0
        %v7184 = vadd.f32 0.0, %v7183
        %v7185 = vpop.f32.mrb[0].mxu0
        %v7186 = vpop.f32.mrb[0].mxu0
        %v7187 = vadd.f32 0.0, %v7186
        %v7188 = vpop.f32.mrb[0].mxu0
        %7189 = vmatprep.mubr.bf16.mxu0 %v7017
        %7190 = vmatmul.mubr.bf16.gmra.mrb[0].mxu0 %v6849
        %v7191 = vpop.f32.mrb[0].mxu0
        %v7192 = vadd.f32 0.0, %v7191
        %v7193 = vpop.f32.mrb[0].mxu0
        %v7194 = vpop.f32.mrb[0].mxu0
        %v7195 = vadd.f32 0.0, %v7194
        %v7196 = vpop.f32.mrb[0].mxu0
        %7197 = vmatprep.mubr.bf16.mxu0 %v7020
        %7198 = vmatmul.mubr.bf16.gmra.mrb[0].mxu0 %v6852
        %v7199 = vpop.f32.mrb[0].mxu0
        %v7200 = vadd.f32 0.0, %v7199
        %v7201 = vpop.f32.mrb[0].mxu0
        %v7202 = vpop.f32.mrb[0].mxu0
        %v7203 = vadd.f32 0.0, %v7202
        %v7204 = vpop.f32.mrb[0].mxu0
        %7205 = vmatprep.mubr.bf16.mxu0 %v7023
        %7206 = vmatmul.mubr.bf16.gmra.mrb[0].mxu0 %v6855
        %v7207 = vpop.f32.mrb[0].mxu0
        %v7208 = vadd.f32 0.0, %v7207
        %v7209 = vpop.f32.mrb[0].mxu0
        %v7210 = vpop.f32.mrb[0].mxu0
        %v7211 = vadd.f32 0.0, %v7210
        %v7212 = vpop.f32.mrb[0].mxu0
        %7213 = vmatprep.mubr.bf16.mxu0 %v7026
        %7214 = vmatmul.mubr.bf16.gmra.mrb[0].mxu0 %v6858
        %v7215 = vpop.f32.mrb[0].mxu0
        %v7216 = vadd.f32 0.0, %v7215
        %v7217 = vpop.f32.mrb[0].mxu0
        %v7218 = vpop.f32.mrb[0].mxu0
        %v7219 = vadd.f32 0.0, %v7218
        %v7220 = vpop.f32.mrb[0].mxu0
        %7221 = vmatprep.mubr.bf16.mxu0 %v7029
        %7222 = vmatmul.mubr.bf16.gmra.mrb[0].mxu0 %v6861
        %v7223 = vpop.f32.mrb[0].mxu0
        %v7224 = vadd.f32 0.0, %v7223
        %v7225 = vpop.f32.mrb[0].mxu0
        %v7226 = vpop.f32.mrb[0].mxu0
        %v7227 = vadd.f32 0.0, %v7226
        %v7228 = vpop.f32.mrb[0].mxu0
        %7229 = vmatprep.mubr.bf16.mxu0 %v7032
        %7230 = vmatmul.mubr.bf16.gmra.mrb[0].mxu0 %v6864
        %v7231 = vpop.f32.mrb[0].mxu0
        %v7232 = vadd.f32 0.0, %v7231
        %v7233 = vpop.f32.mrb[0].mxu0
        %v7234 = vpop.f32.mrb[0].mxu0
        %v7235 = vadd.f32 0.0, %v7234
        %v7236 = vpop.f32.mrb[0].mxu0
        %7237 = vmatprep.mubr.bf16.mxu0 %v7035
        %7238 = vmatmul.mubr.bf16.gmra.mrb[0].mxu0 %v6867
        %v7239 = vpop.f32.mrb[0].mxu0
        %v7240 = vadd.f32 0.0, %v7239
        %v7241 = vpop.f32.mrb[0].mxu0
        %v7242 = vpop.f32.mrb[0].mxu0
        %v7243 = vadd.f32 0.0, %v7242
        %v7244 = vpop.f32.mrb[0].mxu0
        %7245 = vmatprep.mubr.bf16.mxu0 %v7038
        %7246 = vmatmul.mubr.bf16.gmra.mrb[0].mxu0 %v6870
        %v7247 = vpop.f32.mrb[0].mxu0
        %v7248 = vadd.f32 0.0, %v7247
        %v7249 = vpop.f32.mrb[0].mxu0
        %v7250 = vpop.f32.mrb[0].mxu0
        %v7251 = vadd.f32 0.0, %v7250
        %v7252 = vpop.f32.mrb[0].mxu0
        %7253 = vmatprep.mubr.bf16.mxu0 %v7041
        %7254 = vmatmul.mubr.bf16.gmra.mrb[0].mxu0 %v6873
        %v7255 = vpop.f32.mrb[0].mxu0
        %v7256 = vadd.f32 0.0, %v7255
        %v7257 = vpop.f32.mrb[0].mxu0
        %v7258 = vpop.f32.mrb[0].mxu0
        %v7259 = vadd.f32 0.0, %v7258
        %v7260 = vpop.f32.mrb[0].mxu0
        %7261 = vmatprep.mubr.bf16.mxu0 %v7044
        %7262 = vmatmul.mubr.bf16.gmra.mrb[0].mxu0 %v6876
        %v7263 = vpop.f32.mrb[0].mxu0
        %v7264 = vadd.f32 0.0, %v7263
        %v7265 = vpop.f32.mrb[0].mxu0
        %v7266 = vpop.f32.mrb[0].mxu0
        %v7267 = vadd.f32 0.0, %v7266
        %v7268 = vpop.f32.mrb[0].mxu0
        %7269 = vmatprep.mubr.bf16.mxu0 %v7047
        %7270 = vmatmul.mubr.bf16.gmra.mrb[0].mxu0 %v6879
        %v7271 = vpop.f32.mrb[0].mxu0
        %v7272 = vadd.f32 0.0, %v7271
        %v7273 = vpop.f32.mrb[0].mxu0
        %v7274 = vpop.f32.mrb[0].mxu0
        %v7275 = vadd.f32 0.0, %v7274
        %v7276 = vpop.f32.mrb[0].mxu0
        %7277 = vmatprep.mubr.bf16.mxu0 %v7050
        %7278 = vmatmul.mubr.bf16.gmra.mrb[0].mxu0 %v6882
        %v7279 = vpop.f32.mrb[0].mxu0
        %v7280 = vadd.f32 0.0, %v7279
        %v7281 = vpop.f32.mrb[0].mxu0
        %v7282 = vpop.f32.mrb[0].mxu0
        %v7283 = vadd.f32 0.0, %v7282
        %v7284 = vpop.f32.mrb[0].mxu0
        %7285 = vmatprep.mubr.bf16.mxu0 %v7053
        %7286 = vmatmul.mubr.bf16.gmra.mrb[0].mxu0 %v6885
        %v7287 = vpop.f32.mrb[0].mxu0
        %v7288 = vadd.f32 0.0, %v7287
        %v7289 = vpop.f32.mrb[0].mxu0
        %v7290 = vpop.f32.mrb[0].mxu0
        %v7291 = vadd.f32 0.0, %v7290
        %v7292 = vpop.f32.mrb[0].mxu0
        %7293 = vmatprep.mubr.bf16.mxu0 %v7056
        %7294 = vmatmul.mubr.bf16.gmra.mrb[0].mxu0 %v6888
        %v7295 = vpop.f32.mrb[0].mxu0
        %v7296 = vadd.f32 0.0, %v7295
        %v7297 = vpop.f32.mrb[0].mxu0
        %v7298 = vpop.f32.mrb[0].mxu0
        %v7299 = vadd.f32 0.0, %v7298
        %v7300 = vpop.f32.mrb[0].mxu0
        %7301 = vmatprep.mubr.bf16.mxu0 %v7059
        %7302 = vmatmul.mubr.bf16.gmra.mrb[0].mxu0 %v6891
        %v7303 = vpop.f32.mrb[0].mxu0
        %v7304 = vadd.f32 0.0, %v7303
        %v7305 = vpop.f32.mrb[0].mxu0
        %v7306 = vpop.f32.mrb[0].mxu0
        %v7307 = vadd.f32 0.0, %v7306
        %v7308 = vpop.f32.mrb[0].mxu0
        %7309 = vmatprep.mubr.bf16.mxu0 %v7062
        %7310 = vmatmul.mubr.bf16.gmra.mrb[0].mxu0 %v6894
        %v7311 = vpop.f32.mrb[0].mxu0
        %v7312 = vadd.f32 0.0, %v7311
        %v7313 = vpop.f32.mrb[0].mxu0
        %v7314 = vpop.f32.mrb[0].mxu0
        %v7315 = vadd.f32 0.0, %v7314
        %v7316 = vpop.f32.mrb[0].mxu0
        %7317 = vmatprep.mubr.bf16.mxu0 %v7065
        %7318 = vmatmul.mubr.bf16.gmra.mrb[0].mxu0 %v6897
        %v7319 = vpop.f32.mrb[0].mxu0
        %v7320 = vadd.f32 0.0, %v7319
        %v7321 = vpop.f32.mrb[0].mxu0
        %v7322 = vpop.f32.mrb[0].mxu0
        %v7323 = vadd.f32 0.0, %v7322
        %v7324 = vpop.f32.mrb[0].mxu0
        %7325 = vmatprep.mubr.bf16.mxu0 %v7068
        %7326 = vmatmul.mubr.bf16.gmra.mrb[0].mxu0 %v6900
        %v7327 = vpop.f32.mrb[0].mxu0
        %v7328 = vadd.f32 0.0, %v7327
        %v7329 = vpop.f32.mrb[0].mxu0
        %v7330 = vpop.f32.mrb[0].mxu0
        %v7331 = vadd.f32 0.0, %v7330
        %v7332 = vpop.f32.mrb[0].mxu0
        %7333 = vmatprep.mubr.bf16.mxu0 %v7071
        %7334 = vmatmul.mubr.bf16.gmra.mrb[0].mxu0 %v6903
        %v7335 = vpop.f32.mrb[0].mxu0
        %v7336 = vadd.f32 0.0, %v7335
        %v7337 = vpop.f32.mrb[0].mxu0
        %v7338 = vpop.f32.mrb[0].mxu0
        %v7339 = vadd.f32 0.0, %v7338
        %v7340 = vpop.f32.mrb[0].mxu0
        %7341 = vmatprep.mubr.bf16.mxu0 %v7074
        %7342 = vmatmul.mubr.bf16.gmra.mrb[0].mxu0 %v6906
        %v7343 = vpop.f32.mrb[0].mxu0
        %v7344 = vadd.f32 0.0, %v7343
        %v7345 = vpop.f32.mrb[0].mxu0
        %v7346 = vpop.f32.mrb[0].mxu0
        %v7347 = vadd.f32 0.0, %v7346
        %v7348 = vpop.f32.mrb[0].mxu0
        %7349 = vmatprep.mubr.bf16.mxu0 %v7077
        %7350 = vmatmul.mubr.bf16.gmra.mrb[0].mxu0 %v6909
        %v7351 = vpop.f32.mrb[0].mxu0
        %v7352 = vadd.f32 0.0, %v7351
        %v7353 = vpop.f32.mrb[0].mxu0
        %v7354 = vpop.f32.mrb[0].mxu0
        %v7355 = vadd.f32 0.0, %v7354
        %v7356 = vpop.f32.mrb[0].mxu0
        %7357 = vmatprep.mubr.bf16.mxu0 %v7080
        %7358 = vmatmul.mubr.bf16.gmra.mrb[0].mxu0 %v6912
        %v7359 = vpop.f32.mrb[0].mxu0
        %v7360 = vadd.f32 0.0, %v7359
        %v7361 = vpop.f32.mrb[0].mxu0
        %v7362 = vpop.f32.mrb[0].mxu0
        %v7363 = vadd.f32 0.0, %v7362
        %v7364 = vpop.f32.mrb[0].mxu0
        %7365 = vmatprep.mubr.bf16.mxu0 %v7083
        %7366 = vmatmul.mubr.bf16.gmra.mrb[0].mxu0 %v6915
        %v7367 = vpop.f32.mrb[0].mxu0
        %v7368 = vadd.f32 0.0, %v7367
        %v7369 = vpop.f32.mrb[0].mxu0
        %v7370 = vpop.f32.mrb[0].mxu0
        %v7371 = vadd.f32 0.0, %v7370
        %v7372 = vpop.f32.mrb[0].mxu0
        %7373 = vdwg.mxu0
        %v7374 = vmax.f32 %v7120, 0.0
        %v7375 = vmax.f32 %v7123, 0.0
        %v7376 = vmax.f32 %v7128, 0.0
        %v7377 = vmax.f32 %v7131, 0.0
        %v7378 = vmax.f32 %v7136, 0.0
        %v7379 = vmax.f32 %v7139, 0.0
        %v7380 = vmax.f32 %v7144, 0.0
        %v7381 = vmax.f32 %v7147, 0.0
        %v7382 = vmax.f32 %v7152, 0.0
        %v7383 = vmax.f32 %v7155, 0.0
        %v7384 = vmax.f32 %v7160, 0.0
        %v7385 = vmax.f32 %v7163, 0.0
        %v7386 = vmax.f32 %v7168, 0.0
        %v7387 = vmax.f32 %v7171, 0.0
        %v7388 = vmax.f32 %v7176, 0.0
        %v7389 = vmax.f32 %v7179, 0.0
        %v7390 = vmax.f32 %v7184, 0.0
        %v7391 = vmax.f32 %v7187, 0.0
        %v7392 = vmax.f32 %v7192, 0.0
        %v7393 = vmax.f32 %v7195, 0.0
        %v7394 = vmax.f32 %v7200, 0.0
        %v7395 = vmax.f32 %v7203, 0.0
        %v7396 = vmax.f32 %v7208, 0.0
        %v7397 = vmax.f32 %v7211, 0.0
        %v7398 = vmax.f32 %v7216, 0.0
        %v7399 = vmax.f32 %v7219, 0.0
        %v7400 = vmax.f32 %v7224, 0.0
        %v7401 = vmax.f32 %v7227, 0.0
        %v7402 = vmax.f32 %v7232, 0.0
        %v7403 = vmax.f32 %v7235, 0.0
        %v7404 = vmax.f32 %v7240, 0.0
        %v7405 = vmax.f32 %v7243, 0.0
        %v7406 = vmax.f32 %v7248, 0.0
        %v7407 = vmax.f32 %v7251, 0.0
        %v7408 = vmax.f32 %v7256, 0.0
        %v7409 = vmax.f32 %v7259, 0.0
        %v7410 = vmax.f32 %v7264, 0.0
        %v7411 = vmax.f32 %v7267, 0.0
        %v7412 = vmax.f32 %v7272, 0.0
        %v7413 = vmax.f32 %v7275, 0.0
        %v7414 = vmax.f32 %v7280, 0.0
        %v7415 = vmax.f32 %v7283, 0.0
        %v7416 = vmax.f32 %v7288, 0.0
        %v7417 = vmax.f32 %v7291, 0.0
        %v7418 = vmax.f32 %v7296, 0.0
        %v7419 = vmax.f32 %v7299, 0.0
        %v7420 = vmax.f32 %v7304, 0.0
        %v7421 = vmax.f32 %v7307, 0.0
        %v7422 = vmax.f32 %v7312, 0.0
        %v7423 = vmax.f32 %v7315, 0.0
        %v7424 = vmax.f32 %v7320, 0.0
        %v7425 = vmax.f32 %v7323, 0.0
        %v7426 = vmax.f32 %v7328, 0.0
        %v7427 = vmax.f32 %v7331, 0.0
        %v7428 = vmax.f32 %v7336, 0.0
        %v7429 = vmax.f32 %v7339, 0.0
        %v7430 = vmax.f32 %v7344, 0.0
        %v7431 = vmax.f32 %v7347, 0.0
        %v7432 = vmax.f32 %v7352, 0.0
        %v7433 = vmax.f32 %v7355, 0.0
        %v7434 = vmax.f32 %v7360, 0.0
        %v7435 = vmax.f32 %v7363, 0.0
        %v7436 = vmax.f32 %v7368, 0.0
        %v7437 = vmax.f32 %v7371, 0.0
        %7438 = vxpose.xlu0.b32.start [1/16] %v7374, 128
        %7439 = vxpose.xlu0.b32.cont [2/16] %v7375, 128
        %7440 = vxpose.xlu0.b32.cont [3/16] %v7376, 128
        %7441 = vxpose.xlu0.b32.cont [4/16] %v7377, 128
        %7442 = vxpose.xlu0.b32.cont [5/16] %v7378, 128
        %7443 = vxpose.xlu0.b32.cont [6/16] %v7379, 128
        %7444 = vxpose.xlu0.b32.cont [7/16] %v7380, 128
        %7445 = vxpose.xlu0.b32.cont [8/16] %v7381, 128
        %7446 = vxpose.xlu0.b32.cont [9/16] %v7382, 128
        %7447 = vxpose.xlu0.b32.cont [10/16] %v7383, 128
        %7448 = vxpose.xlu0.b32.cont [11/16] %v7384, 128
        %7449 = vxpose.xlu0.b32.cont [12/16] %v7385, 128
        %7450 = vxpose.xlu0.b32.cont [13/16] %v7386, 128
        %7451 = vxpose.xlu0.b32.cont [14/16] %v7387, 128
        %7452 = vxpose.xlu0.b32.cont [15/16] %v7388, 128
        %7453 = vxpose.xlu0.b32.end [16/16] %v7389, 128
        %v7454 = vpop.trf.xlu0
        %v7455 = vpop.trf.xlu0
        %v7456 = vpop.trf.xlu0
        %v7457 = vpop.trf.xlu0
        %v7458 = vpop.trf.xlu0
        %v7459 = vpop.trf.xlu0
        %v7460 = vpop.trf.xlu0
        %v7461 = vpop.trf.xlu0
        %v7462 = vpop.trf.xlu0
        %v7463 = vpop.trf.xlu0
        %v7464 = vpop.trf.xlu0
        %v7465 = vpop.trf.xlu0
        %v7466 = vpop.trf.xlu0
        %v7467 = vpop.trf.xlu0
        %v7468 = vpop.trf.xlu0
        %v7469 = vpop.trf.xlu0
        %7470 = vxpose.xlu0.b32.start [1/16] %v7390, 128
        %7471 = vxpose.xlu0.b32.cont [2/16] %v7391, 128
        %7472 = vxpose.xlu0.b32.cont [3/16] %v7392, 128
        %7473 = vxpose.xlu0.b32.cont [4/16] %v7393, 128
        %7474 = vxpose.xlu0.b32.cont [5/16] %v7394, 128
        %7475 = vxpose.xlu0.b32.cont [6/16] %v7395, 128
        %7476 = vxpose.xlu0.b32.cont [7/16] %v7396, 128
        %7477 = vxpose.xlu0.b32.cont [8/16] %v7397, 128
        %7478 = vxpose.xlu0.b32.cont [9/16] %v7398, 128
        %7479 = vxpose.xlu0.b32.cont [10/16] %v7399, 128
        %7480 = vxpose.xlu0.b32.cont [11/16] %v7400, 128
        %7481 = vxpose.xlu0.b32.cont [12/16] %v7401, 128
        %7482 = vxpose.xlu0.b32.cont [13/16] %v7402, 128
        %7483 = vxpose.xlu0.b32.cont [14/16] %v7403, 128
        %7484 = vxpose.xlu0.b32.cont [15/16] %v7404, 128
        %7485 = vxpose.xlu0.b32.end [16/16] %v7405, 128
        %v7486 = vpop.trf.xlu0
        %v7487 = vpop.trf.xlu0
        %v7488 = vpop.trf.xlu0
        %v7489 = vpop.trf.xlu0
        %v7490 = vpop.trf.xlu0
        %v7491 = vpop.trf.xlu0
        %v7492 = vpop.trf.xlu0
        %v7493 = vpop.trf.xlu0
        %v7494 = vpop.trf.xlu0
        %v7495 = vpop.trf.xlu0
        %v7496 = vpop.trf.xlu0
        %v7497 = vpop.trf.xlu0
        %v7498 = vpop.trf.xlu0
        %v7499 = vpop.trf.xlu0
        %v7500 = vpop.trf.xlu0
        %v7501 = vpop.trf.xlu0
        %7502 = vst [vmem:[%s162] sm:$0xff] %v7454
        %7503 = vst [vmem:[%s162 + $0x8] sm:$0xff] %v7486
        %7504 = vst [vmem:[%s162 + $0x10] sm:$0xff] %v7455
        %7505 = vst [vmem:[%s162 + $0x18] sm:$0xff] %v7487
        %7506 = vst [vmem:[%s162 + $0x20] sm:$0xff] %v7456
        %7507 = vst [vmem:[%s162 + $0x28] sm:$0xff] %v7488
        %7508 = vst [vmem:[%s162 + $0x30] sm:$0xff] %v7457
        %7509 = vst [vmem:[%s162 + $0x38] sm:$0xff] %v7489
        %7510 = vxpose.xlu0.b32.start [1/16] %v7406, 128
        %7511 = vxpose.xlu0.b32.cont [2/16] %v7407, 128
        %7512 = vxpose.xlu0.b32.cont [3/16] %v7408, 128
        %7513 = vxpose.xlu0.b32.cont [4/16] %v7409, 128
        %7514 = vxpose.xlu0.b32.cont [5/16] %v7410, 128
        %7515 = vxpose.xlu0.b32.cont [6/16] %v7411, 128
        %7516 = vxpose.xlu0.b32.cont [7/16] %v7412, 128
        %7517 = vxpose.xlu0.b32.cont [8/16] %v7413, 128
        %7518 = vxpose.xlu0.b32.cont [9/16] %v7414, 128
        %7519 = vxpose.xlu0.b32.cont [10/16] %v7415, 128
        %7520 = vxpose.xlu0.b32.cont [11/16] %v7416, 128
        %7521 = vxpose.xlu0.b32.cont [12/16] %v7417, 128
        %7522 = vxpose.xlu0.b32.cont [13/16] %v7418, 128
        %7523 = vxpose.xlu0.b32.cont [14/16] %v7419, 128
        %7524 = vxpose.xlu0.b32.cont [15/16] %v7420, 128
        %7525 = vxpose.xlu0.b32.end [16/16] %v7421, 128
        %v7526 = vpop.trf.xlu0
        %v7527 = vpop.trf.xlu0
        %v7528 = vpop.trf.xlu0
        %v7529 = vpop.trf.xlu0
        %v7530 = vpop.trf.xlu0
        %v7531 = vpop.trf.xlu0
        %v7532 = vpop.trf.xlu0
        %v7533 = vpop.trf.xlu0
        %v7534 = vpop.trf.xlu0
        %v7535 = vpop.trf.xlu0
        %v7536 = vpop.trf.xlu0
        %v7537 = vpop.trf.xlu0
        %v7538 = vpop.trf.xlu0
        %v7539 = vpop.trf.xlu0
        %v7540 = vpop.trf.xlu0
        %v7541 = vpop.trf.xlu0
        %7542 = vxpose.xlu0.b32.start [1/16] %v7422, 128
        %7543 = vxpose.xlu0.b32.cont [2/16] %v7423, 128
        %7544 = vxpose.xlu0.b32.cont [3/16] %v7424, 128
        %7545 = vxpose.xlu0.b32.cont [4/16] %v7425, 128
        %7546 = vxpose.xlu0.b32.cont [5/16] %v7426, 128
        %7547 = vxpose.xlu0.b32.cont [6/16] %v7427, 128
        %7548 = vxpose.xlu0.b32.cont [7/16] %v7428, 128
        %7549 = vxpose.xlu0.b32.cont [8/16] %v7429, 128
        %7550 = vxpose.xlu0.b32.cont [9/16] %v7430, 128
        %7551 = vxpose.xlu0.b32.cont [10/16] %v7431, 128
        %7552 = vxpose.xlu0.b32.cont [11/16] %v7432, 128
        %7553 = vxpose.xlu0.b32.cont [12/16] %v7433, 128
        %7554 = vxpose.xlu0.b32.cont [13/16] %v7434, 128
        %7555 = vxpose.xlu0.b32.cont [14/16] %v7435, 128
        %7556 = vxpose.xlu0.b32.cont [15/16] %v7436, 128
        %7557 = vxpose.xlu0.b32.end [16/16] %v7437, 128
        %v7558 = vpop.trf.xlu0
        %v7559 = vpop.trf.xlu0
        %v7560 = vpop.trf.xlu0
        %v7561 = vpop.trf.xlu0
        %v7562 = vpop.trf.xlu0
        %v7563 = vpop.trf.xlu0
        %v7564 = vpop.trf.xlu0
        %v7565 = vpop.trf.xlu0
        %v7566 = vpop.trf.xlu0
        %v7567 = vpop.trf.xlu0
        %v7568 = vpop.trf.xlu0
        %v7569 = vpop.trf.xlu0
        %v7570 = vpop.trf.xlu0
        %v7571 = vpop.trf.xlu0
        %v7572 = vpop.trf.xlu0
        %v7573 = vpop.trf.xlu0
        %s7574 = scalar_lea.vmem %s162, 64 [#allocation6]
        %7575 = vst [vmem:[%s7574] sm:$0xff] %v7526
        %7576 = vst [vmem:[%s7574 + $0x8] sm:$0xff] %v7558
        %7577 = vst [vmem:[%s7574 + $0x10] sm:$0xff] %v7527
        %7578 = vst [vmem:[%s7574 + $0x18] sm:$0xff] %v7559
        %7579 = vst [vmem:[%s7574 + $0x20] sm:$0xff] %v7528
        %7580 = vst [vmem:[%s7574 + $0x28] sm:$0xff] %v7560
        %7581 = vst [vmem:[%s7574 + $0x30] sm:$0xff] %v7529
        %7582 = vst [vmem:[%s7574 + $0x38] sm:$0xff] %v7561
        %s7583 = sand.u32 %s74, 1
        %s7584 = scalar_lea.sflag [#allocation5], %s7583
        %s7585 = sand.u32 %s74, 1
        %s7586 = smul.addr %s7585, 128
        %s7587 = scalar_lea.vmem [#allocation6], %s7586
        // Predicated region
        $region33: #{tpu_custom_call.1} parent=27 // pred_check
          %p7588 = pneg %p84
        $region34: #{tpu_custom_call.1} parent=27 // pred_check_branch
          %7590 = sbr.rel (%p7588) target = $region36
        $region35: #{tpu_custom_call.1} parent=27 // pred_region
          %s7591 = smul.u32 2, %s19
          %s7593 = ssub.s32 2048, 2048
          %7594 = vsyncadd %s7584, %s7593
          %s7595 = smul.addr %s7591, 8
          %s7596 = smul.addr %s7595, 128
          %s7597 = scalar_lea.hbm %s2, %s7596
          %s7598 = sshll.u32 %s7587, 4
          %s7599 = int_to_ptr.vmem [resolvable:$true] %s7598
          %7604 = dma.vmem_to_hbm [thread:$0]  %s7599, 2048, %s7597, %s7584, 256, 256, 16
        $region36: #{tpu_custom_call.1} parent=27 // pred_fallthru
          _
      $region28: #{tpu_custom_call.1} parent=5 // pred_fallthru
        _
      %p7605 = scmp.le.s32.totalorder 2, %s14
      // Predicated region
      $region37: #{tpu_custom_call.1} parent=5 // pred_check
        %p7606 = pneg %p7605
      $region38: #{tpu_custom_call.1} parent=5 // pred_check_branch
        %7608 = sbr.rel (%p7606) target = $region40
      $region39: #{tpu_custom_call.1} parent=5 // pred_region
        %s7609 = ssub.s32 %s14, 2
        // Predicated region
        $region41: #{tpu_custom_call.1} parent=39 // pred_check
          %p7610 = pneg %p90
        $region42: #{tpu_custom_call.1} parent=39 // pred_check_branch
          %7612 = sbr.rel (%p7610) target = $region44
        $region43: #{tpu_custom_call.1} parent=39 // pred_region
          %s7613 = sand.u32 %s75, 1
          %s7614 = scalar_lea.sflag [#allocation5], %s7613
          %s7615 = sand.u32 %s75, 1
          %s7616 = smul.addr %s7615, 128
          %s7617 = scalar_lea.vmem [#allocation6], %s7616
          %7618 = dma.done %s7614, 2048
        $region44: #{tpu_custom_call.1} parent=39 // pred_fallthru
          _
      $region40: #{tpu_custom_call.1} parent=5 // pred_fallthru
        _
    $region6: #{tpu_custom_call.1} parent=1 // loop_footer
      %s18 = sadd.s32 1, %s14
    $region7: #{tpu_custom_call.1} parent=1 // loop_footer_branch
      %13 = sbr.rel target = $region3
    $region8: #{tpu_custom_call.1} parent=1 // loop_exit
      _
    %7619 = vsyncpa [#allocation4], 1
    %s7620 = scalar_lea.sflag [#allocation4], 1
    %7621 = vsyncpa %s7620, 1
    %7622 = vsyncpa [#allocation5], 1
    %s7623 = scalar_lea.sflag [#allocation5], 1
    %7624 = vsyncpa %s7623, 1

</llo_original>
